<compile_context>
chip_gen: v6e
topology: v6e:2x2x1
jax: 0.10.0
libtpu: 0.0.40
codegen_flags: <defaults>
</compile_context>

<pallas_src>
import math

import jax
import jax.numpy as jnp
from jax import lax
from jax.experimental import pallas as pl
from jax.experimental.pallas import tpu as pltpu


_VMEM_LIMIT = 32 * 1024 * 1024
CH = 8  # timestep chunk inside the selective scan (sublane-dense stores)


def _rup(x, m):
    return ((x + m - 1) // m) * m


# ----------------------------- tiled matmul -----------------------------

def _mm_kernel(x_ref, w_ref, o_ref, acc_ref):
    @pl.when(pl.program_id(2) == 0)
    def _init():
        acc_ref[...] = jnp.zeros_like(acc_ref)

    acc_ref[...] += jnp.dot(x_ref[...].astype(jnp.bfloat16), w_ref[...],
                            preferred_element_type=jnp.float32)

    @pl.when(pl.program_id(2) == pl.num_programs(2) - 1)
    def _store():
        o_ref[...] = acc_ref[...]


def pallas_matmul(x, w, *, tm=256, tn=256, tk=512):
    """x (M,K) f32  @  w (K,N) bf16  -> (M,N) f32, tiled + bf16 MXU."""
    M, K = x.shape
    _, N = w.shape
    tm = min(tm, _rup(M, 16))
    tn = tn if N > tn else N
    tk = tk if K > tk else K
    Mp, Kp, Np = _rup(M, tm), _rup(K, tk), _rup(N, tn)
    xp = x if (Mp == M and Kp == K) else jnp.pad(x, ((0, Mp - M), (0, Kp - K)))
    wp = w if (Kp == K and Np == N) else jnp.pad(w, ((0, Kp - K), (0, Np - N)))
    out = pl.pallas_call(
        _mm_kernel,
        out_shape=jax.ShapeDtypeStruct((Mp, Np), jnp.float32),
        grid=(Mp // tm, Np // tn, Kp // tk),
        in_specs=[pl.BlockSpec((tm, tk), lambda i, j, k: (i, k)),
                  pl.BlockSpec((tk, tn), lambda i, j, k: (k, j))],
        out_specs=pl.BlockSpec((tm, tn), lambda i, j, k: (i, j)),
        scratch_shapes=[pltpu.VMEM((tm, tn), jnp.float32)],
        compiler_params=pltpu.CompilerParams(
            dimension_semantics=("parallel", "parallel", "arbitrary"),
            vmem_limit_bytes=_VMEM_LIMIT),
    )(xp, wp)
    return out[:M, :N]


# ----------------------------- token embedding -----------------------------

def _token_emb_kernel(xp_ref, w_ref, o_ref):
    # xp: (1, L+K-1, C) replicate-padded input; w: (K, C, Dm); out: (1, L, Dm)
    _, L, Dm = o_ref.shape
    K = w_ref.shape[0]
    acc = jnp.zeros((L, Dm), jnp.float32)
    for k in range(K):                                   # static taps
        acc = acc + jnp.dot(xp_ref[0, k:k + L, :], w_ref[k],
                            preferred_element_type=jnp.float32)
    o_ref[0, :, :] = acc


def token_embedding(x, w_kcd, seqlen):
    # Conv1d(c_in, d_model, K, padding=K-1, padding_mode='replicate')[..., :L]
    # == causal conv over [t-(K-1), t] with left replicate (clamp) padding.
    B, L, C = x.shape
    K, _, Dm = w_kcd.shape
    xpad = jnp.concatenate([jnp.repeat(x[:, :1, :], K - 1, axis=1), x], axis=1)
    out = pl.pallas_call(
        _token_emb_kernel,
        out_shape=jax.ShapeDtypeStruct((B, L, Dm), jnp.float32),
        grid=(B,),
        in_specs=[pl.BlockSpec((1, L + K - 1, C), lambda i: (i, 0, 0)),
                  pl.BlockSpec((K, C, Dm), lambda i: (0, 0, 0))],
        out_specs=pl.BlockSpec((1, L, Dm), lambda i: (i, 0, 0)),
        compiler_params=pltpu.CompilerParams(
            dimension_semantics=("parallel",)),
    )(xpad, w_kcd)
    return out[:, :seqlen, :]


# ------------------------- depthwise causal conv + SiLU -------------------------

def _dwconv_silu_kernel(xp_ref, w_ref, b_ref, o_ref):
    _, L, Di = o_ref.shape
    K = w_ref.shape[0]
    acc = jnp.zeros((L, Di), jnp.float32)
    for k in range(K):                                   # static unrolled taps
        acc = acc + xp_ref[0, k:k + L, :] * w_ref[k:k + 1, :]
    acc = acc + b_ref[...]
    o_ref[0, :, :] = acc * jax.nn.sigmoid(acc)           # fused SiLU


def pallas_dwconv_silu(x, w, b):
    Bn, L, Di = x.shape
    K = w.shape[0]
    xpad = jnp.concatenate([jnp.zeros((Bn, K - 1, Di), jnp.float32), x], axis=1)
    return pl.pallas_call(
        _dwconv_silu_kernel,
        out_shape=jax.ShapeDtypeStruct((Bn, L, Di), jnp.float32),
        grid=(Bn,),
        in_specs=[pl.BlockSpec((1, L + K - 1, Di), lambda i: (i, 0, 0)),
                  pl.BlockSpec((K, Di), lambda i: (0, 0)),
                  pl.BlockSpec((1, Di), lambda i: (0, 0))],
        out_specs=pl.BlockSpec((1, L, Di), lambda i: (i, 0, 0)),
        compiler_params=pltpu.CompilerParams(
            dimension_semantics=("parallel",)),
    )(xpad, w, b.reshape(1, Di))


# ----------------- fused x_proj + dt_proj (+bias +softplus) -----------------

def _xdt_proj_kernel(xc_ref, wxd_ref, wxb_ref, wxc_ref, wdt_ref, bdt_ref,
                     dlt_ref, bo_ref, co_ref):
    xcb = xc_ref[...].astype(jnp.bfloat16)
    bo_ref[...] = jnp.dot(xcb, wxb_ref[...], preferred_element_type=jnp.float32)
    co_ref[...] = jnp.dot(xcb, wxc_ref[...], preferred_element_type=jnp.float32)
    dt_low = jnp.dot(xc_ref[...], wxd_ref[...],
                     preferred_element_type=jnp.float32)          # (tm, R)
    d_raw = jnp.dot(dt_low, wdt_ref[...],
                    preferred_element_type=jnp.float32) + bdt_ref[...]
    # softplus with overflow guard
    dlt_ref[...] = jnp.where(d_raw > 20.0, d_raw,
                             jnp.log(1.0 + jnp.exp(jnp.minimum(d_raw, 20.0))))


def pallas_x_dt_proj(xc2d, pm):
    M, Di = xc2d.shape
    R = pm['x_proj_dt_w'].shape[1]
    N = pm['x_proj_B_w'].shape[1]
    tm = min(256, _rup(M, 16))
    Mp = _rup(M, tm)
    xp = xc2d if Mp == M else jnp.pad(xc2d, ((0, Mp - M), (0, 0)))
    dlt, Bs, Cs = pl.pallas_call(
        _xdt_proj_kernel,
        out_shape=(jax.ShapeDtypeStruct((Mp, Di), jnp.float32),
                   jax.ShapeDtypeStruct((Mp, N), jnp.float32),
                   jax.ShapeDtypeStruct((Mp, N), jnp.float32)),
        grid=(Mp // tm,),
        in_specs=[pl.BlockSpec((tm, Di), lambda i: (i, 0)),
                  pl.BlockSpec((Di, R), lambda i: (0, 0)),
                  pl.BlockSpec((Di, N), lambda i: (0, 0)),
                  pl.BlockSpec((Di, N), lambda i: (0, 0)),
                  pl.BlockSpec((R, Di), lambda i: (0, 0)),
                  pl.BlockSpec((1, Di), lambda i: (0, 0))],
        out_specs=(pl.BlockSpec((tm, Di), lambda i: (i, 0)),
                   pl.BlockSpec((tm, N), lambda i: (i, 0)),
                   pl.BlockSpec((tm, N), lambda i: (i, 0))),
        compiler_params=pltpu.CompilerParams(
            dimension_semantics=("parallel",)),
    )(xp, pm['x_proj_dt_w'], pm['x_proj_B_w'], pm['x_proj_C_w'],
      pm['dt_proj_w'], pm['dt_proj_b'])
    if Mp != M:
        dlt, Bs, Cs = dlt[:M], Bs[:M], Cs[:M]
    return dlt, Bs, Cs


# ----------------------------- selective scan -----------------------------

def _selective_scan_kernel(u_ref, dlt_ref, gate_ref, B_ref, C_ref,
                           At_ref, D_ref, o_ref):
    # u/dlt/gate: (1, Lp, Di); B/C: (1, Lp, N); At: (N, Di); D: (1, Di)
    Lp, Di = u_ref.shape[1], u_ref.shape[2]
    N = At_ref.shape[0]
    At = At_ref[...]
    Drow = D_ref[...]
    eye_n = (lax.broadcasted_iota(jnp.int32, (N, N), 0) ==
             lax.broadcasted_iota(jnp.int32, (N, N), 1)).astype(jnp.float32)
    row_ids = lax.broadcasted_iota(jnp.int32, (CH, 1), 0)

    def chunk_body(c, h):
        base = pl.multiple_of(c * CH, CH)
        u_c = u_ref[0, pl.ds(base, CH), :]           # (CH, Di)
        dlt_c = dlt_ref[0, pl.ds(base, CH), :]       # (CH, Di), softplus'd
        g_c = gate_ref[0, pl.ds(base, CH), :]        # (CH, Di) raw gate
        B_c = B_ref[0, pl.ds(base, CH), :]           # (CH, N)
        C_c = C_ref[0, pl.ds(base, CH), :]           # (CH, N)
        du_c = dlt_c * u_c
        y_chunk = jnp.zeros((CH, Di), jnp.float32)
        for k in range(CH):                          # static unroll in chunk
            dA = jnp.exp(dlt_c[k:k + 1, :] * At)                     # (N, Di)
            B_col = jnp.sum(jnp.broadcast_to(B_c[k:k + 1, :], (N, N)) * eye_n,
                            axis=1, keepdims=True)                   # (N, 1)
            h = dA * h + B_col * du_c[k:k + 1, :]
            y_k = jnp.dot(C_c[k:k + 1, :], h,
                          preferred_element_type=jnp.float32)        # (1, Di)
            y_chunk = y_chunk + (row_ids == k).astype(jnp.float32) * y_k
        y_chunk = (y_chunk + u_c * Drow) * (g_c * jax.nn.sigmoid(g_c))
        o_ref[0, pl.ds(base, CH), :] = y_chunk       # sublane-dense store
        return h

    lax.fori_loop(0, Lp // CH, chunk_body, jnp.zeros((N, Di), jnp.float32))


def pallas_selective_scan(u, delta_sp, gate, B_ssm, C_ssm, At, Drow):
    Bn, L, Di = u.shape
    N = At.shape[0]
    Lp = _rup(L, CH)
    if Lp != L:
        u, delta_sp, gate, B_ssm, C_ssm = [
            jnp.pad(a, ((0, 0), (0, Lp - L), (0, 0)))
            for a in (u, delta_sp, gate, B_ssm, C_ssm)]
    out = pl.pallas_call(
        _selective_scan_kernel,
        out_shape=jax.ShapeDtypeStruct((Bn, Lp, Di), jnp.float32),
        grid=(Bn,),
        in_specs=[pl.BlockSpec((1, Lp, Di), lambda i: (i, 0, 0)),   # u
                  pl.BlockSpec((1, Lp, Di), lambda i: (i, 0, 0)),   # delta
                  pl.BlockSpec((1, Lp, Di), lambda i: (i, 0, 0)),   # gate
                  pl.BlockSpec((1, Lp, N), lambda i: (i, 0, 0)),    # B
                  pl.BlockSpec((1, Lp, N), lambda i: (i, 0, 0)),    # C
                  pl.BlockSpec((N, Di), lambda i: (0, 0)),          # A^T
                  pl.BlockSpec((1, Di), lambda i: (0, 0))],         # D
        out_specs=pl.BlockSpec((1, Lp, Di), lambda i: (i, 0, 0)),
        compiler_params=pltpu.CompilerParams(
            dimension_semantics=("parallel",),
            vmem_limit_bytes=_VMEM_LIMIT),
    )(u, delta_sp, gate, B_ssm, C_ssm, At, Drow)
    return out[:, :L, :] if Lp != L else out


# ------------------------- fused out_proj + LayerNorm -------------------------

def _out_ln_kernel(y_ref, w_ref, g_ref, b_ref, o_ref):
    h = jnp.dot(y_ref[...].astype(jnp.bfloat16), w_ref[...],
                preferred_element_type=jnp.float32)
    mu = jnp.mean(h, axis=-1, keepdims=True)
    xc = h - mu
    var = jnp.mean(xc * xc, axis=-1, keepdims=True)
    o_ref[...] = xc * lax.rsqrt(var + 1e-5) * g_ref[...] + b_ref[...]


def pallas_out_proj_ln(y2d, w_bf16, gamma, beta):
    M, Di = y2d.shape
    Dm = w_bf16.shape[1]
    tm = min(256, _rup(M, 16))
    Mp = _rup(M, tm)
    yp = y2d if Mp == M else jnp.pad(y2d, ((0, Mp - M), (0, 0)))
    out = pl.pallas_call(
        _out_ln_kernel,
        out_shape=jax.ShapeDtypeStruct((Mp, Dm), jnp.float32),
        grid=(Mp // tm,),
        in_specs=[pl.BlockSpec((tm, Di), lambda i: (i, 0)),
                  pl.BlockSpec((Di, Dm), lambda i: (0, 0)),
                  pl.BlockSpec((1, Dm), lambda i: (0, 0)),
                  pl.BlockSpec((1, Dm), lambda i: (0, 0))],
        out_specs=pl.BlockSpec((tm, Dm), lambda i: (i, 0)),
        compiler_params=pltpu.CompilerParams(
            dimension_semantics=("parallel",)),
    )(yp, w_bf16, gamma.reshape(1, Dm), beta.reshape(1, Dm))
    return out[:M] if Mp != M else out


# ----------------------------- model glue (JAX) -----------------------------

def mamba_block_ln(x, pm, ln_g, ln_b, cfg):
    B, L, Dm = x.shape
    Di = cfg['d_inner']

    xz = pallas_matmul(x.reshape(B * L, Dm), pm['in_proj_w'])   # (B*L, 2*Di)
    xin = xz[:, :Di].reshape(B, L, Di)
    res = xz[:, Di:].reshape(B, L, Di)

    xc = pallas_dwconv_silu(xin, pm['conv_w'], pm['conv_b'])    # (B, L, Di)

    dlt, Bs, Cs = pallas_x_dt_proj(xc.reshape(B * L, Di), pm)
    N = Bs.shape[-1]

    y = pallas_selective_scan(xc, dlt.reshape(B, L, Di), res,
                              Bs.reshape(B, L, N), Cs.reshape(B, L, N),
                              pm['A_neg_T'], pm['D'])

    out = pallas_out_proj_ln(y.reshape(B * L, Di), pm['out_proj_w'], ln_g, ln_b)
    return out.reshape(B, L, Dm)


def model_forward(x_enc, x_mark_enc, params, cfg):
    # long_term_forecast / short_term_forecast branch
    seq_len, pred_len = cfg['seq_len'], cfg['pred_len']
    mamba_in = token_embedding(x_enc, params['emb_w_kcd'], x_mark_enc)
    outs = [mamba_in]
    for _ in range((pred_len - 1) // seq_len + 1):
        outs.append(mamba_block_ln(outs[-1], params['mamba'],
                                   params['ln_g'], params['ln_b'], cfg))
    mamba_out = jnp.concatenate(outs[1:], axis=1)[:, :pred_len, :]
    B, P, Dm = mamba_out.shape
    return pallas_matmul(mamba_out.reshape(B * P, Dm),
                         params['out_layer_w']).reshape(B, P, cfg['c_out'])


# ----------------------------- parameters -----------------------------

def init_params(key, cfg):
    Dm, Di, N = cfg['d_model'], cfg['d_inner'], cfg['d_state']
    Kc, Ke, R = cfg['d_conv'], cfg['num_kernels'], cfg['dt_rank']
    Cin, Cout = cfg['enc_in'], cfg['c_out']
    ks = jax.random.split(key, 9)

    def nrm(k, shape, std):
        return std * jax.random.normal(k, shape, jnp.float32)

    bf = lambda a: a.astype(jnp.bfloat16)

    emb_std = math.sqrt(2.0 / (1.0 + 0.01 ** 2) / (Cin * Ke))
    emb_w = nrm(ks[0], (Dm, Cin, Ke), emb_std)          # PyTorch Conv1d layout
    x_proj_w = nrm(ks[4], (Di, R + 2 * N), Di ** -0.5)
    A_log = jnp.log(jnp.broadcast_to(
        jnp.arange(1, N + 1, dtype=jnp.float32), (Di, N)))

    return {
        # (K, C_in, Dm) channels-last layout for the fused embedding kernel
        'emb_w_kcd': jnp.transpose(emb_w, (2, 1, 0)),
        'mamba': {
            'in_proj_w': bf(nrm(ks[1], (Dm, 2 * Di), Dm ** -0.5)),
            'conv_w': nrm(ks[2], (Kc, Di), Kc ** -0.5),
            'conv_b': nrm(ks[3], (Di,), 0.02),
            'x_proj_dt_w': x_proj_w[:, :R],
            'x_proj_B_w': bf(x_proj_w[:, R:R + N]),
            'x_proj_C_w': bf(x_proj_w[:, R + N:]),
            'dt_proj_w': nrm(ks[5], (R, Di), R ** -0.5),
            'dt_proj_b': nrm(ks[6], (1, Di), 0.02),
            'A_neg_T': (-jnp.exp(A_log)).T,             # (N, Di) f32
            'D': jnp.ones((1, Di), jnp.float32),
            'out_proj_w': bf(nrm(ks[7], (Di, Dm), Di ** -0.5)),
        },
        'ln_g': jnp.ones((Dm,), jnp.float32),
        'ln_b': jnp.zeros((Dm,), jnp.float32),
        'out_layer_w': bf(nrm(ks[8], (Dm, Cout), Dm ** -0.5)),
    }


if __name__ == "__main__":
    cfg = dict(task_name='long_term_forecast', seq_len=8, pred_len=8,
               enc_in=4, d_model=32, num_kernels=3,
               d_state=16, d_conv=4, expand=2, c_out=4)
    cfg['d_inner'] = cfg['expand'] * cfg['d_model']
    cfg['dt_rank'] = math.ceil(cfg['d_model'] / 16)

    key = jax.random.PRNGKey(0)
    k_param, k_in = jax.random.split(key)
    params = init_params(k_param, cfg)
    x_enc = jax.random.normal(k_in, (2, cfg['seq_len'], cfg['enc_in']),
                              jnp.float32)

    # In the forecast branch the model passes x_mark_enc as the slice length.
    fwd = jax.jit(lambda xe, prm: model_forward(xe, cfg['seq_len'], prm, cfg))
    out = jax.block_until_ready(fwd(x_enc, params))

    assert out.shape == (2, cfg['pred_len'], cfg['c_out'])
    assert bool(jnp.all(jnp.isfinite(out)))
    print("KERNEL_OK")
</pallas_src>

<mosaic_0001>
module attributes {stable_mosaic.version = 11 : i64} {
  func.func @_token_emb_kernel(%arg0: i32, %arg1: memref<1x10x4xf32, #tpu.memory_space<vmem>>, %arg2: memref<3x4x32xf32, #tpu.memory_space<vmem>>, %arg3: memref<1x8x32xf32, #tpu.memory_space<vmem>>) attributes {dimension_semantics = [#tpu.dimension_semantics<parallel>], iteration_bounds = array<i64: 2>, scalar_prefetch = 0 : i64, scratch_operands = 0 : i64, tpu.core_type = #tpu.core_type<tc>, window_params = [{transform_indices = @transform_0, window_bounds = array<i64: 1, 10, 4>}, {pipeline_mode = #tpu.pipeline_mode<synchronous>, transform_indices = @transform_1, window_bounds = array<i64: 3, 4, 32>}, {transform_indices = @transform_2, window_bounds = array<i64: 1, 8, 32>}]} {
    %cst = arith.constant 0.000000e+00 : f32
    %0 = vector.broadcast %cst : f32 to vector<8x32xf32>
    %c0 = arith.constant 0 : index
    %c0_0 = arith.constant 0 : index
    %c0_1 = arith.constant 0 : index
    %1 = vector.load %arg1[%c0, %c0_0, %c0_1] : memref<1x10x4xf32, #tpu.memory_space<vmem>>, vector<1x8x4xf32>
    %2 = vector.shape_cast %1 : vector<1x8x4xf32> to vector<8x4xf32>
    %c0_2 = arith.constant 0 : index
    %c0_3 = arith.constant 0 : index
    %c0_4 = arith.constant 0 : index
    %3 = vector.load %arg2[%c0_2, %c0_3, %c0_4] : memref<3x4x32xf32, #tpu.memory_space<vmem>>, vector<1x4x32xf32>
    %4 = vector.shape_cast %3 : vector<1x4x32xf32> to vector<4x32xf32>
    %cst_5 = arith.constant dense<0.000000e+00> : vector<8x32xf32>
    %5 = tpu.matmul %2, %4, %cst_5 {dimension_numbers = #tpu.dot_dimension_numbers<[1], [0], [0], [1], [0, 0, 1, 1], [], []>} : vector<8x4xf32>, vector<4x32xf32>, vector<8x32xf32> -> vector<8x32xf32>
    %6 = arith.addf %0, %5 : vector<8x32xf32>
    %c0_6 = arith.constant 0 : index
    %c1 = arith.constant 1 : index
    %c0_7 = arith.constant 0 : index
    %7 = vector.load %arg1[%c0_6, %c1, %c0_7] : memref<1x10x4xf32, #tpu.memory_space<vmem>>, vector<1x8x4xf32>
    %8 = vector.shape_cast %7 : vector<1x8x4xf32> to vector<8x4xf32>
    %c1_8 = arith.constant 1 : index
    %c0_9 = arith.constant 0 : index
    %c0_10 = arith.constant 0 : index
    %9 = vector.load %arg2[%c1_8, %c0_9, %c0_10] : memref<3x4x32xf32, #tpu.memory_space<vmem>>, vector<1x4x32xf32>
    %10 = vector.shape_cast %9 : vector<1x4x32xf32> to vector<4x32xf32>
    %cst_11 = arith.constant dense<0.000000e+00> : vector<8x32xf32>
    %11 = tpu.matmul %8, %10, %cst_11 {dimension_numbers = #tpu.dot_dimension_numbers<[1], [0], [0], [1], [0, 0, 1, 1], [], []>} : vector<8x4xf32>, vector<4x32xf32>, vector<8x32xf32> -> vector<8x32xf32>
    %12 = arith.addf %6, %11 : vector<8x32xf32>
    %c0_12 = arith.constant 0 : index
    %c2 = arith.constant 2 : index
    %c0_13 = arith.constant 0 : index
    %13 = vector.load %arg1[%c0_12, %c2, %c0_13] : memref<1x10x4xf32, #tpu.memory_space<vmem>>, vector<1x8x4xf32>
    %14 = vector.shape_cast %13 : vector<1x8x4xf32> to vector<8x4xf32>
    %c2_14 = arith.constant 2 : index
    %c0_15 = arith.constant 0 : index
    %c0_16 = arith.constant 0 : index
    %15 = vector.load %arg2[%c2_14, %c0_15, %c0_16] : memref<3x4x32xf32, #tpu.memory_space<vmem>>, vector<1x4x32xf32>
    %16 = vector.shape_cast %15 : vector<1x4x32xf32> to vector<4x32xf32>
    %cst_17 = arith.constant dense<0.000000e+00> : vector<8x32xf32>
    %17 = tpu.matmul %14, %16, %cst_17 {dimension_numbers = #tpu.dot_dimension_numbers<[1], [0], [0], [1], [0, 0, 1, 1], [], []>} : vector<8x4xf32>, vector<4x32xf32>, vector<8x32xf32> -> vector<8x32xf32>
    %18 = arith.addf %12, %17 : vector<8x32xf32>
    %c0_18 = arith.constant 0 : index
    %c0_19 = arith.constant 0 : index
    %c0_20 = arith.constant 0 : index
    %19 = vector.load %arg3[%c0_18, %c0_19, %c0_20] : memref<1x8x32xf32, #tpu.memory_space<vmem>>, vector<1x8x32xf32>
    %20 = vector.shape_cast %19 : vector<1x8x32xf32> to vector<8x32xf32>
    %21 = vector.shape_cast %18 : vector<8x32xf32> to vector<1x8x32xf32>
    tpu.vector_store %arg3[%c0_18, %c0_19, %c0_20], %21 {strides = array<i32>} : memref<1x8x32xf32, #tpu.memory_space<vmem>>, vector<1x8x32xf32>,
    return
  }
  func.func @transform_0(%arg0: i32) -> (i32, i32, i32) {
    %c0_i32 = arith.constant 0 : i32
    %c0_i32_0 = arith.constant 0 : i32
    %c0_i32_1 = arith.constant 0 : i32
    return %arg0, %c0_i32, %c0_i32_0 : i32, i32, i32
  }
  func.func @transform_1(%arg0: i32) -> (i32, i32, i32) {
    %c0_i32 = arith.constant 0 : i32
    %c0_i32_0 = arith.constant 0 : i32
    %c0_i32_1 = arith.constant 0 : i32
    %c0_i32_2 = arith.constant 0 : i32
    return %c0_i32, %c0_i32_0, %c0_i32_1 : i32, i32, i32
  }
  func.func @transform_2(%arg0: i32) -> (i32, i32, i32) {
    %c0_i32 = arith.constant 0 : i32
    %c0_i32_0 = arith.constant 0 : i32
    %c0_i32_1 = arith.constant 0 : i32
    return %arg0, %c0_i32, %c0_i32_0 : i32, i32, i32
  }
}

module attributes {stable_mosaic.version = 11 : i64} {
  func.func @_mm_kernel(%arg0: i32, %arg1: i32, %arg2: i32, %arg3: memref<16x32xf32, #tpu.memory_space<vmem>>, %arg4: memref<32x128xbf16, #tpu.memory_space<vmem>>, %arg5: memref<16x128xf32, #tpu.memory_space<vmem>>, %arg6: memref<16x128xf32, #tpu.memory_space<vmem>>) attributes {dimension_semantics = [#tpu.dimension_semantics<parallel>, #tpu.dimension_semantics<parallel>, #tpu.dimension_semantics<arbitrary>], iteration_bounds = array<i64: 1, 1, 1>, scalar_prefetch = 0 : i64, scratch_operands = 1 : i64, tpu.core_type = #tpu.core_type<tc>, window_params = [{transform_indices = @transform_0, window_bounds = array<i64: 16, 32>}, {transform_indices = @transform_1, window_bounds = array<i64: 32, 128>}, {transform_indices = @transform_2, window_bounds = array<i64: 16, 128>}]} {
    %c0_i32 = arith.constant 0 : i32
    %0 = arith.cmpi eq, %arg2, %c0_i32 : i32
    %1 = arith.extui %0 : i1 to i32
    %c0_i32_0 = arith.constant 0 : i32
    %2 = arith.cmpi ne, %1, %c0_i32_0 : i32
    scf.if %2 {
      %cst_10 = arith.constant 0.000000e+00 : f32
      %13 = vector.broadcast %cst_10 : f32 to vector<16x128xf32>
      %c0_11 = arith.constant 0 : index
      %c0_12 = arith.constant 0 : index
      %14 = vector.load %arg6[%c0_11, %c0_12] : memref<16x128xf32, #tpu.memory_space<vmem>>, vector<16x128xf32>
      tpu.vector_store %arg6[%c0_11, %c0_12], %13 {strides = array<i32>} : memref<16x128xf32, #tpu.memory_space<vmem>>, vector<16x128xf32>,
    } else {
    }
    %c0 = arith.constant 0 : index
    %c0_1 = arith.constant 0 : index
    %3 = vector.load %arg6[%c0, %c0_1] : memref<16x128xf32, #tpu.memory_space<vmem>>, vector<16x128xf32>
    %c0_2 = arith.constant 0 : index
    %c0_3 = arith.constant 0 : index
    %4 = vector.load %arg3[%c0_2, %c0_3] : memref<16x32xf32, #tpu.memory_space<vmem>>, vector<16x32xf32>
    %5 = arith.truncf %4 : vector<16x32xf32> to vector<16x32xbf16>
    %c0_4 = arith.constant 0 : index
    %c0_5 = arith.constant 0 : index
    %6 = vector.load %arg4[%c0_4, %c0_5] : memref<32x128xbf16, #tpu.memory_space<vmem>>, vector<32x128xbf16>
    %cst = arith.constant dense<0.000000e+00> : vector<16x128xf32>
    %7 = tpu.matmul %5, %6, %cst {dimension_numbers = #tpu.dot_dimension_numbers<[1], [0], [0], [1], [0, 0, 1, 1], [], []>} : vector<16x32xbf16>, vector<32x128xbf16>, vector<16x128xf32> -> vector<16x128xf32>
    %8 = arith.addf %3, %7 : vector<16x128xf32>
    %c0_6 = arith.constant 0 : index
    %c0_7 = arith.constant 0 : index
    %9 = vector.load %arg6[%c0_6, %c0_7] : memref<16x128xf32, #tpu.memory_space<vmem>>, vector<16x128xf32>
    tpu.vector_store %arg6[%c0_6, %c0_7], %8 {strides = array<i32>} : memref<16x128xf32, #tpu.memory_space<vmem>>, vector<16x128xf32>,
    %c0_i32_8 = arith.constant 0 : i32
    %10 = arith.cmpi eq, %arg2, %c0_i32_8 : i32
    %11 = arith.extui %10 : i1 to i32
    %c0_i32_9 = arith.constant 0 : i32
    %12 = arith.cmpi ne, %11, %c0_i32_9 : i32
    scf.if %12 {
      %c0_10 = arith.constant 0 : index
      %c0_11 = arith.constant 0 : index
      %13 = vector.load %arg6[%c0_10, %c0_11] : memref<16x128xf32, #tpu.memory_space<vmem>>, vector<16x128xf32>
      %c0_12 = arith.constant 0 : index
      %c0_13 = arith.constant 0 : index
      %14 = vector.load %arg5[%c0_12, %c0_13] : memref<16x128xf32, #tpu.memory_space<vmem>>, vector<16x128xf32>
      tpu.vector_store %arg5[%c0_12, %c0_13], %13 {strides = array<i32>} : memref<16x128xf32, #tpu.memory_space<vmem>>, vector<16x128xf32>,
    } else {
    }
    return
  }
  func.func @transform_0(%arg0: i32, %arg1: i32, %arg2: i32) -> (i32, i32) {
    %c0_i32 = arith.constant 0 : i32
    return %arg0, %arg2 : i32, i32
  }
  func.func @transform_1(%arg0: i32, %arg1: i32, %arg2: i32) -> (i32, i32) {
    %c0_i32 = arith.constant 0 : i32
    return %arg2, %arg1 : i32, i32
  }
  func.func @transform_2(%arg0: i32, %arg1: i32, %arg2: i32) -> (i32, i32) {
    %c0_i32 = arith.constant 0 : i32
    return %arg0, %arg1 : i32, i32
  }
}

module attributes {stable_mosaic.version = 11 : i64} {
  func.func @_xdt_proj_kernel(%arg0: i32, %arg1: memref<16x64xf32, #tpu.memory_space<vmem>>, %arg2: memref<64x2xf32, #tpu.memory_space<vmem>>, %arg3: memref<64x16xbf16, #tpu.memory_space<vmem>>, %arg4: memref<64x16xbf16, #tpu.memory_space<vmem>>, %arg5: memref<2x64xf32, #tpu.memory_space<vmem>>, %arg6: memref<1x64xf32, #tpu.memory_space<vmem>>, %arg7: memref<16x64xf32, #tpu.memory_space<vmem>>, %arg8: memref<16x16xf32, #tpu.memory_space<vmem>>, %arg9: memref<16x16xf32, #tpu.memory_space<vmem>>) attributes {dimension_semantics = [#tpu.dimension_semantics<parallel>], iteration_bounds = array<i64: 1>, scalar_prefetch = 0 : i64, scratch_operands = 0 : i64, tpu.core_type = #tpu.core_type<tc>, window_params = [{transform_indices = @transform_0, window_bounds = array<i64: 16, 64>}, {pipeline_mode = #tpu.pipeline_mode<synchronous>, transform_indices = @transform_1, window_bounds = array<i64: 64, 2>}, {pipeline_mode = #tpu.pipeline_mode<synchronous>, transform_indices = @transform_2, window_bounds = array<i64: 64, 16>}, {pipeline_mode = #tpu.pipeline_mode<synchronous>, transform_indices = @transform_3, window_bounds = array<i64: 64, 16>}, {pipeline_mode = #tpu.pipeline_mode<synchronous>, transform_indices = @transform_4, window_bounds = array<i64: 2, 64>}, {pipeline_mode = #tpu.pipeline_mode<synchronous>, transform_indices = @transform_5, window_bounds = array<i64: 1, 64>}, {transform_indices = @transform_6, window_bounds = array<i64: 16, 64>}, {transform_indices = @transform_7, window_bounds = array<i64: 16, 16>}, {transform_indices = @transform_8, window_bounds = array<i64: 16, 16>}]} {
    %c0 = arith.constant 0 : index
    %c0_0 = arith.constant 0 : index
    %0 = vector.load %arg1[%c0, %c0_0] : memref<16x64xf32, #tpu.memory_space<vmem>>, vector<16x64xf32>
    %1 = arith.truncf %0 : vector<16x64xf32> to vector<16x64xbf16>
    %c0_1 = arith.constant 0 : index
    %c0_2 = arith.constant 0 : index
    %2 = vector.load %arg3[%c0_1, %c0_2] : memref<64x16xbf16, #tpu.memory_space<vmem>>, vector<64x16xbf16>
    %cst = arith.constant dense<0.000000e+00> : vector<16x16xf32>
    %3 = tpu.matmul %1, %2, %cst {dimension_numbers = #tpu.dot_dimension_numbers<[1], [0], [0], [1], [0, 0, 1, 1], [], []>} : vector<16x64xbf16>, vector<64x16xbf16>, vector<16x16xf32> -> vector<16x16xf32>
    %c0_3 = arith.constant 0 : index
    %c0_4 = arith.constant 0 : index
    %4 = vector.load %arg8[%c0_3, %c0_4] : memref<16x16xf32, #tpu.memory_space<vmem>>, vector<16x16xf32>
    tpu.vector_store %arg8[%c0_3, %c0_4], %3 {strides = array<i32>} : memref<16x16xf32, #tpu.memory_space<vmem>>, vector<16x16xf32>,
    %c0_5 = arith.constant 0 : index
    %c0_6 = arith.constant 0 : index
    %5 = vector.load %arg4[%c0_5, %c0_6] : memref<64x16xbf16, #tpu.memory_space<vmem>>, vector<64x16xbf16>
    %cst_7 = arith.constant dense<0.000000e+00> : vector<16x16xf32>
    %6 = tpu.matmul %1, %5, %cst_7 {dimension_numbers = #tpu.dot_dimension_numbers<[1], [0], [0], [1], [0, 0, 1, 1], [], []>} : vector<16x64xbf16>, vector<64x16xbf16>, vector<16x16xf32> -> vector<16x16xf32>
    %c0_8 = arith.constant 0 : index
    %c0_9 = arith.constant 0 : index
    %7 = vector.load %arg9[%c0_8, %c0_9] : memref<16x16xf32, #tpu.memory_space<vmem>>, vector<16x16xf32>
    tpu.vector_store %arg9[%c0_8, %c0_9], %6 {strides = array<i32>} : memref<16x16xf32, #tpu.memory_space<vmem>>, vector<16x16xf32>,
    %c0_10 = arith.constant 0 : index
    %c0_11 = arith.constant 0 : index
    %8 = vector.load %arg1[%c0_10, %c0_11] : memref<16x64xf32, #tpu.memory_space<vmem>>, vector<16x64xf32>
    %c0_12 = arith.constant 0 : index
    %c0_13 = arith.constant 0 : index
    %9 = vector.load %arg2[%c0_12, %c0_13] : memref<64x2xf32, #tpu.memory_space<vmem>>, vector<64x2xf32>
    %cst_14 = arith.constant dense<0.000000e+00> : vector<16x2xf32>
    %10 = tpu.matmul %8, %9, %cst_14 {dimension_numbers = #tpu.dot_dimension_numbers<[1], [0], [0], [1], [0, 0, 1, 1], [], []>} : vector<16x64xf32>, vector<64x2xf32>, vector<16x2xf32> -> vector<16x2xf32>
    %c0_15 = arith.constant 0 : index
    %c0_16 = arith.constant 0 : index
    %11 = vector.load %arg5[%c0_15, %c0_16] : memref<2x64xf32, #tpu.memory_space<vmem>>, vector<2x64xf32>
    %cst_17 = arith.constant dense<0.000000e+00> : vector<16x64xf32>
    %12 = tpu.matmul %10, %11, %cst_17 {dimension_numbers = #tpu.dot_dimension_numbers<[1], [0], [0], [1], [0, 0, 1, 1], [], []>} : vector<16x2xf32>, vector<2x64xf32>, vector<16x64xf32> -> vector<16x64xf32>
    %c0_18 = arith.constant 0 : index
    %c0_19 = arith.constant 0 : index
    %13 = vector.load %arg6[%c0_18, %c0_19] : memref<1x64xf32, #tpu.memory_space<vmem>>, vector<1x64xf32>
    %14 = vector.broadcast %13 : vector<1x64xf32> to vector<16x64xf32>
    %15 = arith.addf %12, %14 : vector<16x64xf32>
    %cst_20 = arith.constant 2.000000e+01 : f32
    %16 = vector.broadcast %cst_20 : f32 to vector<16x64xf32>
    %17 = arith.cmpf ogt, %15, %16 : vector<16x64xf32>
    %cst_21 = arith.constant 2.000000e+01 : f32
    %18 = vector.broadcast %cst_21 : f32 to vector<16x64xf32>
    %19 = arith.minimumf %15, %18 : vector<16x64xf32>
    %20 = math.exp %19 : vector<16x64xf32>
    %cst_22 = arith.constant 1.000000e+00 : f32
    %21 = vector.broadcast %cst_22 : f32 to vector<16x64xf32>
    %22 = arith.addf %21, %20 : vector<16x64xf32>
    %23 = math.log %22 : vector<16x64xf32>
    %24 = arith.select %17, %15, %23 : vector<16x64xi1>, vector<16x64xf32>
    %c0_23 = arith.constant 0 : index
    %c0_24 = arith.constant 0 : index
    %25 = vector.load %arg7[%c0_23, %c0_24] : memref<16x64xf32, #tpu.memory_space<vmem>>, vector<16x64xf32>
    tpu.vector_store %arg7[%c0_23, %c0_24], %24 {strides = array<i32>} : memref<16x64xf32, #tpu.memory_space<vmem>>, vector<16x64xf32>,
    return
  }
  func.func @transform_0(%arg0: i32) -> (i32, i32) {
    %c0_i32 = arith.constant 0 : i32
    %c0_i32_0 = arith.constant 0 : i32
    return %arg0, %c0_i32 : i32, i32
  }
  func.func @transform_1(%arg0: i32) -> (i32, i32) {
    %c0_i32 = arith.constant 0 : i32
    %c0_i32_0 = arith.constant 0 : i32
    %c0_i32_1 = arith.constant 0 : i32
    return %c0_i32, %c0_i32_0 : i32, i32
  }
  func.func @transform_2(%arg0: i32) -> (i32, i32) {
    %c0_i32 = arith.constant 0 : i32
    %c0_i32_0 = arith.constant 0 : i32
    %c0_i32_1 = arith.constant 0 : i32
    return %c0_i32, %c0_i32_0 : i32, i32
  }
  func.func @transform_3(%arg0: i32) -> (i32, i32) {
    %c0_i32 = arith.constant 0 : i32
    %c0_i32_0 = arith.constant 0 : i32
    %c0_i32_1 = arith.constant 0 : i32
    return %c0_i32, %c0_i32_0 : i32, i32
  }
  func.func @transform_4(%arg0: i32) -> (i32, i32) {
    %c0_i32 = arith.constant 0 : i32
    %c0_i32_0 = arith.constant 0 : i32
    %c0_i32_1 = arith.constant 0 : i32
    return %c0_i32, %c0_i32_0 : i32, i32
  }
  func.func @transform_5(%arg0: i32) -> (i32, i32) {
    %c0_i32 = arith.constant 0 : i32
    %c0_i32_0 = arith.constant 0 : i32
    %c0_i32_1 = arith.constant 0 : i32
    return %c0_i32, %c0_i32_0 : i32, i32
  }
  func.func @transform_6(%arg0: i32) -> (i32, i32) {
    %c0_i32 = arith.constant 0 : i32
    %c0_i32_0 = arith.constant 0 : i32
    return %arg0, %c0_i32 : i32, i32
  }
  func.func @transform_7(%arg0: i32) -> (i32, i32) {
    %c0_i32 = arith.constant 0 : i32
    %c0_i32_0 = arith.constant 0 : i32
    return %arg0, %c0_i32 : i32, i32
  }
  func.func @transform_8(%arg0: i32) -> (i32, i32) {
    %c0_i32 = arith.constant 0 : i32
    %c0_i32_0 = arith.constant 0 : i32
    return %arg0, %c0_i32 : i32, i32
  }
}

module attributes {stable_mosaic.version = 11 : i64} {
  func.func @_dwconv_silu_kernel(%arg0: i32, %arg1: memref<1x11x64xf32, #tpu.memory_space<vmem>>, %arg2: memref<4x64xf32, #tpu.memory_space<vmem>>, %arg3: memref<1x64xf32, #tpu.memory_space<vmem>>, %arg4: memref<1x8x64xf32, #tpu.memory_space<vmem>>) attributes {dimension_semantics = [#tpu.dimension_semantics<parallel>], iteration_bounds = array<i64: 2>, scalar_prefetch = 0 : i64, scratch_operands = 0 : i64, tpu.core_type = #tpu.core_type<tc>, window_params = [{transform_indices = @transform_0, window_bounds = array<i64: 1, 11, 64>}, {pipeline_mode = #tpu.pipeline_mode<synchronous>, transform_indices = @transform_1, window_bounds = array<i64: 4, 64>}, {pipeline_mode = #tpu.pipeline_mode<synchronous>, transform_indices = @transform_2, window_bounds = array<i64: 1, 64>}, {transform_indices = @transform_3, window_bounds = array<i64: 1, 8, 64>}]} {
    %cst = arith.constant 0.000000e+00 : f32
    %0 = vector.broadcast %cst : f32 to vector<8x64xf32>
    %c0 = arith.constant 0 : index
    %c0_0 = arith.constant 0 : index
    %c0_1 = arith.constant 0 : index
    %1 = vector.load %arg1[%c0, %c0_0, %c0_1] : memref<1x11x64xf32, #tpu.memory_space<vmem>>, vector<1x8x64xf32>
    %2 = vector.shape_cast %1 : vector<1x8x64xf32> to vector<8x64xf32>
    %c0_2 = arith.constant 0 : index
    %c0_3 = arith.constant 0 : index
    %3 = vector.load %arg2[%c0_2, %c0_3] : memref<4x64xf32, #tpu.memory_space<vmem>>, vector<1x64xf32>
    %4 = vector.broadcast %3 : vector<1x64xf32> to vector<8x64xf32>
    %5 = arith.mulf %2, %4 : vector<8x64xf32>
    %6 = arith.addf %0, %5 : vector<8x64xf32>
    %c0_4 = arith.constant 0 : index
    %c1 = arith.constant 1 : index
    %c0_5 = arith.constant 0 : index
    %7 = vector.load %arg1[%c0_4, %c1, %c0_5] : memref<1x11x64xf32, #tpu.memory_space<vmem>>, vector<1x8x64xf32>
    %8 = vector.shape_cast %7 : vector<1x8x64xf32> to vector<8x64xf32>
    %c1_6 = arith.constant 1 : index
    %c0_7 = arith.constant 0 : index
    %9 = vector.load %arg2[%c1_6, %c0_7] : memref<4x64xf32, #tpu.memory_space<vmem>>, vector<1x64xf32>
    %10 = vector.broadcast %9 : vector<1x64xf32> to vector<8x64xf32>
    %11 = arith.mulf %8, %10 : vector<8x64xf32>
    %12 = arith.addf %6, %11 : vector<8x64xf32>
    %c0_8 = arith.constant 0 : index
    %c2 = arith.constant 2 : index
    %c0_9 = arith.constant 0 : index
    %13 = vector.load %arg1[%c0_8, %c2, %c0_9] : memref<1x11x64xf32, #tpu.memory_space<vmem>>, vector<1x8x64xf32>
    %14 = vector.shape_cast %13 : vector<1x8x64xf32> to vector<8x64xf32>
    %c2_10 = arith.constant 2 : index
    %c0_11 = arith.constant 0 : index
    %15 = vector.load %arg2[%c2_10, %c0_11] : memref<4x64xf32, #tpu.memory_space<vmem>>, vector<1x64xf32>
    %16 = vector.broadcast %15 : vector<1x64xf32> to vector<8x64xf32>
    %17 = arith.mulf %14, %16 : vector<8x64xf32>
    %18 = arith.addf %12, %17 : vector<8x64xf32>
    %c0_12 = arith.constant 0 : index
    %c3 = arith.constant 3 : index
    %c0_13 = arith.constant 0 : index
    %19 = vector.load %arg1[%c0_12, %c3, %c0_13] : memref<1x11x64xf32, #tpu.memory_space<vmem>>, vector<1x8x64xf32>
    %20 = vector.shape_cast %19 : vector<1x8x64xf32> to vector<8x64xf32>
    %c3_14 = arith.constant 3 : index
    %c0_15 = arith.constant 0 : index
    %21 = vector.load %arg2[%c3_14, %c0_15] : memref<4x64xf32, #tpu.memory_space<vmem>>, vector<1x64xf32>
    %22 = vector.broadcast %21 : vector<1x64xf32> to vector<8x64xf32>
    %23 = arith.mulf %20, %22 : vector<8x64xf32>
    %24 = arith.addf %18, %23 : vector<8x64xf32>
    %c0_16 = arith.constant 0 : index
    %c0_17 = arith.constant 0 : index
    %25 = vector.load %arg3[%c0_16, %c0_17] : memref<1x64xf32, #tpu.memory_space<vmem>>, vector<1x64xf32>
    %26 = vector.broadcast %25 : vector<1x64xf32> to vector<8x64xf32>
    %27 = arith.addf %24, %26 : vector<8x64xf32>
    %28 = arith.negf %27 : vector<8x64xf32>
    %29 = math.exp %28 : vector<8x64xf32>
    %cst_18 = arith.constant 1.000000e+00 : f32
    %30 = vector.broadcast %cst_18 : f32 to vector<8x64xf32>
    %31 = arith.addf %30, %29 : vector<8x64xf32>
    %32 = arith.divf %30, %31 : vector<8x64xf32>
    %33 = arith.mulf %27, %32 : vector<8x64xf32>
    %c0_19 = arith.constant 0 : index
    %c0_20 = arith.constant 0 : index
    %c0_21 = arith.constant 0 : index
    %34 = vector.load %arg4[%c0_19, %c0_20, %c0_21] : memref<1x8x64xf32, #tpu.memory_space<vmem>>, vector<1x8x64xf32>
    %35 = vector.shape_cast %34 : vector<1x8x64xf32> to vector<8x64xf32>
    %36 = vector.shape_cast %33 : vector<8x64xf32> to vector<1x8x64xf32>
    tpu.vector_store %arg4[%c0_19, %c0_20, %c0_21], %36 {strides = array<i32>} : memref<1x8x64xf32, #tpu.memory_space<vmem>>, vector<1x8x64xf32>,
    return
  }
  func.func @transform_0(%arg0: i32) -> (i32, i32, i32) {
    %c0_i32 = arith.constant 0 : i32
    %c0_i32_0 = arith.constant 0 : i32
    %c0_i32_1 = arith.constant 0 : i32
    return %arg0, %c0_i32, %c0_i32_0 : i32, i32, i32
  }
  func.func @transform_1(%arg0: i32) -> (i32, i32) {
    %c0_i32 = arith.constant 0 : i32
    %c0_i32_0 = arith.constant 0 : i32
    %c0_i32_1 = arith.constant 0 : i32
    return %c0_i32, %c0_i32_0 : i32, i32
  }
  func.func @transform_2(%arg0: i32) -> (i32, i32) {
    %c0_i32 = arith.constant 0 : i32
    %c0_i32_0 = arith.constant 0 : i32
    %c0_i32_1 = arith.constant 0 : i32
    return %c0_i32, %c0_i32_0 : i32, i32
  }
  func.func @transform_3(%arg0: i32) -> (i32, i32, i32) {
    %c0_i32 = arith.constant 0 : i32
    %c0_i32_0 = arith.constant 0 : i32
    %c0_i32_1 = arith.constant 0 : i32
    return %arg0, %c0_i32, %c0_i32_0 : i32, i32, i32
  }
}

module attributes {stable_mosaic.version = 11 : i64} {
  func.func @_out_ln_kernel(%arg0: i32, %arg1: memref<16x64xf32, #tpu.memory_space<vmem>>, %arg2: memref<64x32xbf16, #tpu.memory_space<vmem>>, %arg3: memref<1x32xf32, #tpu.memory_space<vmem>>, %arg4: memref<1x32xf32, #tpu.memory_space<vmem>>, %arg5: memref<16x32xf32, #tpu.memory_space<vmem>>) attributes {dimension_semantics = [#tpu.dimension_semantics<parallel>], iteration_bounds = array<i64: 1>, scalar_prefetch = 0 : i64, scratch_operands = 0 : i64, tpu.core_type = #tpu.core_type<tc>, window_params = [{transform_indices = @transform_0, window_bounds = array<i64: 16, 64>}, {pipeline_mode = #tpu.pipeline_mode<synchronous>, transform_indices = @transform_1, window_bounds = array<i64: 64, 32>}, {pipeline_mode = #tpu.pipeline_mode<synchronous>, transform_indices = @transform_2, window_bounds = array<i64: 1, 32>}, {pipeline_mode = #tpu.pipeline_mode<synchronous>, transform_indices = @transform_3, window_bounds = array<i64: 1, 32>}, {transform_indices = @transform_4, window_bounds = array<i64: 16, 32>}]} {
    %c0 = arith.constant 0 : index
    %c0_0 = arith.constant 0 : index
    %0 = vector.load %arg1[%c0, %c0_0] : memref<16x64xf32, #tpu.memory_space<vmem>>, vector<16x64xf32>
    %1 = arith.truncf %0 : vector<16x64xf32> to vector<16x64xbf16>
    %c0_1 = arith.constant 0 : index
    %c0_2 = arith.constant 0 : index
    %2 = vector.load %arg2[%c0_1, %c0_2] : memref<64x32xbf16, #tpu.memory_space<vmem>>, vector<64x32xbf16>
    %cst = arith.constant dense<0.000000e+00> : vector<16x32xf32>
    %3 = tpu.matmul %1, %2, %cst {dimension_numbers = #tpu.dot_dimension_numbers<[1], [0], [0], [1], [0, 0, 1, 1], [], []>} : vector<16x64xbf16>, vector<64x32xbf16>, vector<16x32xf32> -> vector<16x32xf32>
    %cst_3 = arith.constant dense<0.000000e+00> : vector<16xf32>
    %4 = vector.multi_reduction <add>, %3, %cst_3 [1] : vector<16x32xf32> to vector<16xf32>
    %5 = vector.shape_cast %4 : vector<16xf32> to vector<16x1xf32>
    %cst_4 = arith.constant 3.200000e+01 : f32
    %6 = vector.broadcast %cst_4 : f32 to vector<16x1xf32>
    %7 = arith.divf %5, %6 : vector<16x1xf32>
    %8 = vector.broadcast %7 : vector<16x1xf32> to vector<16x32xf32>
    %9 = arith.subf %3, %8 : vector<16x32xf32>
    %10 = arith.mulf %9, %9 : vector<16x32xf32>
    %cst_5 = arith.constant dense<0.000000e+00> : vector<16xf32>
    %11 = vector.multi_reduction <add>, %10, %cst_5 [1] : vector<16x32xf32> to vector<16xf32>
    %12 = vector.shape_cast %11 : vector<16xf32> to vector<16x1xf32>
    %cst_6 = arith.constant 3.200000e+01 : f32
    %13 = vector.broadcast %cst_6 : f32 to vector<16x1xf32>
    %14 = arith.divf %12, %13 : vector<16x1xf32>
    %cst_7 = arith.constant 9.99999974E-6 : f32
    %15 = vector.broadcast %cst_7 : f32 to vector<16x1xf32>
    %16 = arith.addf %14, %15 : vector<16x1xf32>
    %17 = math.rsqrt %16 : vector<16x1xf32>
    %18 = vector.broadcast %17 : vector<16x1xf32> to vector<16x32xf32>
    %19 = arith.mulf %9, %18 : vector<16x32xf32>
    %c0_8 = arith.constant 0 : index
    %c0_9 = arith.constant 0 : index
    %20 = vector.load %arg3[%c0_8, %c0_9] : memref<1x32xf32, #tpu.memory_space<vmem>>, vector<1x32xf32>
    %21 = vector.broadcast %20 : vector<1x32xf32> to vector<16x32xf32>
    %22 = arith.mulf %19, %21 : vector<16x32xf32>
    %c0_10 = arith.constant 0 : index
    %c0_11 = arith.constant 0 : index
    %23 = vector.load %arg4[%c0_10, %c0_11] : memref<1x32xf32, #tpu.memory_space<vmem>>, vector<1x32xf32>
    %24 = vector.broadcast %23 : vector<1x32xf32> to vector<16x32xf32>
    %25 = arith.addf %22, %24 : vector<16x32xf32>
    %c0_12 = arith.constant 0 : index
    %c0_13 = arith.constant 0 : index
    %26 = vector.load %arg5[%c0_12, %c0_13] : memref<16x32xf32, #tpu.memory_space<vmem>>, vector<16x32xf32>
    tpu.vector_store %arg5[%c0_12, %c0_13], %25 {strides = array<i32>} : memref<16x32xf32, #tpu.memory_space<vmem>>, vector<16x32xf32>,
    return
  }
  func.func @transform_0(%arg0: i32) -> (i32, i32) {
    %c0_i32 = arith.constant 0 : i32
    %c0_i32_0 = arith.constant 0 : i32
    return %arg0, %c0_i32 : i32, i32
  }
  func.func @transform_1(%arg0: i32) -> (i32, i32) {
    %c0_i32 = arith.constant 0 : i32
    %c0_i32_0 = arith.constant 0 : i32
    %c0_i32_1 = arith.constant 0 : i32
    return %c0_i32, %c0_i32_0 : i32, i32
  }
  func.func @transform_2(%arg0: i32) -> (i32, i32) {
    %c0_i32 = arith.constant 0 : i32
    %c0_i32_0 = arith.constant 0 : i32
    %c0_i32_1 = arith.constant 0 : i32
    return %c0_i32, %c0_i32_0 : i32, i32
  }
  func.func @transform_3(%arg0: i32) -> (i32, i32) {
    %c0_i32 = arith.constant 0 : i32
    %c0_i32_0 = arith.constant 0 : i32
    %c0_i32_1 = arith.constant 0 : i32
    return %c0_i32, %c0_i32_0 : i32, i32
  }
  func.func @transform_4(%arg0: i32) -> (i32, i32) {
    %c0_i32 = arith.constant 0 : i32
    %c0_i32_0 = arith.constant 0 : i32
    return %arg0, %c0_i32 : i32, i32
  }
}

module attributes {stable_mosaic.version = 11 : i64} {
  func.func @_mm_kernel(%arg0: i32, %arg1: i32, %arg2: i32, %arg3: memref<16x32xf32, #tpu.memory_space<vmem>>, %arg4: memref<32x4xbf16, #tpu.memory_space<vmem>>, %arg5: memref<16x4xf32, #tpu.memory_space<vmem>>, %arg6: memref<16x4xf32, #tpu.memory_space<vmem>>) attributes {dimension_semantics = [#tpu.dimension_semantics<parallel>, #tpu.dimension_semantics<parallel>, #tpu.dimension_semantics<arbitrary>], iteration_bounds = array<i64: 1, 1, 1>, scalar_prefetch = 0 : i64, scratch_operands = 1 : i64, tpu.core_type = #tpu.core_type<tc>, window_params = [{transform_indices = @transform_0, window_bounds = array<i64: 16, 32>}, {transform_indices = @transform_1, window_bounds = array<i64: 32, 4>}, {transform_indices = @transform_2, window_bounds = array<i64: 16, 4>}]} {
    %c0_i32 = arith.constant 0 : i32
    %0 = arith.cmpi eq, %arg2, %c0_i32 : i32
    %1 = arith.extui %0 : i1 to i32
    %c0_i32_0 = arith.constant 0 : i32
    %2 = arith.cmpi ne, %1, %c0_i32_0 : i32
    scf.if %2 {
      %cst_10 = arith.constant 0.000000e+00 : f32
      %13 = vector.broadcast %cst_10 : f32 to vector<16x4xf32>
      %c0_11 = arith.constant 0 : index
      %c0_12 = arith.constant 0 : index
      %14 = vector.load %arg6[%c0_11, %c0_12] : memref<16x4xf32, #tpu.memory_space<vmem>>, vector<16x4xf32>
      tpu.vector_store %arg6[%c0_11, %c0_12], %13 {strides = array<i32>} : memref<16x4xf32, #tpu.memory_space<vmem>>, vector<16x4xf32>,
    } else {
    }
    %c0 = arith.constant 0 : index
    %c0_1 = arith.constant 0 : index
    %3 = vector.load %arg6[%c0, %c0_1] : memref<16x4xf32, #tpu.memory_space<vmem>>, vector<16x4xf32>
    %c0_2 = arith.constant 0 : index
    %c0_3 = arith.constant 0 : index
    %4 = vector.load %arg3[%c0_2, %c0_3] : memref<16x32xf32, #tpu.memory_space<vmem>>, vector<16x32xf32>
    %5 = arith.truncf %4 : vector<16x32xf32> to vector<16x32xbf16>
    %c0_4 = arith.constant 0 : index
    %c0_5 = arith.constant 0 : index
    %6 = vector.load %arg4[%c0_4, %c0_5] : memref<32x4xbf16, #tpu.memory_space<vmem>>, vector<32x4xbf16>
    %cst = arith.constant dense<0.000000e+00> : vector<16x4xf32>
    %7 = tpu.matmul %5, %6, %cst {dimension_numbers = #tpu.dot_dimension_numbers<[1], [0], [0], [1], [0, 0, 1, 1], [], []>} : vector<16x32xbf16>, vector<32x4xbf16>, vector<16x4xf32> -> vector<16x4xf32>
    %8 = arith.addf %3, %7 : vector<16x4xf32>
    %c0_6 = arith.constant 0 : index
    %c0_7 = arith.constant 0 : index
    %9 = vector.load %arg6[%c0_6, %c0_7] : memref<16x4xf32, #tpu.memory_space<vmem>>, vector<16x4xf32>
    tpu.vector_store %arg6[%c0_6, %c0_7], %8 {strides = array<i32>} : memref<16x4xf32, #tpu.memory_space<vmem>>, vector<16x4xf32>,
    %c0_i32_8 = arith.constant 0 : i32
    %10 = arith.cmpi eq, %arg2, %c0_i32_8 : i32
    %11 = arith.extui %10 : i1 to i32
    %c0_i32_9 = arith.constant 0 : i32
    %12 = arith.cmpi ne, %11, %c0_i32_9 : i32
    scf.if %12 {
      %c0_10 = arith.constant 0 : index
      %c0_11 = arith.constant 0 : index
      %13 = vector.load %arg6[%c0_10, %c0_11] : memref<16x4xf32, #tpu.memory_space<vmem>>, vector<16x4xf32>
      %c0_12 = arith.constant 0 : index
      %c0_13 = arith.constant 0 : index
      %14 = vector.load %arg5[%c0_12, %c0_13] : memref<16x4xf32, #tpu.memory_space<vmem>>, vector<16x4xf32>
      tpu.vector_store %arg5[%c0_12, %c0_13], %13 {strides = array<i32>} : memref<16x4xf32, #tpu.memory_space<vmem>>, vector<16x4xf32>,
    } else {
    }
    return
  }
  func.func @transform_0(%arg0: i32, %arg1: i32, %arg2: i32) -> (i32, i32) {
    %c0_i32 = arith.constant 0 : i32
    return %arg0, %arg2 : i32, i32
  }
  func.func @transform_1(%arg0: i32, %arg1: i32, %arg2: i32) -> (i32, i32) {
    %c0_i32 = arith.constant 0 : i32
    return %arg2, %arg1 : i32, i32
  }
  func.func @transform_2(%arg0: i32, %arg1: i32, %arg2: i32) -> (i32, i32) {
    %c0_i32 = arith.constant 0 : i32
    return %arg0, %arg1 : i32, i32
  }
}

module attributes {stable_mosaic.version = 11 : i64} {
  func.func @_selective_scan_kernel(%arg0: i32, %arg1: memref<1x8x64xf32, #tpu.memory_space<vmem>>, %arg2: memref<1x8x64xf32, #tpu.memory_space<vmem>>, %arg3: memref<1x8x64xf32, #tpu.memory_space<vmem>>, %arg4: memref<1x8x16xf32, #tpu.memory_space<vmem>>, %arg5: memref<1x8x16xf32, #tpu.memory_space<vmem>>, %arg6: memref<16x64xf32, #tpu.memory_space<vmem>>, %arg7: memref<1x64xf32, #tpu.memory_space<vmem>>, %arg8: memref<1x8x64xf32, #tpu.memory_space<vmem>>) attributes {dimension_semantics = [#tpu.dimension_semantics<parallel>], iteration_bounds = array<i64: 2>, scalar_prefetch = 0 : i64, scratch_operands = 0 : i64, tpu.core_type = #tpu.core_type<tc>, window_params = [{transform_indices = @transform_0, window_bounds = array<i64: 1, 8, 64>}, {transform_indices = @transform_1, window_bounds = array<i64: 1, 8, 64>}, {transform_indices = @transform_2, window_bounds = array<i64: 1, 8, 64>}, {transform_indices = @transform_3, window_bounds = array<i64: 1, 8, 16>}, {transform_indices = @transform_4, window_bounds = array<i64: 1, 8, 16>}, {pipeline_mode = #tpu.pipeline_mode<synchronous>, transform_indices = @transform_5, window_bounds = array<i64: 16, 64>}, {pipeline_mode = #tpu.pipeline_mode<synchronous>, transform_indices = @transform_6, window_bounds = array<i64: 1, 64>}, {transform_indices = @transform_7, window_bounds = array<i64: 1, 8, 64>}]} {
    %c0 = arith.constant 0 : index
    %c0_0 = arith.constant 0 : index
    %0 = vector.load %arg6[%c0, %c0_0] : memref<16x64xf32, #tpu.memory_space<vmem>>, vector<16x64xf32>
    %c0_1 = arith.constant 0 : index
    %c0_2 = arith.constant 0 : index
    %1 = vector.load %arg7[%c0_1, %c0_2] : memref<1x64xf32, #tpu.memory_space<vmem>>, vector<1x64xf32>
    %2 = tpu.iota {dimensions = array<i32: 0>} : vector<16x16xi32>
    %3 = tpu.iota {dimensions = array<i32: 1>} : vector<16x16xi32>
    %4 = arith.cmpi eq, %2, %3 : vector<16x16xi32>
    %5 = arith.extui %4 : vector<16x16xi1> to vector<16x16xi32>
    %6 = arith.sitofp %5 : vector<16x16xi32> to vector<16x16xf32>
    %7 = tpu.iota {dimensions = array<i32: 0>} : vector<8x1xi32>
    %cst = arith.constant 0.000000e+00 : f32
    %8 = vector.broadcast %cst : f32 to vector<16x64xf32>
    %c0_i32 = arith.constant 0 : i32
    %c8_i32 = arith.constant 8 : i32
    %9 = arith.muli %c0_i32, %c8_i32 : i32
    %10 = tpu.assume_multiple %9, 8 : i32
    %c0_3 = arith.constant 0 : index
    %11 = arith.index_cast %10 : i32 to index
    %c0_4 = arith.constant 0 : index
    %12 = vector.load %arg1[%c0_3, %11, %c0_4] : memref<1x8x64xf32, #tpu.memory_space<vmem>>, vector<1x8x64xf32>
    %13 = vector.shape_cast %12 : vector<1x8x64xf32> to vector<8x64xf32>
    %c0_5 = arith.constant 0 : index
    %14 = arith.index_cast %10 : i32 to index
    %c0_6 = arith.constant 0 : index
    %15 = vector.load %arg2[%c0_5, %14, %c0_6] : memref<1x8x64xf32, #tpu.memory_space<vmem>>, vector<1x8x64xf32>
    %16 = vector.shape_cast %15 : vector<1x8x64xf32> to vector<8x64xf32>
    %c0_7 = arith.constant 0 : index
    %17 = arith.index_cast %10 : i32 to index
    %c0_8 = arith.constant 0 : index
    %18 = vector.load %arg3[%c0_7, %17, %c0_8] : memref<1x8x64xf32, #tpu.memory_space<vmem>>, vector<1x8x64xf32>
    %19 = vector.shape_cast %18 : vector<1x8x64xf32> to vector<8x64xf32>
    %c0_9 = arith.constant 0 : index
    %20 = arith.index_cast %10 : i32 to index
    %c0_10 = arith.constant 0 : index
    %21 = vector.load %arg4[%c0_9, %20, %c0_10] : memref<1x8x16xf32, #tpu.memory_space<vmem>>, vector<1x8x16xf32>
    %22 = vector.shape_cast %21 : vector<1x8x16xf32> to vector<8x16xf32>
    %c0_11 = arith.constant 0 : index
    %23 = arith.index_cast %10 : i32 to index
    %c0_12 = arith.constant 0 : index
    %24 = vector.load %arg5[%c0_11, %23, %c0_12] : memref<1x8x16xf32, #tpu.memory_space<vmem>>, vector<1x8x16xf32>
    %25 = vector.shape_cast %24 : vector<1x8x16xf32> to vector<8x16xf32>
    %26 = arith.mulf %16, %13 : vector<8x64xf32>
    %cst_13 = arith.constant 0.000000e+00 : f32
    %27 = vector.broadcast %cst_13 : f32 to vector<8x64xf32>
    %28 = vector.extract_strided_slice %16 {offsets = [0, 0], sizes = [1, 64], strides = [1, 1]} : vector<8x64xf32> to vector<1x64xf32>
    %29 = vector.broadcast %28 : vector<1x64xf32> to vector<16x64xf32>
    %30 = arith.mulf %29, %0 : vector<16x64xf32>
    %31 = math.exp %30 : vector<16x64xf32>
    %32 = vector.extract_strided_slice %22 {offsets = [0, 0], sizes = [1, 16], strides = [1, 1]} : vector<8x16xf32> to vector<1x16xf32>
    %33 = vector.shape_cast %32 : vector<1x16xf32> to vector<1x16xf32>
    %34 = vector.broadcast %33 : vector<1x16xf32> to vector<16x16xf32>
    %35 = arith.mulf %34, %6 : vector<16x16xf32>
    %cst_14 = arith.constant dense<0.000000e+00> : vector<16xf32>
    %36 = vector.multi_reduction <add>, %35, %cst_14 [1] : vector<16x16xf32> to vector<16xf32>
    %37 = vector.shape_cast %36 : vector<16xf32> to vector<16x1xf32>
    %38 = arith.mulf %31, %8 : vector<16x64xf32>
    %39 = vector.extract_strided_slice %26 {offsets = [0, 0], sizes = [1, 64], strides = [1, 1]} : vector<8x64xf32> to vector<1x64xf32>
    %40 = vector.broadcast %37 : vector<16x1xf32> to vector<16x64xf32>
    %41 = vector.broadcast %39 : vector<1x64xf32> to vector<16x64xf32>
    %42 = arith.mulf %40, %41 : vector<16x64xf32>
    %43 = arith.addf %38, %42 : vector<16x64xf32>
    %44 = vector.extract_strided_slice %25 {offsets = [0, 0], sizes = [1, 16], strides = [1, 1]} : vector<8x16xf32> to vector<1x16xf32>
    %cst_15 = arith.constant dense<0.000000e+00> : vector<1x64xf32>
    %45 = tpu.matmul %44, %43, %cst_15 {dimension_numbers = #tpu.dot_dimension_numbers<[1], [0], [0], [1], [0, 0, 1, 1], [], []>} : vector<1x16xf32>, vector<16x64xf32>, vector<1x64xf32> -> vector<1x64xf32>
    %c0_i32_16 = arith.constant 0 : i32
    %46 = vector.broadcast %c0_i32_16 : i32 to vector<8x1xi32>
    %47 = arith.cmpi eq, %7, %46 : vector<8x1xi32>
    %48 = arith.extui %47 : vector<8x1xi1> to vector<8x1xi32>
    %49 = arith.sitofp %48 : vector<8x1xi32> to vector<8x1xf32>
    %50 = vector.broadcast %49 : vector<8x1xf32> to vector<8x64xf32>
    %51 = vector.broadcast %45 : vector<1x64xf32> to vector<8x64xf32>
    %52 = arith.mulf %50, %51 : vector<8x64xf32>
    %53 = arith.addf %27, %52 : vector<8x64xf32>
    %54 = vector.extract_strided_slice %16 {offsets = [1, 0], sizes = [1, 64], strides = [1, 1]} : vector<8x64xf32> to vector<1x64xf32>
    %55 = vector.broadcast %54 : vector<1x64xf32> to vector<16x64xf32>
    %56 = arith.mulf %55, %0 : vector<16x64xf32>
    %57 = math.exp %56 : vector<16x64xf32>
    %58 = vector.extract_strided_slice %22 {offsets = [1, 0], sizes = [1, 16], strides = [1, 1]} : vector<8x16xf32> to vector<1x16xf32>
    %59 = vector.shape_cast %58 : vector<1x16xf32> to vector<1x16xf32>
    %60 = vector.broadcast %59 : vector<1x16xf32> to vector<16x16xf32>
    %61 = arith.mulf %60, %6 : vector<16x16xf32>
    %cst_17 = arith.constant dense<0.000000e+00> : vector<16xf32>
    %62 = vector.multi_reduction <add>, %61, %cst_17 [1] : vector<16x16xf32> to vector<16xf32>
    %63 = vector.shape_cast %62 : vector<16xf32> to vector<16x1xf32>
    %64 = arith.mulf %57, %43 : vector<16x64xf32>
    %65 = vector.extract_strided_slice %26 {offsets = [1, 0], sizes = [1, 64], strides = [1, 1]} : vector<8x64xf32> to vector<1x64xf32>
    %66 = vector.broadcast %63 : vector<16x1xf32> to vector<16x64xf32>
    %67 = vector.broadcast %65 : vector<1x64xf32> to vector<16x64xf32>
    %68 = arith.mulf %66, %67 : vector<16x64xf32>
    %69 = arith.addf %64, %68 : vector<16x64xf32>
    %70 = vector.extract_strided_slice %25 {offsets = [1, 0], sizes = [1, 16], strides = [1, 1]} : vector<8x16xf32> to vector<1x16xf32>
    %cst_18 = arith.constant dense<0.000000e+00> : vector<1x64xf32>
    %71 = tpu.matmul %70, %69, %cst_18 {dimension_numbers = #tpu.dot_dimension_numbers<[1], [0], [0], [1], [0, 0, 1, 1], [], []>} : vector<1x16xf32>, vector<16x64xf32>, vector<1x64xf32> -> vector<1x64xf32>
    %c1_i32 = arith.constant 1 : i32
    %72 = vector.broadcast %c1_i32 : i32 to vector<8x1xi32>
    %73 = arith.cmpi eq, %7, %72 : vector<8x1xi32>
    %74 = arith.extui %73 : vector<8x1xi1> to vector<8x1xi32>
    %75 = arith.sitofp %74 : vector<8x1xi32> to vector<8x1xf32>
    %76 = vector.broadcast %75 : vector<8x1xf32> to vector<8x64xf32>
    %77 = vector.broadcast %71 : vector<1x64xf32> to vector<8x64xf32>
    %78 = arith.mulf %76, %77 : vector<8x64xf32>
    %79 = arith.addf %53, %78 : vector<8x64xf32>
    %80 = vector.extract_strided_slice %16 {offsets = [2, 0], sizes = [1, 64], strides = [1, 1]} : vector<8x64xf32> to vector<1x64xf32>
    %81 = vector.broadcast %80 : vector<1x64xf32> to vector<16x64xf32>
    %82 = arith.mulf %81, %0 : vector<16x64xf32>
    %83 = math.exp %82 : vector<16x64xf32>
    %84 = vector.extract_strided_slice %22 {offsets = [2, 0], sizes = [1, 16], strides = [1, 1]} : vector<8x16xf32> to vector<1x16xf32>
    %85 = vector.shape_cast %84 : vector<1x16xf32> to vector<1x16xf32>
    %86 = vector.broadcast %85 : vector<1x16xf32> to vector<16x16xf32>
    %87 = arith.mulf %86, %6 : vector<16x16xf32>
    %cst_19 = arith.constant dense<0.000000e+00> : vector<16xf32>
    %88 = vector.multi_reduction <add>, %87, %cst_19 [1] : vector<16x16xf32> to vector<16xf32>
    %89 = vector.shape_cast %88 : vector<16xf32> to vector<16x1xf32>
    %90 = arith.mulf %83, %69 : vector<16x64xf32>
    %91 = vector.extract_strided_slice %26 {offsets = [2, 0], sizes = [1, 64], strides = [1, 1]} : vector<8x64xf32> to vector<1x64xf32>
    %92 = vector.broadcast %89 : vector<16x1xf32> to vector<16x64xf32>
    %93 = vector.broadcast %91 : vector<1x64xf32> to vector<16x64xf32>
    %94 = arith.mulf %92, %93 : vector<16x64xf32>
    %95 = arith.addf %90, %94 : vector<16x64xf32>
    %96 = vector.extract_strided_slice %25 {offsets = [2, 0], sizes = [1, 16], strides = [1, 1]} : vector<8x16xf32> to vector<1x16xf32>
    %cst_20 = arith.constant dense<0.000000e+00> : vector<1x64xf32>
    %97 = tpu.matmul %96, %95, %cst_20 {dimension_numbers = #tpu.dot_dimension_numbers<[1], [0], [0], [1], [0, 0, 1, 1], [], []>} : vector<1x16xf32>, vector<16x64xf32>, vector<1x64xf32> -> vector<1x64xf32>
    %c2_i32 = arith.constant 2 : i32
    %98 = vector.broadcast %c2_i32 : i32 to vector<8x1xi32>
    %99 = arith.cmpi eq, %7, %98 : vector<8x1xi32>
    %100 = arith.extui %99 : vector<8x1xi1> to vector<8x1xi32>
    %101 = arith.sitofp %100 : vector<8x1xi32> to vector<8x1xf32>
    %102 = vector.broadcast %101 : vector<8x1xf32> to vector<8x64xf32>
    %103 = vector.broadcast %97 : vector<1x64xf32> to vector<8x64xf32>
    %104 = arith.mulf %102, %103 : vector<8x64xf32>
    %105 = arith.addf %79, %104 : vector<8x64xf32>
    %106 = vector.extract_strided_slice %16 {offsets = [3, 0], sizes = [1, 64], strides = [1, 1]} : vector<8x64xf32> to vector<1x64xf32>
    %107 = vector.broadcast %106 : vector<1x64xf32> to vector<16x64xf32>
    %108 = arith.mulf %107, %0 : vector<16x64xf32>
    %109 = math.exp %108 : vector<16x64xf32>
    %110 = vector.extract_strided_slice %22 {offsets = [3, 0], sizes = [1, 16], strides = [1, 1]} : vector<8x16xf32> to vector<1x16xf32>
    %111 = vector.shape_cast %110 : vector<1x16xf32> to vector<1x16xf32>
    %112 = vector.broadcast %111 : vector<1x16xf32> to vector<16x16xf32>
    %113 = arith.mulf %112, %6 : vector<16x16xf32>
    %cst_21 = arith.constant dense<0.000000e+00> : vector<16xf32>
    %114 = vector.multi_reduction <add>, %113, %cst_21 [1] : vector<16x16xf32> to vector<16xf32>
    %115 = vector.shape_cast %114 : vector<16xf32> to vector<16x1xf32>
    %116 = arith.mulf %109, %95 : vector<16x64xf32>
    %117 = vector.extract_strided_slice %26 {offsets = [3, 0], sizes = [1, 64], strides = [1, 1]} : vector<8x64xf32> to vector<1x64xf32>
    %118 = vector.broadcast %115 : vector<16x1xf32> to vector<16x64xf32>
    %119 = vector.broadcast %117 : vector<1x64xf32> to vector<16x64xf32>
    %120 = arith.mulf %118, %119 : vector<16x64xf32>
    %121 = arith.addf %116, %120 : vector<16x64xf32>
    %122 = vector.extract_strided_slice %25 {offsets = [3, 0], sizes = [1, 16], strides = [1, 1]} : vector<8x16xf32> to vector<1x16xf32>
    %cst_22 = arith.constant dense<0.000000e+00> : vector<1x64xf32>
    %123 = tpu.matmul %122, %121, %cst_22 {dimension_numbers = #tpu.dot_dimension_numbers<[1], [0], [0], [1], [0, 0, 1, 1], [], []>} : vector<1x16xf32>, vector<16x64xf32>, vector<1x64xf32> -> vector<1x64xf32>
    %c3_i32 = arith.constant 3 : i32
    %124 = vector.broadcast %c3_i32 : i32 to vector<8x1xi32>
    %125 = arith.cmpi eq, %7, %124 : vector<8x1xi32>
    %126 = arith.extui %125 : vector<8x1xi1> to vector<8x1xi32>
    %127 = arith.sitofp %126 : vector<8x1xi32> to vector<8x1xf32>
    %128 = vector.broadcast %127 : vector<8x1xf32> to vector<8x64xf32>
    %129 = vector.broadcast %123 : vector<1x64xf32> to vector<8x64xf32>
    %130 = arith.mulf %128, %129 : vector<8x64xf32>
    %131 = arith.addf %105, %130 : vector<8x64xf32>
    %132 = vector.extract_strided_slice %16 {offsets = [4, 0], sizes = [1, 64], strides = [1, 1]} : vector<8x64xf32> to vector<1x64xf32>
    %133 = vector.broadcast %132 : vector<1x64xf32> to vector<16x64xf32>
    %134 = arith.mulf %133, %0 : vector<16x64xf32>
    %135 = math.exp %134 : vector<16x64xf32>
    %136 = vector.extract_strided_slice %22 {offsets = [4, 0], sizes = [1, 16], strides = [1, 1]} : vector<8x16xf32> to vector<1x16xf32>
    %137 = vector.shape_cast %136 : vector<1x16xf32> to vector<1x16xf32>
    %138 = vector.broadcast %137 : vector<1x16xf32> to vector<16x16xf32>
    %139 = arith.mulf %138, %6 : vector<16x16xf32>
    %cst_23 = arith.constant dense<0.000000e+00> : vector<16xf32>
    %140 = vector.multi_reduction <add>, %139, %cst_23 [1] : vector<16x16xf32> to vector<16xf32>
    %141 = vector.shape_cast %140 : vector<16xf32> to vector<16x1xf32>
    %142 = arith.mulf %135, %121 : vector<16x64xf32>
    %143 = vector.extract_strided_slice %26 {offsets = [4, 0], sizes = [1, 64], strides = [1, 1]} : vector<8x64xf32> to vector<1x64xf32>
    %144 = vector.broadcast %141 : vector<16x1xf32> to vector<16x64xf32>
    %145 = vector.broadcast %143 : vector<1x64xf32> to vector<16x64xf32>
    %146 = arith.mulf %144, %145 : vector<16x64xf32>
    %147 = arith.addf %142, %146 : vector<16x64xf32>
    %148 = vector.extract_strided_slice %25 {offsets = [4, 0], sizes = [1, 16], strides = [1, 1]} : vector<8x16xf32> to vector<1x16xf32>
    %cst_24 = arith.constant dense<0.000000e+00> : vector<1x64xf32>
    %149 = tpu.matmul %148, %147, %cst_24 {dimension_numbers = #tpu.dot_dimension_numbers<[1], [0], [0], [1], [0, 0, 1, 1], [], []>} : vector<1x16xf32>, vector<16x64xf32>, vector<1x64xf32> -> vector<1x64xf32>
    %c4_i32 = arith.constant 4 : i32
    %150 = vector.broadcast %c4_i32 : i32 to vector<8x1xi32>
    %151 = arith.cmpi eq, %7, %150 : vector<8x1xi32>
    %152 = arith.extui %151 : vector<8x1xi1> to vector<8x1xi32>
    %153 = arith.sitofp %152 : vector<8x1xi32> to vector<8x1xf32>
    %154 = vector.broadcast %153 : vector<8x1xf32> to vector<8x64xf32>
    %155 = vector.broadcast %149 : vector<1x64xf32> to vector<8x64xf32>
    %156 = arith.mulf %154, %155 : vector<8x64xf32>
    %157 = arith.addf %131, %156 : vector<8x64xf32>
    %158 = vector.extract_strided_slice %16 {offsets = [5, 0], sizes = [1, 64], strides = [1, 1]} : vector<8x64xf32> to vector<1x64xf32>
    %159 = vector.broadcast %158 : vector<1x64xf32> to vector<16x64xf32>
    %160 = arith.mulf %159, %0 : vector<16x64xf32>
    %161 = math.exp %160 : vector<16x64xf32>
    %162 = vector.extract_strided_slice %22 {offsets = [5, 0], sizes = [1, 16], strides = [1, 1]} : vector<8x16xf32> to vector<1x16xf32>
    %163 = vector.shape_cast %162 : vector<1x16xf32> to vector<1x16xf32>
    %164 = vector.broadcast %163 : vector<1x16xf32> to vector<16x16xf32>
    %165 = arith.mulf %164, %6 : vector<16x16xf32>
    %cst_25 = arith.constant dense<0.000000e+00> : vector<16xf32>
    %166 = vector.multi_reduction <add>, %165, %cst_25 [1] : vector<16x16xf32> to vector<16xf32>
    %167 = vector.shape_cast %166 : vector<16xf32> to vector<16x1xf32>
    %168 = arith.mulf %161, %147 : vector<16x64xf32>
    %169 = vector.extract_strided_slice %26 {offsets = [5, 0], sizes = [1, 64], strides = [1, 1]} : vector<8x64xf32> to vector<1x64xf32>
    %170 = vector.broadcast %167 : vector<16x1xf32> to vector<16x64xf32>
    %171 = vector.broadcast %169 : vector<1x64xf32> to vector<16x64xf32>
    %172 = arith.mulf %170, %171 : vector<16x64xf32>
    %173 = arith.addf %168, %172 : vector<16x64xf32>
    %174 = vector.extract_strided_slice %25 {offsets = [5, 0], sizes = [1, 16], strides = [1, 1]} : vector<8x16xf32> to vector<1x16xf32>
    %cst_26 = arith.constant dense<0.000000e+00> : vector<1x64xf32>
    %175 = tpu.matmul %174, %173, %cst_26 {dimension_numbers = #tpu.dot_dimension_numbers<[1], [0], [0], [1], [0, 0, 1, 1], [], []>} : vector<1x16xf32>, vector<16x64xf32>, vector<1x64xf32> -> vector<1x64xf32>
    %c5_i32 = arith.constant 5 : i32
    %176 = vector.broadcast %c5_i32 : i32 to vector<8x1xi32>
    %177 = arith.cmpi eq, %7, %176 : vector<8x1xi32>
    %178 = arith.extui %177 : vector<8x1xi1> to vector<8x1xi32>
    %179 = arith.sitofp %178 : vector<8x1xi32> to vector<8x1xf32>
    %180 = vector.broadcast %179 : vector<8x1xf32> to vector<8x64xf32>
    %181 = vector.broadcast %175 : vector<1x64xf32> to vector<8x64xf32>
    %182 = arith.mulf %180, %181 : vector<8x64xf32>
    %183 = arith.addf %157, %182 : vector<8x64xf32>
    %184 = vector.extract_strided_slice %16 {offsets = [6, 0], sizes = [1, 64], strides = [1, 1]} : vector<8x64xf32> to vector<1x64xf32>
    %185 = vector.broadcast %184 : vector<1x64xf32> to vector<16x64xf32>
    %186 = arith.mulf %185, %0 : vector<16x64xf32>
    %187 = math.exp %186 : vector<16x64xf32>
    %188 = vector.extract_strided_slice %22 {offsets = [6, 0], sizes = [1, 16], strides = [1, 1]} : vector<8x16xf32> to vector<1x16xf32>
    %189 = vector.shape_cast %188 : vector<1x16xf32> to vector<1x16xf32>
    %190 = vector.broadcast %189 : vector<1x16xf32> to vector<16x16xf32>
    %191 = arith.mulf %190, %6 : vector<16x16xf32>
    %cst_27 = arith.constant dense<0.000000e+00> : vector<16xf32>
    %192 = vector.multi_reduction <add>, %191, %cst_27 [1] : vector<16x16xf32> to vector<16xf32>
    %193 = vector.shape_cast %192 : vector<16xf32> to vector<16x1xf32>
    %194 = arith.mulf %187, %173 : vector<16x64xf32>
    %195 = vector.extract_strided_slice %26 {offsets = [6, 0], sizes = [1, 64], strides = [1, 1]} : vector<8x64xf32> to vector<1x64xf32>
    %196 = vector.broadcast %193 : vector<16x1xf32> to vector<16x64xf32>
    %197 = vector.broadcast %195 : vector<1x64xf32> to vector<16x64xf32>
    %198 = arith.mulf %196, %197 : vector<16x64xf32>
    %199 = arith.addf %194, %198 : vector<16x64xf32>
    %200 = vector.extract_strided_slice %25 {offsets = [6, 0], sizes = [1, 16], strides = [1, 1]} : vector<8x16xf32> to vector<1x16xf32>
    %cst_28 = arith.constant dense<0.000000e+00> : vector<1x64xf32>
    %201 = tpu.matmul %200, %199, %cst_28 {dimension_numbers = #tpu.dot_dimension_numbers<[1], [0], [0], [1], [0, 0, 1, 1], [], []>} : vector<1x16xf32>, vector<16x64xf32>, vector<1x64xf32> -> vector<1x64xf32>
    %c6_i32 = arith.constant 6 : i32
    %202 = vector.broadcast %c6_i32 : i32 to vector<8x1xi32>
    %203 = arith.cmpi eq, %7, %202 : vector<8x1xi32>
    %204 = arith.extui %203 : vector<8x1xi1> to vector<8x1xi32>
    %205 = arith.sitofp %204 : vector<8x1xi32> to vector<8x1xf32>
    %206 = vector.broadcast %205 : vector<8x1xf32> to vector<8x64xf32>
    %207 = vector.broadcast %201 : vector<1x64xf32> to vector<8x64xf32>
    %208 = arith.mulf %206, %207 : vector<8x64xf32>
    %209 = arith.addf %183, %208 : vector<8x64xf32>
    %210 = vector.extract_strided_slice %16 {offsets = [7, 0], sizes = [1, 64], strides = [1, 1]} : vector<8x64xf32> to vector<1x64xf32>
    %211 = vector.broadcast %210 : vector<1x64xf32> to vector<16x64xf32>
    %212 = arith.mulf %211, %0 : vector<16x64xf32>
    %213 = math.exp %212 : vector<16x64xf32>
    %214 = vector.extract_strided_slice %22 {offsets = [7, 0], sizes = [1, 16], strides = [1, 1]} : vector<8x16xf32> to vector<1x16xf32>
    %215 = vector.shape_cast %214 : vector<1x16xf32> to vector<1x16xf32>
    %216 = vector.broadcast %215 : vector<1x16xf32> to vector<16x16xf32>
    %217 = arith.mulf %216, %6 : vector<16x16xf32>
    %cst_29 = arith.constant dense<0.000000e+00> : vector<16xf32>
    %218 = vector.multi_reduction <add>, %217, %cst_29 [1] : vector<16x16xf32> to vector<16xf32>
    %219 = vector.shape_cast %218 : vector<16xf32> to vector<16x1xf32>
    %220 = arith.mulf %213, %199 : vector<16x64xf32>
    %221 = vector.extract_strided_slice %26 {offsets = [7, 0], sizes = [1, 64], strides = [1, 1]} : vector<8x64xf32> to vector<1x64xf32>
    %222 = vector.broadcast %219 : vector<16x1xf32> to vector<16x64xf32>
    %223 = vector.broadcast %221 : vector<1x64xf32> to vector<16x64xf32>
    %224 = arith.mulf %222, %223 : vector<16x64xf32>
    %225 = arith.addf %220, %224 : vector<16x64xf32>
    %226 = vector.extract_strided_slice %25 {offsets = [7, 0], sizes = [1, 16], strides = [1, 1]} : vector<8x16xf32> to vector<1x16xf32>
    %cst_30 = arith.constant dense<0.000000e+00> : vector<1x64xf32>
    %227 = tpu.matmul %226, %225, %cst_30 {dimension_numbers = #tpu.dot_dimension_numbers<[1], [0], [0], [1], [0, 0, 1, 1], [], []>} : vector<1x16xf32>, vector<16x64xf32>, vector<1x64xf32> -> vector<1x64xf32>
    %c7_i32 = arith.constant 7 : i32
    %228 = vector.broadcast %c7_i32 : i32 to vector<8x1xi32>
    %229 = arith.cmpi eq, %7, %228 : vector<8x1xi32>
    %230 = arith.extui %229 : vector<8x1xi1> to vector<8x1xi32>
    %231 = arith.sitofp %230 : vector<8x1xi32> to vector<8x1xf32>
    %232 = vector.broadcast %231 : vector<8x1xf32> to vector<8x64xf32>
    %233 = vector.broadcast %227 : vector<1x64xf32> to vector<8x64xf32>
    %234 = arith.mulf %232, %233 : vector<8x64xf32>
    %235 = arith.addf %209, %234 : vector<8x64xf32>
    %236 = vector.broadcast %1 : vector<1x64xf32> to vector<8x64xf32>
    %237 = arith.mulf %13, %236 : vector<8x64xf32>
    %238 = arith.addf %235, %237 : vector<8x64xf32>
    %239 = arith.negf %19 : vector<8x64xf32>
    %240 = math.exp %239 : vector<8x64xf32>
    %cst_31 = arith.constant 1.000000e+00 : f32
    %241 = vector.broadcast %cst_31 : f32 to vector<8x64xf32>
    %242 = arith.addf %241, %240 : vector<8x64xf32>
    %243 = arith.divf %241, %242 : vector<8x64xf32>
    %244 = arith.mulf %19, %243 : vector<8x64xf32>
    %245 = arith.mulf %238, %244 : vector<8x64xf32>
    %c0_32 = arith.constant 0 : index
    %246 = arith.index_cast %10 : i32 to index
    %c0_33 = arith.constant 0 : index
    %247 = vector.load %arg8[%c0_32, %246, %c0_33] : memref<1x8x64xf32, #tpu.memory_space<vmem>>, vector<1x8x64xf32>
    %248 = vector.shape_cast %247 : vector<1x8x64xf32> to vector<8x64xf32>
    %249 = vector.shape_cast %245 : vector<8x64xf32> to vector<1x8x64xf32>
    tpu.vector_store %arg8[%c0_32, %246, %c0_33], %249 {strides = array<i32>} : memref<1x8x64xf32, #tpu.memory_space<vmem>>, vector<1x8x64xf32>,
    %c1_i32_34 = arith.constant 1 : i32
    return
  }
  func.func @transform_0(%arg0: i32) -> (i32, i32, i32) {
    %c0_i32 = arith.constant 0 : i32
    %c0_i32_0 = arith.constant 0 : i32
    %c0_i32_1 = arith.constant 0 : i32
    return %arg0, %c0_i32, %c0_i32_0 : i32, i32, i32
  }
  func.func @transform_1(%arg0: i32) -> (i32, i32, i32) {
    %c0_i32 = arith.constant 0 : i32
    %c0_i32_0 = arith.constant 0 : i32
    %c0_i32_1 = arith.constant 0 : i32
    return %arg0, %c0_i32, %c0_i32_0 : i32, i32, i32
  }
  func.func @transform_2(%arg0: i32) -> (i32, i32, i32) {
    %c0_i32 = arith.constant 0 : i32
    %c0_i32_0 = arith.constant 0 : i32
    %c0_i32_1 = arith.constant 0 : i32
    return %arg0, %c0_i32, %c0_i32_0 : i32, i32, i32
  }
  func.func @transform_3(%arg0: i32) -> (i32, i32, i32) {
    %c0_i32 = arith.constant 0 : i32
    %c0_i32_0 = arith.constant 0 : i32
    %c0_i32_1 = arith.constant 0 : i32
    return %arg0, %c0_i32, %c0_i32_0 : i32, i32, i32
  }
  func.func @transform_4(%arg0: i32) -> (i32, i32, i32) {
    %c0_i32 = arith.constant 0 : i32
    %c0_i32_0 = arith.constant 0 : i32
    %c0_i32_1 = arith.constant 0 : i32
    return %arg0, %c0_i32, %c0_i32_0 : i32, i32, i32
  }
  func.func @transform_5(%arg0: i32) -> (i32, i32) {
    %c0_i32 = arith.constant 0 : i32
    %c0_i32_0 = arith.constant 0 : i32
    %c0_i32_1 = arith.constant 0 : i32
    return %c0_i32, %c0_i32_0 : i32, i32
  }
  func.func @transform_6(%arg0: i32) -> (i32, i32) {
    %c0_i32 = arith.constant 0 : i32
    %c0_i32_0 = arith.constant 0 : i32
    %c0_i32_1 = arith.constant 0 : i32
    return %c0_i32, %c0_i32_0 : i32, i32
  }
  func.func @transform_7(%arg0: i32) -> (i32, i32, i32) {
    %c0_i32 = arith.constant 0 : i32
    %c0_i32_0 = arith.constant 0 : i32
    %c0_i32_1 = arith.constant 0 : i32
    return %arg0, %c0_i32, %c0_i32_0 : i32, i32, i32
  }
}

</mosaic_0001>

<llo_original>
// kernel: _lambda_.10
$region0: #{_lambda_.10}
  #allocation0 [shape = 'u32[]', space=smem, size = 0x4, offset = 0x4, fixed_abs, tag = 'smem constant byte address 0x4 - core index']
  #allocation1 [shape = 'u32[144,128]{1,0:T(1,128)}', space=vmem, size = 0x12000, scoped, tag = 'internal scratch']
  %s0 = inlined_call_operand.vmem [shape: f32[16,64], index: 0, kind: input, shape index: {}]
  %s1 = inlined_call_operand.vmem [shape: f32[64,2], index: 1, kind: input, shape index: {}]
  %s2 = inlined_call_operand.vmem [shape: bf16[64,16], index: 2, kind: input, shape index: {}]
  %s3 = inlined_call_operand.vmem [shape: bf16[64,16], index: 3, kind: input, shape index: {}]
  %s4 = inlined_call_operand.vmem [shape: f32[2,64], index: 4, kind: input, shape index: {}]
  %s5 = inlined_call_operand.vmem [shape: f32[1,64], index: 5, kind: input, shape index: {}]
  %s6 = inlined_call_operand.vmem [shape: f32[16,64], index: 6, kind: output, shape index: {0}]
  %s7 = inlined_call_operand.vmem [shape: f32[16,16], index: 7, kind: output, shape index: {1}]
  %s8 = inlined_call_operand.vmem [shape: f32[16,16], index: 8, kind: output, shape index: {2}]
  %9 = xla_tuple %s6, %s7, %s8
  %s10 = sld [smem:[#allocation0]]
  $region50: #{_lambda_.10} parent=0
    _
  %s12 = ssub.s32 1, %s10
  %s13 = scalar_select 0, %s12, %s10
  // Predicated region
  $region2: #{_lambda_.10} parent=0 // pred_check
    _
  $region3: #{_lambda_.10} parent=0 // pred_check_branch
    %15 = sbr.rel (0) target = $region5
  $region4: #{_lambda_.10} parent=0 // pred_region
    _
  $region5: #{_lambda_.10} parent=0 // pred_fallthru
    _
  // Predicated region
  $region6: #{_lambda_.10} parent=0 // pred_check
    _
  $region7: #{_lambda_.10} parent=0 // pred_check_branch
    %17 = sbr.rel (0) target = $region9
  $region8: #{_lambda_.10} parent=0 // pred_region
    _
  $region9: #{_lambda_.10} parent=0 // pred_fallthru
    _
  // Predicated region
  $region10: #{_lambda_.10} parent=0 // pred_check
    _
  $region11: #{_lambda_.10} parent=0 // pred_check_branch
    %19 = sbr.rel (0) target = $region13
  $region12: #{_lambda_.10} parent=0 // pred_region
    _
  $region13: #{_lambda_.10} parent=0 // pred_fallthru
    _
  // Predicated region
  $region14: #{_lambda_.10} parent=0 // pred_check
    _
  $region15: #{_lambda_.10} parent=0 // pred_check_branch
    %21 = sbr.rel (0) target = $region17
  $region16: #{_lambda_.10} parent=0 // pred_region
    _
  $region17: #{_lambda_.10} parent=0 // pred_fallthru
    _
  // Predicated region
  $region18: #{_lambda_.10} parent=0 // pred_check
    _
  $region19: #{_lambda_.10} parent=0 // pred_check_branch
    %23 = sbr.rel (0) target = $region21
  $region20: #{_lambda_.10} parent=0 // pred_region
    _
  $region21: #{_lambda_.10} parent=0 // pred_fallthru
    _
  // Predicated region
  $region22: #{_lambda_.10} parent=0 // pred_check
    _
  $region23: #{_lambda_.10} parent=0 // pred_check_branch
    %25 = sbr.rel (0) target = $region25
  $region24: #{_lambda_.10} parent=0 // pred_region
    _
  $region25: #{_lambda_.10} parent=0 // pred_fallthru
    _
  %v27 = vld [vmem:[%s0] sm:$0xff]
  %v28 = vld [vmem:[%s0 + $0x8] sm:$0xff]
  %v29 = vpack.c.bf16 %v28, %v27
  %v30 = vld [vmem:[%s2] sm:$0xf]
  %v31 = vld [vmem:[%s2 + $0x4] sm:$0xf]
  %v32 = vld [vmem:[%s2 + $0x8] sm:$0xf]
  %v33 = vld [vmem:[%s2 + $0xc] sm:$0xf]
  %v34 = vld [vmem:[%s2 + $0x10] sm:$0xf]
  %v35 = vld [vmem:[%s2 + $0x14] sm:$0xf]
  %v36 = vld [vmem:[%s2 + $0x18] sm:$0xf]
  %v37 = vld [vmem:[%s2 + $0x1c] sm:$0xf]
  %v46 = vunpack.c.l.b16 %v30
  %v47 = vunpack.c.l.b16 %v31
  %v48 = vunpack.c.l.b16 %v32
  %v49 = vunpack.c.l.b16 %v33
  %v50 = vunpack.c.l.b16 %v34
  %v51 = vunpack.c.l.b16 %v35
  %v52 = vunpack.c.l.b16 %v36
  %v53 = vunpack.c.l.b16 %v37
  %v54 = vpack.c.b16 %v47, %v46
  %v55 = vpack.c.b16 %v49, %v48
  %v56 = vpack.c.b16 %v51, %v50
  %v57 = vpack.c.b16 %v53, %v52
  %vm62 = vcmask 523264
  %v64 = vsel %vm62, %v29, 0
  %66 = vmatprep.subr.bf16.mxu0 0
  %67 = vmatpush1.bf16.msra.mxu0 0
  %68 = vmatprep.subr.bf16.mxu0 0
  %69 = vmatpush1.bf16.msra.mxu0 0
  %70 = vmatprep.subr.bf16.mxu0 0
  %71 = vmatpush1.bf16.msra.mxu0 0
  %72 = vmatprep.subr.bf16.mxu0 0
  %73 = vmatpush1.bf16.msra.mxu0 0
  %74 = vmatprep.subr.bf16.mxu0 0
  %75 = vmatpush1.bf16.msra.mxu0 %v57
  %76 = vmatprep.subr.bf16.mxu0 0
  %77 = vmatpush1.bf16.msra.mxu0 %v56
  %78 = vmatprep.subr.bf16.mxu0 0
  %79 = vmatpush1.bf16.msra.mxu0 %v55
  %80 = vmatprep.subr.bf16.mxu0 0
  %81 = vmatpush1.bf16.msra.mxu0 %v54
  %82 = vmatprep.subr.bf16.mxu0 0
  %83 = vmatpush2.bf16.msra.mxu0 0
  %84 = vmatprep.subr.bf16.mxu0 0
  %85 = vmatpush2.bf16.msra.mxu0 0
  %86 = vmatprep.subr.bf16.mxu0 0
  %87 = vmatpush2.bf16.msra.mxu0 0
  %88 = vmatprep.subr.bf16.mxu0 0
  %89 = vmatpush2.bf16.msra.mxu0 0
  %90 = vmatprep.subr.bf16.mxu0 0
  %91 = vmatpush2.bf16.msra.mxu0 0
  %92 = vmatprep.subr.bf16.mxu0 0
  %93 = vmatpush2.bf16.msra.mxu0 0
  %94 = vmatprep.subr.bf16.mxu0 0
  %95 = vmatpush2.bf16.msra.mxu0 0
  %96 = vmatprep.subr.bf16.mxu0 0
  %97 = vmatpush2.bf16.msra.mxu0 0
  %98 = vmatprep.mubr.bf16.mxu0 0
  %99 = vmatmul.mubr.bf16.gmra.mxu0 %v64
  %v100 = vpop.f32.mrf.mxu0
  %v101 = vadd.f32 0.0, %v100
  %v102 = vpop.f32.mrf.mxu0
  %v103 = vpop.f32.mrf.mxu0
  %v104 = vadd.f32 0.0, %v103
  %v105 = vpop.f32.mrf.mxu0
  %106 = vdwg.mxu0
  %vm107 = vcmask 130048
  %108 = vst.msk [vmem:[%s7] sm:$0xff] %vm107, %v101
  %109 = vst.msk [vmem:[%s7 + $0x8] sm:$0xff] %vm107, %v104
  %v110 = vld [vmem:[%s3] sm:$0xf]
  %v111 = vld [vmem:[%s3 + $0x4] sm:$0xf]
  %v112 = vld [vmem:[%s3 + $0x8] sm:$0xf]
  %v113 = vld [vmem:[%s3 + $0xc] sm:$0xf]
  %v114 = vld [vmem:[%s3 + $0x10] sm:$0xf]
  %v115 = vld [vmem:[%s3 + $0x14] sm:$0xf]
  %v116 = vld [vmem:[%s3 + $0x18] sm:$0xf]
  %v117 = vld [vmem:[%s3 + $0x1c] sm:$0xf]
  %v126 = vunpack.c.l.b16 %v110
  %v127 = vunpack.c.l.b16 %v111
  %v128 = vunpack.c.l.b16 %v112
  %v129 = vunpack.c.l.b16 %v113
  %v130 = vunpack.c.l.b16 %v114
  %v131 = vunpack.c.l.b16 %v115
  %v132 = vunpack.c.l.b16 %v116
  %v133 = vunpack.c.l.b16 %v117
  %v134 = vpack.c.b16 %v127, %v126
  %v135 = vpack.c.b16 %v129, %v128
  %v136 = vpack.c.b16 %v131, %v130
  %v137 = vpack.c.b16 %v133, %v132
  %142 = vmatprep.subr.bf16.mxu0 0
  %143 = vmatpush1.bf16.msra.mxu0 0
  %144 = vmatprep.subr.bf16.mxu0 0
  %145 = vmatpush1.bf16.msra.mxu0 0
  %146 = vmatprep.subr.bf16.mxu0 0
  %147 = vmatpush1.bf16.msra.mxu0 0
  %148 = vmatprep.subr.bf16.mxu0 0
  %149 = vmatpush1.bf16.msra.mxu0 0
  %150 = vmatprep.subr.bf16.mxu0 0
  %151 = vmatpush1.bf16.msra.mxu0 %v137
  %152 = vmatprep.subr.bf16.mxu0 0
  %153 = vmatpush1.bf16.msra.mxu0 %v136
  %154 = vmatprep.subr.bf16.mxu0 0
  %155 = vmatpush1.bf16.msra.mxu0 %v135
  %156 = vmatprep.subr.bf16.mxu0 0
  %157 = vmatpush1.bf16.msra.mxu0 %v134
  %158 = vmatprep.subr.bf16.mxu0 0
  %159 = vmatpush2.bf16.msra.mxu0 0
  %160 = vmatprep.subr.bf16.mxu0 0
  %161 = vmatpush2.bf16.msra.mxu0 0
  %162 = vmatprep.subr.bf16.mxu0 0
  %163 = vmatpush2.bf16.msra.mxu0 0
  %164 = vmatprep.subr.bf16.mxu0 0
  %165 = vmatpush2.bf16.msra.mxu0 0
  %166 = vmatprep.subr.bf16.mxu0 0
  %167 = vmatpush2.bf16.msra.mxu0 0
  %168 = vmatprep.subr.bf16.mxu0 0
  %169 = vmatpush2.bf16.msra.mxu0 0
  %170 = vmatprep.subr.bf16.mxu0 0
  %171 = vmatpush2.bf16.msra.mxu0 0
  %172 = vmatprep.subr.bf16.mxu0 0
  %173 = vmatpush2.bf16.msra.mxu0 0
  %174 = vmatprep.mubr.bf16.mxu0 0
  %175 = vmatmul.mubr.bf16.gmra.mxu0 %v64
  %v176 = vpop.f32.mrf.mxu0
  %v177 = vadd.f32 0.0, %v176
  %v178 = vpop.f32.mrf.mxu0
  %v179 = vpop.f32.mrf.mxu0
  %v180 = vadd.f32 0.0, %v179
  %v181 = vpop.f32.mrf.mxu0
  %182 = vdwg.mxu0
  %183 = vst.msk [vmem:[%s8] sm:$0xff] %vm107, %v177
  %184 = vst.msk [vmem:[%s8 + $0x8] sm:$0xff] %vm107, %v180
  %v185 = vld [vmem:[%s0] sm:$0xff]
  %v186 = vld [vmem:[%s0 + $0x8] sm:$0xff]
  %v187 = vld [vmem:[%s1] sm:$0xff]
  %v188 = vld [vmem:[%s1 + $0x8] sm:$0xff]
  %v189 = vld [vmem:[%s1 + $0x10] sm:$0xff]
  %v190 = vld [vmem:[%s1 + $0x18] sm:$0xff]
  %v191 = vld [vmem:[%s1 + $0x20] sm:$0xff]
  %v192 = vld [vmem:[%s1 + $0x28] sm:$0xff]
  %v193 = vld [vmem:[%s1 + $0x30] sm:$0xff]
  %v194 = vld [vmem:[%s1 + $0x38] sm:$0xff]
  %v196 = vsel %vm62, %v185, 0
  %v199 = vsel %vm62, %v186, 0
  %201 = vmatprep.subr.mxu0 0.0
  %202 = vmatpush1.msra.mxu0 0.0
  %203 = vmatprep.subr.mxu0 0.0
  %204 = vmatpush1.msra.mxu0 0.0
  %205 = vmatprep.subr.mxu0 0.0
  %206 = vmatpush1.msra.mxu0 0.0
  %207 = vmatprep.subr.mxu0 0.0
  %208 = vmatpush1.msra.mxu0 0.0
  %209 = vmatprep.subr.mxu0 0.0
  %210 = vmatpush1.msra.mxu0 0.0
  %211 = vmatprep.subr.mxu0 0.0
  %212 = vmatpush1.msra.mxu0 0.0
  %213 = vmatprep.subr.mxu0 0.0
  %214 = vmatpush1.msra.mxu0 0.0
  %215 = vmatprep.subr.mxu0 0.0
  %216 = vmatpush1.msra.mxu0 0.0
  %217 = vmatprep.subr.mxu0 0.0
  %218 = vmatpush1.msra.mxu0 %v194
  %219 = vmatprep.subr.mxu0 0.0
  %220 = vmatpush1.msra.mxu0 %v193
  %221 = vmatprep.subr.mxu0 0.0
  %222 = vmatpush1.msra.mxu0 %v192
  %223 = vmatprep.subr.mxu0 0.0
  %224 = vmatpush1.msra.mxu0 %v191
  %225 = vmatprep.subr.mxu0 0.0
  %226 = vmatpush1.msra.mxu0 %v190
  %227 = vmatprep.subr.mxu0 0.0
  %228 = vmatpush1.msra.mxu0 %v189
  %229 = vmatprep.subr.mxu0 0.0
  %230 = vmatpush1.msra.mxu0 %v188
  %231 = vmatprep.subr.mxu0 0.0
  %232 = vmatpush1.msra.mxu0 %v187
  %233 = vmatprep.subr.mxu0 0.0
  %234 = vmatpush2.msra.mxu0 0.0
  %235 = vmatprep.subr.mxu0 0.0
  %236 = vmatpush2.msra.mxu0 0.0
  %237 = vmatprep.subr.mxu0 0.0
  %238 = vmatpush2.msra.mxu0 0.0
  %239 = vmatprep.subr.mxu0 0.0
  %240 = vmatpush2.msra.mxu0 0.0
  %241 = vmatprep.subr.mxu0 0.0
  %242 = vmatpush2.msra.mxu0 0.0
  %243 = vmatprep.subr.mxu0 0.0
  %244 = vmatpush2.msra.mxu0 0.0
  %245 = vmatprep.subr.mxu0 0.0
  %246 = vmatpush2.msra.mxu0 0.0
  %247 = vmatprep.subr.mxu0 0.0
  %248 = vmatpush2.msra.mxu0 0.0
  %249 = vmatprep.subr.mxu0 0.0
  %250 = vmatpush2.msra.mxu0 0.0
  %251 = vmatprep.subr.mxu0 0.0
  %252 = vmatpush2.msra.mxu0 0.0
  %253 = vmatprep.subr.mxu0 0.0
  %254 = vmatpush2.msra.mxu0 0.0
  %255 = vmatprep.subr.mxu0 0.0
  %256 = vmatpush2.msra.mxu0 0.0
  %257 = vmatprep.subr.mxu0 0.0
  %258 = vmatpush2.msra.mxu0 0.0
  %259 = vmatprep.subr.mxu0 0.0
  %260 = vmatpush2.msra.mxu0 0.0
  %261 = vmatprep.subr.mxu0 0.0
  %262 = vmatpush2.msra.mxu0 0.0
  %263 = vmatprep.subr.mxu0 0.0
  %264 = vmatpush2.msra.mxu0 0.0
  %265 = vmatprep.mubr.f32.mxu0 0.0
  %266 = vmatmul.mubr.f32.gmra.mxu0 %v196
  %v267 = vpop.f32.mrf.mxu0
  %v268 = vadd.f32 0.0, %v267
  %v269 = vpop.f32.mrf.mxu0
  %270 = vmatprep.mubr.f32.mxu0 0.0
  %271 = vmatmul.mubr.f32.gmra.mxu0 %v199
  %v272 = vpop.f32.mrf.mxu0
  %v273 = vadd.f32 0.0, %v272
  %v274 = vpop.f32.mrf.mxu0
  %275 = vdwg.mxu0
  %v276 = vld [vmem:[%s4] sm:$0x3]
  %v277 = vld [vmem:[%s5] sm:$0x1]
  %v279 = vlaneseq
  %v280 = vshrl.u32 %v279, 7
  %v281 = vsub.s32 0, %v280
  %v282 = vrot.slane %v277, %v281
  %vm284 = vcmask 15360
  %v286 = vsel %vm284, %v268, 0
  %v289 = vsel %vm284, %v273, 0
  %vm291 = vcmask 1041408
  %v293 = vsel %vm291, %v276, 0
  %295 = vmatprep.subr.mxu0 0.0
  %296 = vmatpush1.msra.mxu0 0.0
  %297 = vmatprep.subr.mxu0 0.0
  %298 = vmatpush1.msra.mxu0 0.0
  %299 = vmatprep.subr.mxu0 0.0
  %300 = vmatpush1.msra.mxu0 0.0
  %301 = vmatprep.subr.mxu0 0.0
  %302 = vmatpush1.msra.mxu0 0.0
  %303 = vmatprep.subr.mxu0 0.0
  %304 = vmatpush1.msra.mxu0 0.0
  %305 = vmatprep.subr.mxu0 0.0
  %306 = vmatpush1.msra.mxu0 0.0
  %307 = vmatprep.subr.mxu0 0.0
  %308 = vmatpush1.msra.mxu0 0.0
  %309 = vmatprep.subr.mxu0 0.0
  %310 = vmatpush1.msra.mxu0 0.0
  %311 = vmatprep.subr.mxu0 0.0
  %312 = vmatpush1.msra.mxu0 0.0
  %313 = vmatprep.subr.mxu0 0.0
  %314 = vmatpush1.msra.mxu0 0.0
  %315 = vmatprep.subr.mxu0 0.0
  %316 = vmatpush1.msra.mxu0 0.0
  %317 = vmatprep.subr.mxu0 0.0
  %318 = vmatpush1.msra.mxu0 0.0
  %319 = vmatprep.subr.mxu0 0.0
  %320 = vmatpush1.msra.mxu0 0.0
  %321 = vmatprep.subr.mxu0 0.0
  %322 = vmatpush1.msra.mxu0 0.0
  %323 = vmatprep.subr.mxu0 0.0
  %324 = vmatpush1.msra.mxu0 0.0
  %325 = vmatprep.subr.mxu0 0.0
  %326 = vmatpush1.msra.mxu0 %v293
  %327 = vmatprep.subr.mxu0 0.0
  %328 = vmatpush2.msra.mxu0 0.0
  %329 = vmatprep.subr.mxu0 0.0
  %330 = vmatpush2.msra.mxu0 0.0
  %331 = vmatprep.subr.mxu0 0.0
  %332 = vmatpush2.msra.mxu0 0.0
  %333 = vmatprep.subr.mxu0 0.0
  %334 = vmatpush2.msra.mxu0 0.0
  %335 = vmatprep.subr.mxu0 0.0
  %336 = vmatpush2.msra.mxu0 0.0
  %337 = vmatprep.subr.mxu0 0.0
  %338 = vmatpush2.msra.mxu0 0.0
  %339 = vmatprep.subr.mxu0 0.0
  %340 = vmatpush2.msra.mxu0 0.0
  %341 = vmatprep.subr.mxu0 0.0
  %342 = vmatpush2.msra.mxu0 0.0
  %343 = vmatprep.subr.mxu0 0.0
  %344 = vmatpush2.msra.mxu0 0.0
  %345 = vmatprep.subr.mxu0 0.0
  %346 = vmatpush2.msra.mxu0 0.0
  %347 = vmatprep.subr.mxu0 0.0
  %348 = vmatpush2.msra.mxu0 0.0
  %349 = vmatprep.subr.mxu0 0.0
  %350 = vmatpush2.msra.mxu0 0.0
  %351 = vmatprep.subr.mxu0 0.0
  %352 = vmatpush2.msra.mxu0 0.0
  %353 = vmatprep.subr.mxu0 0.0
  %354 = vmatpush2.msra.mxu0 0.0
  %355 = vmatprep.subr.mxu0 0.0
  %356 = vmatpush2.msra.mxu0 0.0
  %357 = vmatprep.subr.mxu0 0.0
  %358 = vmatpush2.msra.mxu0 0.0
  %359 = vmatprep.mubr.f32.mxu0 0.0
  %360 = vmatmul.mubr.f32.gmra.mxu0 %v286
  %v361 = vpop.f32.mrf.mxu0
  %v362 = vadd.f32 %v282, %v361
  %v363 = vpop.f32.mrf.mxu0
  %364 = vmatprep.mubr.f32.mxu0 0.0
  %365 = vmatmul.mubr.f32.gmra.mxu0 %v289
  %v366 = vpop.f32.mrf.mxu0
  %v367 = vadd.f32 %v282, %v366
  %v368 = vpop.f32.mrf.mxu0
  %369 = vdwg.mxu0
  %vm370 = vcmp.gt.f32.partialorder %v362, 20.0
  %vm371 = vcmp.gt.f32.partialorder %v367, 20.0
  %v372 = vmin.f32 %v362, 20.0
  %v373 = vmin.f32 %v367, 20.0
  %v374 = vmul.f32 %v372, 1.442695
  %v375 = vpow.pop %v374
  %v376 = vmul.f32 %v373, 1.442695
  %v377 = vpow.pop %v376
  %v378 = vadd.f32 %v375, 1.0
  %v379 = vadd.f32 %v377, 1.0
  %v380 = vlog2.pop %v378
  %v381 = vmul.f32 %v380, 0.6931472
  %v382 = vlog2.pop %v379
  %v383 = vmul.f32 %v382, 0.6931472
  %v384 = vsel %vm370, %v362, %v381
  %v385 = vsel %vm371, %v367, %v383
  %386 = vst.msk [vmem:[%s6] sm:$0xff] %vm62, %v384
  %387 = vst.msk [vmem:[%s6 + $0x8] sm:$0xff] %vm62, %v385
  // Predicated region
  $region26: #{_lambda_.10} parent=0 // pred_check
    _
  $region27: #{_lambda_.10} parent=0 // pred_check_branch
    %389 = sbr.rel (0) target = $region29
  $region28: #{_lambda_.10} parent=0 // pred_region
    _
  $region29: #{_lambda_.10} parent=0 // pred_fallthru
    _
  // Predicated region
  $region30: #{_lambda_.10} parent=0 // pred_check
    _
  $region31: #{_lambda_.10} parent=0 // pred_check_branch
    %391 = sbr.rel (0) target = $region33
  $region32: #{_lambda_.10} parent=0 // pred_region
    _
  $region33: #{_lambda_.10} parent=0 // pred_fallthru
    _
  // Predicated region
  $region34: #{_lambda_.10} parent=0 // pred_check
    _
  $region35: #{_lambda_.10} parent=0 // pred_check_branch
    %393 = sbr.rel (0) target = $region37
  $region36: #{_lambda_.10} parent=0 // pred_region
    _
  $region37: #{_lambda_.10} parent=0 // pred_fallthru
    _
  // Predicated region
  $region38: #{_lambda_.10} parent=0 // pred_check
    _
  $region39: #{_lambda_.10} parent=0 // pred_check_branch
    %395 = sbr.rel (0) target = $region41
  $region40: #{_lambda_.10} parent=0 // pred_region
    _
  $region41: #{_lambda_.10} parent=0 // pred_fallthru
    _
  // Predicated region
  $region42: #{_lambda_.10} parent=0 // pred_check
    _
  $region43: #{_lambda_.10} parent=0 // pred_check_branch
    %397 = sbr.rel (0) target = $region45
  $region44: #{_lambda_.10} parent=0 // pred_region
    _
  $region45: #{_lambda_.10} parent=0 // pred_fallthru
    _
  // Predicated region
  $region46: #{_lambda_.10} parent=0 // pred_check
    _
  $region47: #{_lambda_.10} parent=0 // pred_check_branch
    %399 = sbr.rel (0) target = $region49
  $region48: #{_lambda_.10} parent=0 // pred_region
    _
  $region49: #{_lambda_.10} parent=0 // pred_fallthru
    _

// kernel: _lambda_.7
$region0: #{_lambda_.7}
  #allocation0 [shape = 'u32[]', space=smem, size = 0x4, offset = 0x4, fixed_abs, tag = 'smem constant byte address 0x4 - core index']
  #allocation1 [shape = 'u32[144,128]{1,0:T(1,128)}', space=vmem, size = 0x12000, scoped, tag = 'internal scratch']
  %s0 = inlined_call_operand.vmem [shape: f32[2,10,4], index: 0, kind: input, shape index: {}]
  %s1 = inlined_call_operand.vmem [shape: f32[3,4,32], index: 1, kind: input, shape index: {}]
  %s2 = inlined_call_operand.vmem [shape: f32[2,8,32], index: 2, kind: output, shape index: {}]
  %s3 = sld [smem:[#allocation0]]
  $region41: #{_lambda_.7} parent=0
    _
  %s5 = ssub.s32 1, %s3
  %s6 = scalar_select 0, %s5, %s3
  loop: start=0, step=1, limit=4
  $region2: #{_lambda_.7} parent=0 // loop_pre_header
    _
  $region3: #{_lambda_.7} parent=0 // loop_header
    %s8 = sphi 0, %s12
    %p9 = scmp.ge.s32.totalorder %s8, 4
    %s18 = sphi 0, %s20
    %s21 = sphi 0, %s18
    %s22 = sphi 0, %s21
    %s38 = sphi 0, %s22
    %s42 = sphi 0, %s42
    %s44 = sphi 0, %s42
    %s45 = sphi 0, %s44
    %s59 = sphi 0, %s45
    %s65 = sphi 0, %s67
    %s68 = sphi 0, %s65
    %s69 = sphi 0, %s68
    %s85 = sphi 0, %s69
  $region4: #{_lambda_.7} parent=0 // loop_header_branch
    %11 = sbr.rel (%p9) target = $region8
  $region5: #{_lambda_.7} parent=0 // loop_body
    %s13 = ssub.s32 %s8, 1
    %s14 = ssub.s32 %s8, 2
    %s15 = sadd.s32 %s8, 1
    %s16 = ssub.s32 %s8, %s15
    %p17 = scmp.eq.s32.totalorder %s16, 0
    %s19 = sadd.s32 %s18, 1
    %s20 = scalar_select %p17, %s18, %s19
    %p23 = pneg %p17
    %p24 = scmp.eq.s32.totalorder %s8, 1
    %p25 = por %p23, %p24
    %p26 = scmp.ne.s32.totalorder %s18, %s21
    %p27 = scmp.eq.s32.totalorder %s8, 0
    %p28 = por %p26, %p27
    %p29 = scmp.ne.s32.totalorder %s18, %s21
    %p30 = scmp.eq.s32.totalorder %s13, 1
    %p31 = por %p29, %p30
    %p32 = scmp.ne.s32.totalorder %s21, %s22
    %p33 = scmp.eq.s32.totalorder %s13, 0
    %p34 = por %p32, %p33
    %p35 = scmp.ne.s32.totalorder %s21, %s22
    %p36 = scmp.eq.s32.totalorder %s14, 1
    %p37 = por %p35, %p36
    %p39 = scmp.ne.s32.totalorder %s22, %s38
    %p40 = scmp.eq.s32.totalorder %s14, 0
    %p41 = por %p39, %p40
    %s43 = sadd.s32 %s42, 1
    %p46 = scmp.eq.s32.totalorder %s8, 1
    %p47 = scmp.ne.s32.totalorder %s42, %s44
    %p48 = scmp.eq.s32.totalorder %s8, 0
    %p49 = por %p47, %p48
    %p50 = scmp.ne.s32.totalorder %s42, %s44
    %p51 = scmp.eq.s32.totalorder %s13, 1
    %p52 = por %p50, %p51
    %p53 = scmp.ne.s32.totalorder %s44, %s45
    %p54 = scmp.eq.s32.totalorder %s13, 0
    %p55 = por %p53, %p54
    %p56 = scmp.ne.s32.totalorder %s44, %s45
    %p57 = scmp.eq.s32.totalorder %s14, 1
    %p58 = por %p56, %p57
    %p60 = scmp.ne.s32.totalorder %s45, %s59
    %p61 = scmp.eq.s32.totalorder %s14, 0
    %p62 = por %p60, %p61
    %s63 = ssub.s32 %s8, %s15
    %p64 = scmp.eq.s32.totalorder %s63, 0
    %s66 = sadd.s32 %s65, 1
    %s67 = scalar_select %p64, %s65, %s66
    %p70 = pneg %p64
    %p71 = scmp.eq.s32.totalorder %s8, 1
    %p72 = por %p70, %p71
    %p73 = scmp.ne.s32.totalorder %s65, %s68
    %p74 = scmp.eq.s32.totalorder %s8, 0
    %p75 = por %p73, %p74
    %p76 = scmp.ne.s32.totalorder %s65, %s68
    %p77 = scmp.eq.s32.totalorder %s13, 1
    %p78 = por %p76, %p77
    %p79 = scmp.ne.s32.totalorder %s68, %s69
    %p80 = scmp.eq.s32.totalorder %s13, 0
    %p81 = por %p79, %p80
    %p82 = scmp.ne.s32.totalorder %s68, %s69
    %p83 = scmp.eq.s32.totalorder %s14, 1
    %p84 = por %p82, %p83
    %p86 = scmp.ne.s32.totalorder %s69, %s85
    %p87 = scmp.eq.s32.totalorder %s14, 0
    %p88 = por %p86, %p87
    %p89 = scmp.le.s32.totalorder 1, %s8
    %p90 = scmp.lt.s32.totalorder %s8, 3
    %p91 = pnand %p89, %p90
    %p92 = pneg %p91
    // Predicated region
    $region9: #{_lambda_.7} parent=5 // pred_check
      _
    $region10: #{_lambda_.7} parent=5 // pred_check_branch
      %94 = sbr.rel (%p91) target = $region12
    $region11: #{_lambda_.7} parent=5 // pred_region
      %s95 = ssub.s32 %s8, 1
      // Predicated region
      $region13: #{_lambda_.7} parent=11 // pred_check
        %p96 = pneg %p55
      $region14: #{_lambda_.7} parent=11 // pred_check_branch
        %98 = sbr.rel (%p96) target = $region16
      $region15: #{_lambda_.7} parent=11 // pred_region
        _
      $region16: #{_lambda_.7} parent=11 // pred_fallthru
        _
    $region12: #{_lambda_.7} parent=5 // pred_fallthru
      _
    %p99 = scmp.lt.s32.totalorder %s8, 2
    // Predicated region
    $region17: #{_lambda_.7} parent=5 // pred_check
      %p100 = pneg %p99
    $region18: #{_lambda_.7} parent=5 // pred_check_branch
      %102 = sbr.rel (%p100) target = $region20
    $region19: #{_lambda_.7} parent=5 // pred_region
      // Predicated region
      $region21: #{_lambda_.7} parent=19 // pred_check
        %p103 = pneg %p28
      $region22: #{_lambda_.7} parent=19 // pred_check_branch
        %105 = sbr.rel (%p103) target = $region24
      $region23: #{_lambda_.7} parent=19 // pred_region
        %p106 = scmp.lt.s32.totalorder %s8, 1
        %s107 = scalar_select %p106, %s8, 1
        %s108 = smul.addr %s107, 2
        %s109 = smul.addr %s108, 8
        %s110 = scalar_lea.vmem %s0, %s109
      $region24: #{_lambda_.7} parent=19 // pred_fallthru
        _
    $region20: #{_lambda_.7} parent=5 // pred_fallthru
      _
    %p111 = scmp.le.s32.totalorder 1, %s8
    %p112 = scmp.lt.s32.totalorder %s8, 3
    %p113 = pnand %p111, %p112
    %p114 = pneg %p113
    // Predicated region
    $region25: #{_lambda_.7} parent=5 // pred_check
      _
    $region26: #{_lambda_.7} parent=5 // pred_check_branch
      %116 = sbr.rel (%p113) target = $region28
    $region27: #{_lambda_.7} parent=5 // pred_region
      %s117 = ssub.s32 %s8, 1
      %p118 = scmp.lt.s32.totalorder %s13, 1
      %s119 = scalar_select %p118, %s13, 1
      %s120 = smul.addr %s119, 2
      %s121 = smul.addr %s120, 8
      %s122 = scalar_lea.vmem %s0, %s121
      %p123 = pneg %p34
      %p124 = pneg %p31
      %p125 = pneg %p55
      %p126 = pneg %p52
      %p127 = pneg %p81
      %p128 = pneg %p78
      %p129 = scmp.lt.s32.totalorder %s13, 1
      %s130 = scalar_select %p129, %s13, 1
      %s131 = smul.addr %s130, 8
      %s132 = scalar_lea.vmem %s2, %s131
      %p133 = scmp.lt.s32.totalorder %s13, 1
      %s134 = scalar_select %p133, %s13, 1
      %s135 = smul.addr %s134, 2
      %s136 = smul.addr %s135, 8
      %s137 = scalar_lea.vmem %s0, %s136
      %p138 = scmp.lt.s32.totalorder %s13, 1
      %s139 = scalar_select %p138, %s13, 1
      %s140 = smul.addr %s139, 8
      %s141 = scalar_lea.vmem %s2, %s140
      %v142 = vld [vmem:[%s137] sm:$0xff]
      %v143 = vld [vmem:[%s1] sm:$0xf]
      %v144 = vld [vmem:[%s137 + $0x1] sm:$0xff]
      %s145 = scalar_lea.vmem %s1, 4
      %v146 = vld [vmem:[%s145] sm:$0xf]
      %vm147 = vcmask 31744
      %v149 = vsel %vm147, %v144, 0
      %vm151 = vcmask 1043456
      %v153 = vsel %vm151, %v146, 0
      %155 = vmatprep.subr.mxu0 0.0
      %156 = vmatpush1.msra.mxu0 0.0
      %157 = vmatprep.subr.mxu0 0.0
      %158 = vmatpush1.msra.mxu0 0.0
      %159 = vmatprep.subr.mxu0 0.0
      %160 = vmatpush1.msra.mxu0 0.0
      %161 = vmatprep.subr.mxu0 0.0
      %162 = vmatpush1.msra.mxu0 0.0
      %163 = vmatprep.subr.mxu0 0.0
      %164 = vmatpush1.msra.mxu0 0.0
      %165 = vmatprep.subr.mxu0 0.0
      %166 = vmatpush1.msra.mxu0 0.0
      %167 = vmatprep.subr.mxu0 0.0
      %168 = vmatpush1.msra.mxu0 0.0
      %169 = vmatprep.subr.mxu0 0.0
      %170 = vmatpush1.msra.mxu0 0.0
      %171 = vmatprep.subr.mxu0 0.0
      %172 = vmatpush1.msra.mxu0 0.0
      %173 = vmatprep.subr.mxu0 0.0
      %174 = vmatpush1.msra.mxu0 0.0
      %175 = vmatprep.subr.mxu0 0.0
      %176 = vmatpush1.msra.mxu0 0.0
      %177 = vmatprep.subr.mxu0 0.0
      %178 = vmatpush1.msra.mxu0 0.0
      %179 = vmatprep.subr.mxu0 0.0
      %180 = vmatpush1.msra.mxu0 0.0
      %181 = vmatprep.subr.mxu0 0.0
      %182 = vmatpush1.msra.mxu0 0.0
      %183 = vmatprep.subr.mxu0 0.0
      %184 = vmatpush1.msra.mxu0 0.0
      %185 = vmatprep.subr.mxu0 0.0
      %186 = vmatpush1.msra.mxu0 %v153
      %187 = vmatprep.subr.mxu0 0.0
      %188 = vmatpush2.msra.mxu0 0.0
      %189 = vmatprep.subr.mxu0 0.0
      %190 = vmatpush2.msra.mxu0 0.0
      %191 = vmatprep.subr.mxu0 0.0
      %192 = vmatpush2.msra.mxu0 0.0
      %193 = vmatprep.subr.mxu0 0.0
      %194 = vmatpush2.msra.mxu0 0.0
      %195 = vmatprep.subr.mxu0 0.0
      %196 = vmatpush2.msra.mxu0 0.0
      %197 = vmatprep.subr.mxu0 0.0
      %198 = vmatpush2.msra.mxu0 0.0
      %199 = vmatprep.subr.mxu0 0.0
      %200 = vmatpush2.msra.mxu0 0.0
      %201 = vmatprep.subr.mxu0 0.0
      %202 = vmatpush2.msra.mxu0 0.0
      %203 = vmatprep.subr.mxu0 0.0
      %204 = vmatpush2.msra.mxu0 0.0
      %205 = vmatprep.subr.mxu0 0.0
      %206 = vmatpush2.msra.mxu0 0.0
      %207 = vmatprep.subr.mxu0 0.0
      %208 = vmatpush2.msra.mxu0 0.0
      %209 = vmatprep.subr.mxu0 0.0
      %210 = vmatpush2.msra.mxu0 0.0
      %211 = vmatprep.subr.mxu0 0.0
      %212 = vmatpush2.msra.mxu0 0.0
      %213 = vmatprep.subr.mxu0 0.0
      %214 = vmatpush2.msra.mxu0 0.0
      %215 = vmatprep.subr.mxu0 0.0
      %216 = vmatpush2.msra.mxu0 0.0
      %217 = vmatprep.subr.mxu0 0.0
      %218 = vmatpush2.msra.mxu0 0.0
      %219 = vmatprep.mubr.f32.mxu0 0.0
      %220 = vmatmul.mubr.f32.gmra.mxu0 %v149
      %v221 = vpop.f32.mrf.mxu0
      %v222 = vadd.f32 0.0, %v221
      %v223 = vpop.f32.mrf.mxu0
      %224 = vdwg.mxu0
      %v226 = vsel %vm147, %v142, 0
      %v229 = vsel %vm151, %v143, 0
      %231 = vmatprep.subr.mxu0 0.0
      %232 = vmatpush1.msra.mxu0 0.0
      %233 = vmatprep.subr.mxu0 0.0
      %234 = vmatpush1.msra.mxu0 0.0
      %235 = vmatprep.subr.mxu0 0.0
      %236 = vmatpush1.msra.mxu0 0.0
      %237 = vmatprep.subr.mxu0 0.0
      %238 = vmatpush1.msra.mxu0 0.0
      %239 = vmatprep.subr.mxu0 0.0
      %240 = vmatpush1.msra.mxu0 0.0
      %241 = vmatprep.subr.mxu0 0.0
      %242 = vmatpush1.msra.mxu0 0.0
      %243 = vmatprep.subr.mxu0 0.0
      %244 = vmatpush1.msra.mxu0 0.0
      %245 = vmatprep.subr.mxu0 0.0
      %246 = vmatpush1.msra.mxu0 0.0
      %247 = vmatprep.subr.mxu0 0.0
      %248 = vmatpush1.msra.mxu0 0.0
      %249 = vmatprep.subr.mxu0 0.0
      %250 = vmatpush1.msra.mxu0 0.0
      %251 = vmatprep.subr.mxu0 0.0
      %252 = vmatpush1.msra.mxu0 0.0
      %253 = vmatprep.subr.mxu0 0.0
      %254 = vmatpush1.msra.mxu0 0.0
      %255 = vmatprep.subr.mxu0 0.0
      %256 = vmatpush1.msra.mxu0 0.0
      %257 = vmatprep.subr.mxu0 0.0
      %258 = vmatpush1.msra.mxu0 0.0
      %259 = vmatprep.subr.mxu0 0.0
      %260 = vmatpush1.msra.mxu0 0.0
      %261 = vmatprep.subr.mxu0 0.0
      %262 = vmatpush1.msra.mxu0 %v229
      %263 = vmatprep.subr.mxu0 0.0
      %264 = vmatpush2.msra.mxu0 0.0
      %265 = vmatprep.subr.mxu0 0.0
      %266 = vmatpush2.msra.mxu0 0.0
      %267 = vmatprep.subr.mxu0 0.0
      %268 = vmatpush2.msra.mxu0 0.0
      %269 = vmatprep.subr.mxu0 0.0
      %270 = vmatpush2.msra.mxu0 0.0
      %271 = vmatprep.subr.mxu0 0.0
      %272 = vmatpush2.msra.mxu0 0.0
      %273 = vmatprep.subr.mxu0 0.0
      %274 = vmatpush2.msra.mxu0 0.0
      %275 = vmatprep.subr.mxu0 0.0
      %276 = vmatpush2.msra.mxu0 0.0
      %277 = vmatprep.subr.mxu0 0.0
      %278 = vmatpush2.msra.mxu0 0.0
      %279 = vmatprep.subr.mxu0 0.0
      %280 = vmatpush2.msra.mxu0 0.0
      %281 = vmatprep.subr.mxu0 0.0
      %282 = vmatpush2.msra.mxu0 0.0
      %283 = vmatprep.subr.mxu0 0.0
      %284 = vmatpush2.msra.mxu0 0.0
      %285 = vmatprep.subr.mxu0 0.0
      %286 = vmatpush2.msra.mxu0 0.0
      %287 = vmatprep.subr.mxu0 0.0
      %288 = vmatpush2.msra.mxu0 0.0
      %289 = vmatprep.subr.mxu0 0.0
      %290 = vmatpush2.msra.mxu0 0.0
      %291 = vmatprep.subr.mxu0 0.0
      %292 = vmatpush2.msra.mxu0 0.0
      %293 = vmatprep.subr.mxu0 0.0
      %294 = vmatpush2.msra.mxu0 0.0
      %295 = vmatprep.mubr.f32.mxu0 0.0
      %296 = vmatmul.mubr.f32.gmra.mxu0 %v226
      %v297 = vpop.f32.mrf.mxu0
      %v298 = vadd.f32 %v222, %v297
      %v299 = vpop.f32.mrf.mxu0
      %300 = vdwg.mxu0
      %v301 = vld [vmem:[%s137 + $0x2] sm:$0xff]
      %s302 = scalar_lea.vmem %s1, 8
      %v303 = vld [vmem:[%s302] sm:$0xf]
      %v305 = vsel %vm147, %v301, 0
      %v308 = vsel %vm151, %v303, 0
      %310 = vmatprep.subr.mxu0 0.0
      %311 = vmatpush1.msra.mxu0 0.0
      %312 = vmatprep.subr.mxu0 0.0
      %313 = vmatpush1.msra.mxu0 0.0
      %314 = vmatprep.subr.mxu0 0.0
      %315 = vmatpush1.msra.mxu0 0.0
      %316 = vmatprep.subr.mxu0 0.0
      %317 = vmatpush1.msra.mxu0 0.0
      %318 = vmatprep.subr.mxu0 0.0
      %319 = vmatpush1.msra.mxu0 0.0
      %320 = vmatprep.subr.mxu0 0.0
      %321 = vmatpush1.msra.mxu0 0.0
      %322 = vmatprep.subr.mxu0 0.0
      %323 = vmatpush1.msra.mxu0 0.0
      %324 = vmatprep.subr.mxu0 0.0
      %325 = vmatpush1.msra.mxu0 0.0
      %326 = vmatprep.subr.mxu0 0.0
      %327 = vmatpush1.msra.mxu0 0.0
      %328 = vmatprep.subr.mxu0 0.0
      %329 = vmatpush1.msra.mxu0 0.0
      %330 = vmatprep.subr.mxu0 0.0
      %331 = vmatpush1.msra.mxu0 0.0
      %332 = vmatprep.subr.mxu0 0.0
      %333 = vmatpush1.msra.mxu0 0.0
      %334 = vmatprep.subr.mxu0 0.0
      %335 = vmatpush1.msra.mxu0 0.0
      %336 = vmatprep.subr.mxu0 0.0
      %337 = vmatpush1.msra.mxu0 0.0
      %338 = vmatprep.subr.mxu0 0.0
      %339 = vmatpush1.msra.mxu0 0.0
      %340 = vmatprep.subr.mxu0 0.0
      %341 = vmatpush1.msra.mxu0 %v308
      %342 = vmatprep.subr.mxu0 0.0
      %343 = vmatpush2.msra.mxu0 0.0
      %344 = vmatprep.subr.mxu0 0.0
      %345 = vmatpush2.msra.mxu0 0.0
      %346 = vmatprep.subr.mxu0 0.0
      %347 = vmatpush2.msra.mxu0 0.0
      %348 = vmatprep.subr.mxu0 0.0
      %349 = vmatpush2.msra.mxu0 0.0
      %350 = vmatprep.subr.mxu0 0.0
      %351 = vmatpush2.msra.mxu0 0.0
      %352 = vmatprep.subr.mxu0 0.0
      %353 = vmatpush2.msra.mxu0 0.0
      %354 = vmatprep.subr.mxu0 0.0
      %355 = vmatpush2.msra.mxu0 0.0
      %356 = vmatprep.subr.mxu0 0.0
      %357 = vmatpush2.msra.mxu0 0.0
      %358 = vmatprep.subr.mxu0 0.0
      %359 = vmatpush2.msra.mxu0 0.0
      %360 = vmatprep.subr.mxu0 0.0
      %361 = vmatpush2.msra.mxu0 0.0
      %362 = vmatprep.subr.mxu0 0.0
      %363 = vmatpush2.msra.mxu0 0.0
      %364 = vmatprep.subr.mxu0 0.0
      %365 = vmatpush2.msra.mxu0 0.0
      %366 = vmatprep.subr.mxu0 0.0
      %367 = vmatpush2.msra.mxu0 0.0
      %368 = vmatprep.subr.mxu0 0.0
      %369 = vmatpush2.msra.mxu0 0.0
      %370 = vmatprep.subr.mxu0 0.0
      %371 = vmatpush2.msra.mxu0 0.0
      %372 = vmatprep.subr.mxu0 0.0
      %373 = vmatpush2.msra.mxu0 0.0
      %374 = vmatprep.mubr.f32.mxu0 0.0
      %375 = vmatmul.mubr.f32.gmra.mxu0 %v305
      %v376 = vpop.f32.mrf.mxu0
      %v377 = vadd.f32 0.0, %v376
      %v378 = vpop.f32.mrf.mxu0
      %379 = vdwg.mxu0
      %v380 = vadd.f32 %v298, %v377
      %vm381 = vcmask 261120
      %382 = vst.msk [vmem:[%s141] sm:$0xff] %vm381, %v380
      %p383 = scmp.lt.s32.totalorder %s13, 1
      %s384 = scalar_select %p383, %s13, 1
      %s385 = smul.addr %s384, 8
      %s386 = scalar_lea.vmem %s2, %s385
      // Predicated region
      $region29: #{_lambda_.7} parent=27 // pred_check
        %p387 = pneg %p78
      $region30: #{_lambda_.7} parent=27 // pred_check_branch
        %389 = sbr.rel (%p387) target = $region32
      $region31: #{_lambda_.7} parent=27 // pred_region
        _
      $region32: #{_lambda_.7} parent=27 // pred_fallthru
        _
    $region28: #{_lambda_.7} parent=5 // pred_fallthru
      _
    %p390 = scmp.le.s32.totalorder 2, %s8
    // Predicated region
    $region33: #{_lambda_.7} parent=5 // pred_check
      %p391 = pneg %p390
    $region34: #{_lambda_.7} parent=5 // pred_check_branch
      %393 = sbr.rel (%p391) target = $region36
    $region35: #{_lambda_.7} parent=5 // pred_region
      %s394 = ssub.s32 %s8, 2
      // Predicated region
      $region37: #{_lambda_.7} parent=35 // pred_check
        %p395 = pneg %p84
      $region38: #{_lambda_.7} parent=35 // pred_check_branch
        %397 = sbr.rel (%p395) target = $region40
      $region39: #{_lambda_.7} parent=35 // pred_region
        %p398 = scmp.lt.s32.totalorder %s14, 1
        %s399 = scalar_select %p398, %s14, 1
        %s400 = smul.addr %s399, 8
        %s401 = scalar_lea.vmem %s2, %s400
      $region40: #{_lambda_.7} parent=35 // pred_fallthru
        _
    $region36: #{_lambda_.7} parent=5 // pred_fallthru
      _
  $region6: #{_lambda_.7} parent=0 // loop_footer
    %s12 = sadd.s32 1, %s8
  $region7: #{_lambda_.7} parent=0 // loop_footer_branch
    %7 = sbr.rel target = $region3
  $region8: #{_lambda_.7} parent=0 // loop_exit
    _

// kernel: _lambda_.8
$region0: #{_lambda_.8}
  #allocation0 [shape = 'u32[]', space=smem, size = 0x4, offset = 0x4, fixed_abs, tag = 'smem constant byte address 0x4 - core index']
  #allocation1 [shape = 'u32[144,128]{1,0:T(1,128)}', space=vmem, size = 0x12000, scoped, tag = 'internal scratch']
  #allocation2 [shape = 'f32[16,128]{1,0:T(8,128)}', space=vmem, size = 0x2000, scoped, tag = 'scratch operand']
  %s0 = inlined_call_operand.vmem [shape: f32[16,32], index: 0, kind: input, shape index: {}]
  %s1 = inlined_call_operand.vmem [shape: bf16[32,128], index: 1, kind: input, shape index: {}]
  %s2 = inlined_call_operand.vmem [shape: f32[16,128], index: 2, kind: output, shape index: {}]
  %s3 = sld [smem:[#allocation0]]
  $region26: #{_lambda_.8} parent=0
    _
  %s5 = ssub.s32 1, %s3
  %s6 = scalar_select 0, %s5, %s3
  // Predicated region
  $region2: #{_lambda_.8} parent=0 // pred_check
    _
  $region3: #{_lambda_.8} parent=0 // pred_check_branch
    %8 = sbr.rel (0) target = $region5
  $region4: #{_lambda_.8} parent=0 // pred_region
    _
  $region5: #{_lambda_.8} parent=0 // pred_fallthru
    _
  // Predicated region
  $region6: #{_lambda_.8} parent=0 // pred_check
    _
  $region7: #{_lambda_.8} parent=0 // pred_check_branch
    %10 = sbr.rel (0) target = $region9
  $region8: #{_lambda_.8} parent=0 // pred_region
    _
  $region9: #{_lambda_.8} parent=0 // pred_fallthru
    _
  %p12 = scmp.eq.s32.totalorder 0, 0
  // Predicated region
  $region10: #{_lambda_.8} parent=0 // pred_check
    %p13 = pneg %p12
  $region11: #{_lambda_.8} parent=0 // pred_check_branch
    %15 = sbr.rel (%p13) target = $region13
  $region12: #{_lambda_.8} parent=0 // pred_region
    %16 = vst [vmem:[#allocation2] sm:$0xff] 0.0
    %17 = vst [vmem:[#allocation2 + $0x8] sm:$0xff] 0.0
  $region13: #{_lambda_.8} parent=0 // pred_fallthru
    _
  %v18 = vld [vmem:[#allocation2] sm:$0xff]
  %v19 = vld [vmem:[#allocation2 + $0x8] sm:$0xff]
  %v20 = vld [vmem:[%s0] sm:$0xff]
  %v21 = vld [vmem:[%s0 + $0x8] sm:$0xff]
  %v22 = vpack.c.bf16 %v21, %v20
  %v23 = vld [vmem:[%s1] sm:$0xf]
  %v24 = vld [vmem:[%s1 + $0x4] sm:$0xf]
  %v25 = vld [vmem:[%s1 + $0x8] sm:$0xf]
  %v26 = vld [vmem:[%s1 + $0xc] sm:$0xf]
  %v31 = vunpack.c.l.b16 %v23
  %v32 = vunpack.c.l.b16 %v24
  %v33 = vunpack.c.l.b16 %v25
  %v34 = vunpack.c.l.b16 %v26
  %v35 = vpack.c.b16 %v32, %v31
  %v36 = vpack.c.b16 %v34, %v33
  %vm39 = vcmask 261120
  %v41 = vsel %vm39, %v22, 0
  %43 = vmatprep.subr.bf16.mxu0 0
  %44 = vmatpush1.bf16.msra.mxu0 0
  %45 = vmatprep.subr.bf16.mxu0 0
  %46 = vmatpush1.bf16.msra.mxu0 0
  %47 = vmatprep.subr.bf16.mxu0 0
  %48 = vmatpush1.bf16.msra.mxu0 0
  %49 = vmatprep.subr.bf16.mxu0 0
  %50 = vmatpush1.bf16.msra.mxu0 0
  %51 = vmatprep.subr.bf16.mxu0 0
  %52 = vmatpush1.bf16.msra.mxu0 0
  %53 = vmatprep.subr.bf16.mxu0 0
  %54 = vmatpush1.bf16.msra.mxu0 0
  %55 = vmatprep.subr.bf16.mxu0 0
  %56 = vmatpush1.bf16.msra.mxu0 %v36
  %57 = vmatprep.subr.bf16.mxu0 0
  %58 = vmatpush1.bf16.msra.mxu0 %v35
  %59 = vmatprep.subr.bf16.mxu0 0
  %60 = vmatpush2.bf16.msra.mxu0 0
  %61 = vmatprep.subr.bf16.mxu0 0
  %62 = vmatpush2.bf16.msra.mxu0 0
  %63 = vmatprep.subr.bf16.mxu0 0
  %64 = vmatpush2.bf16.msra.mxu0 0
  %65 = vmatprep.subr.bf16.mxu0 0
  %66 = vmatpush2.bf16.msra.mxu0 0
  %67 = vmatprep.subr.bf16.mxu0 0
  %68 = vmatpush2.bf16.msra.mxu0 0
  %69 = vmatprep.subr.bf16.mxu0 0
  %70 = vmatpush2.bf16.msra.mxu0 0
  %71 = vmatprep.subr.bf16.mxu0 0
  %72 = vmatpush2.bf16.msra.mxu0 0
  %73 = vmatprep.subr.bf16.mxu0 0
  %74 = vmatpush2.bf16.msra.mxu0 0
  %75 = vmatprep.mubr.bf16.mxu0 0
  %76 = vmatmul.mubr.bf16.gmra.mxu0 %v41
  %v77 = vpop.f32.mrf.mxu0
  %v78 = vadd.f32 0.0, %v77
  %v79 = vpop.f32.mrf.mxu0
  %v80 = vpop.f32.mrf.mxu0
  %v81 = vadd.f32 0.0, %v80
  %v82 = vpop.f32.mrf.mxu0
  %83 = vdwg.mxu0
  %v84 = vadd.f32 %v18, %v78
  %v85 = vadd.f32 %v19, %v81
  %86 = vst [vmem:[#allocation2] sm:$0xff] %v84
  %87 = vst [vmem:[#allocation2 + $0x8] sm:$0xff] %v85
  // Predicated region
  $region14: #{_lambda_.8} parent=0 // pred_check
    %p88 = pneg %p12
  $region15: #{_lambda_.8} parent=0 // pred_check_branch
    %90 = sbr.rel (%p88) target = $region17
  $region16: #{_lambda_.8} parent=0 // pred_region
    %v91 = vld [vmem:[#allocation2] sm:$0xff]
    %v92 = vld [vmem:[#allocation2 + $0x8] sm:$0xff]
    %93 = vst [vmem:[%s2] sm:$0xff] %v91
    %94 = vst [vmem:[%s2 + $0x8] sm:$0xff] %v92
  $region17: #{_lambda_.8} parent=0 // pred_fallthru
    _
  // Predicated region
  $region18: #{_lambda_.8} parent=0 // pred_check
    _
  $region19: #{_lambda_.8} parent=0 // pred_check_branch
    %96 = sbr.rel (0) target = $region21
  $region20: #{_lambda_.8} parent=0 // pred_region
    _
  $region21: #{_lambda_.8} parent=0 // pred_fallthru
    _
  // Predicated region
  $region22: #{_lambda_.8} parent=0 // pred_check
    _
  $region23: #{_lambda_.8} parent=0 // pred_check_branch
    %98 = sbr.rel (0) target = $region25
  $region24: #{_lambda_.8} parent=0 // pred_region
    _
  $region25: #{_lambda_.8} parent=0 // pred_fallthru
    _

// kernel: _lambda_.9
$region0: #{_lambda_.9}
  #allocation0 [shape = 'u32[]', space=smem, size = 0x4, offset = 0x4, fixed_abs, tag = 'smem constant byte address 0x4 - core index']
  #allocation1 [shape = 'u32[144,128]{1,0:T(1,128)}', space=vmem, size = 0x12000, scoped, tag = 'internal scratch']
  %s0 = inlined_call_operand.vmem [shape: f32[2,11,64], index: 0, kind: input, shape index: {}]
  %s1 = inlined_call_operand.vmem [shape: f32[4,64], index: 1, kind: input, shape index: {}]
  %s2 = inlined_call_operand.vmem [shape: f32[1,64], index: 2, kind: input, shape index: {}]
  %s3 = inlined_call_operand.vmem [shape: f32[2,8,64], index: 3, kind: output, shape index: {}]
  %s4 = sld [smem:[#allocation0]]
  $region45: #{_lambda_.9} parent=0
    _
  %s6 = ssub.s32 1, %s4
  %s7 = scalar_select 0, %s6, %s4
  loop: start=0, step=1, limit=4
  $region2: #{_lambda_.9} parent=0 // loop_pre_header
    _
  $region3: #{_lambda_.9} parent=0 // loop_header
    %s9 = sphi 0, %s13
    %p10 = scmp.ge.s32.totalorder %s9, 4
    %s19 = sphi 0, %s21
    %s22 = sphi 0, %s19
    %s23 = sphi 0, %s22
    %s39 = sphi 0, %s23
    %s43 = sphi 0, %s43
    %s45 = sphi 0, %s43
    %s46 = sphi 0, %s45
    %s60 = sphi 0, %s46
    %s64 = sphi 0, %s64
    %s66 = sphi 0, %s64
    %s67 = sphi 0, %s66
    %s81 = sphi 0, %s67
    %s87 = sphi 0, %s89
    %s90 = sphi 0, %s87
    %s91 = sphi 0, %s90
    %s107 = sphi 0, %s91
  $region4: #{_lambda_.9} parent=0 // loop_header_branch
    %12 = sbr.rel (%p10) target = $region8
  $region5: #{_lambda_.9} parent=0 // loop_body
    %s14 = ssub.s32 %s9, 1
    %s15 = ssub.s32 %s9, 2
    %s16 = sadd.s32 %s9, 1
    %s17 = ssub.s32 %s9, %s16
    %p18 = scmp.eq.s32.totalorder %s17, 0
    %s20 = sadd.s32 %s19, 1
    %s21 = scalar_select %p18, %s19, %s20
    %p24 = pneg %p18
    %p25 = scmp.eq.s32.totalorder %s9, 1
    %p26 = por %p24, %p25
    %p27 = scmp.ne.s32.totalorder %s19, %s22
    %p28 = scmp.eq.s32.totalorder %s9, 0
    %p29 = por %p27, %p28
    %p30 = scmp.ne.s32.totalorder %s19, %s22
    %p31 = scmp.eq.s32.totalorder %s14, 1
    %p32 = por %p30, %p31
    %p33 = scmp.ne.s32.totalorder %s22, %s23
    %p34 = scmp.eq.s32.totalorder %s14, 0
    %p35 = por %p33, %p34
    %p36 = scmp.ne.s32.totalorder %s22, %s23
    %p37 = scmp.eq.s32.totalorder %s15, 1
    %p38 = por %p36, %p37
    %p40 = scmp.ne.s32.totalorder %s23, %s39
    %p41 = scmp.eq.s32.totalorder %s15, 0
    %p42 = por %p40, %p41
    %s44 = sadd.s32 %s43, 1
    %p47 = scmp.eq.s32.totalorder %s9, 1
    %p48 = scmp.ne.s32.totalorder %s43, %s45
    %p49 = scmp.eq.s32.totalorder %s9, 0
    %p50 = por %p48, %p49
    %p51 = scmp.ne.s32.totalorder %s43, %s45
    %p52 = scmp.eq.s32.totalorder %s14, 1
    %p53 = por %p51, %p52
    %p54 = scmp.ne.s32.totalorder %s45, %s46
    %p55 = scmp.eq.s32.totalorder %s14, 0
    %p56 = por %p54, %p55
    %p57 = scmp.ne.s32.totalorder %s45, %s46
    %p58 = scmp.eq.s32.totalorder %s15, 1
    %p59 = por %p57, %p58
    %p61 = scmp.ne.s32.totalorder %s46, %s60
    %p62 = scmp.eq.s32.totalorder %s15, 0
    %p63 = por %p61, %p62
    %s65 = sadd.s32 %s64, 1
    %p68 = scmp.eq.s32.totalorder %s9, 1
    %p69 = scmp.ne.s32.totalorder %s64, %s66
    %p70 = scmp.eq.s32.totalorder %s9, 0
    %p71 = por %p69, %p70
    %p72 = scmp.ne.s32.totalorder %s64, %s66
    %p73 = scmp.eq.s32.totalorder %s14, 1
    %p74 = por %p72, %p73
    %p75 = scmp.ne.s32.totalorder %s66, %s67
    %p76 = scmp.eq.s32.totalorder %s14, 0
    %p77 = por %p75, %p76
    %p78 = scmp.ne.s32.totalorder %s66, %s67
    %p79 = scmp.eq.s32.totalorder %s15, 1
    %p80 = por %p78, %p79
    %p82 = scmp.ne.s32.totalorder %s67, %s81
    %p83 = scmp.eq.s32.totalorder %s15, 0
    %p84 = por %p82, %p83
    %s85 = ssub.s32 %s9, %s16
    %p86 = scmp.eq.s32.totalorder %s85, 0
    %s88 = sadd.s32 %s87, 1
    %s89 = scalar_select %p86, %s87, %s88
    %p92 = pneg %p86
    %p93 = scmp.eq.s32.totalorder %s9, 1
    %p94 = por %p92, %p93
    %p95 = scmp.ne.s32.totalorder %s87, %s90
    %p96 = scmp.eq.s32.totalorder %s9, 0
    %p97 = por %p95, %p96
    %p98 = scmp.ne.s32.totalorder %s87, %s90
    %p99 = scmp.eq.s32.totalorder %s14, 1
    %p100 = por %p98, %p99
    %p101 = scmp.ne.s32.totalorder %s90, %s91
    %p102 = scmp.eq.s32.totalorder %s14, 0
    %p103 = por %p101, %p102
    %p104 = scmp.ne.s32.totalorder %s90, %s91
    %p105 = scmp.eq.s32.totalorder %s15, 1
    %p106 = por %p104, %p105
    %p108 = scmp.ne.s32.totalorder %s91, %s107
    %p109 = scmp.eq.s32.totalorder %s15, 0
    %p110 = por %p108, %p109
    %p111 = scmp.le.s32.totalorder 1, %s9
    %p112 = scmp.lt.s32.totalorder %s9, 3
    %p113 = pnand %p111, %p112
    %p114 = pneg %p113
    // Predicated region
    $region9: #{_lambda_.9} parent=5 // pred_check
      _
    $region10: #{_lambda_.9} parent=5 // pred_check_branch
      %116 = sbr.rel (%p113) target = $region12
    $region11: #{_lambda_.9} parent=5 // pred_region
      %s117 = ssub.s32 %s9, 1
      // Predicated region
      $region13: #{_lambda_.9} parent=11 // pred_check
        %p118 = pneg %p56
      $region14: #{_lambda_.9} parent=11 // pred_check_branch
        %120 = sbr.rel (%p118) target = $region16
      $region15: #{_lambda_.9} parent=11 // pred_region
        _
      $region16: #{_lambda_.9} parent=11 // pred_fallthru
        _
      // Predicated region
      $region17: #{_lambda_.9} parent=11 // pred_check
        %p121 = pneg %p77
      $region18: #{_lambda_.9} parent=11 // pred_check_branch
        %123 = sbr.rel (%p121) target = $region20
      $region19: #{_lambda_.9} parent=11 // pred_region
        _
      $region20: #{_lambda_.9} parent=11 // pred_fallthru
        _
    $region12: #{_lambda_.9} parent=5 // pred_fallthru
      _
    %p124 = scmp.lt.s32.totalorder %s9, 2
    // Predicated region
    $region21: #{_lambda_.9} parent=5 // pred_check
      %p125 = pneg %p124
    $region22: #{_lambda_.9} parent=5 // pred_check_branch
      %127 = sbr.rel (%p125) target = $region24
    $region23: #{_lambda_.9} parent=5 // pred_region
      // Predicated region
      $region25: #{_lambda_.9} parent=23 // pred_check
        %p128 = pneg %p29
      $region26: #{_lambda_.9} parent=23 // pred_check_branch
        %130 = sbr.rel (%p128) target = $region28
      $region27: #{_lambda_.9} parent=23 // pred_region
        %p131 = scmp.lt.s32.totalorder %s9, 1
        %s132 = scalar_select %p131, %s9, 1
        %s133 = smul.addr %s132, 2
        %s134 = smul.addr %s133, 8
        %s135 = scalar_lea.vmem %s0, %s134
      $region28: #{_lambda_.9} parent=23 // pred_fallthru
        _
    $region24: #{_lambda_.9} parent=5 // pred_fallthru
      _
    %p136 = scmp.le.s32.totalorder 1, %s9
    %p137 = scmp.lt.s32.totalorder %s9, 3
    %p138 = pnand %p136, %p137
    %p139 = pneg %p138
    // Predicated region
    $region29: #{_lambda_.9} parent=5 // pred_check
      _
    $region30: #{_lambda_.9} parent=5 // pred_check_branch
      %141 = sbr.rel (%p138) target = $region32
    $region31: #{_lambda_.9} parent=5 // pred_region
      %s142 = ssub.s32 %s9, 1
      %p143 = scmp.lt.s32.totalorder %s14, 1
      %s144 = scalar_select %p143, %s14, 1
      %s145 = smul.addr %s144, 2
      %s146 = smul.addr %s145, 8
      %s147 = scalar_lea.vmem %s0, %s146
      %p148 = pneg %p35
      %p149 = pneg %p32
      %p150 = pneg %p56
      %p151 = pneg %p53
      %p152 = pneg %p77
      %p153 = pneg %p74
      %p154 = pneg %p103
      %p155 = pneg %p100
      %p156 = scmp.lt.s32.totalorder %s14, 1
      %s157 = scalar_select %p156, %s14, 1
      %s158 = smul.addr %s157, 8
      %s159 = scalar_lea.vmem %s3, %s158
      %p160 = scmp.lt.s32.totalorder %s14, 1
      %s161 = scalar_select %p160, %s14, 1
      %s162 = smul.addr %s161, 2
      %s163 = smul.addr %s162, 8
      %s164 = scalar_lea.vmem %s0, %s163
      %p165 = scmp.lt.s32.totalorder %s14, 1
      %s166 = scalar_select %p165, %s14, 1
      %s167 = smul.addr %s166, 8
      %s168 = scalar_lea.vmem %s3, %s167
      %v169 = vld [vmem:[%s164] sm:$0xff]
      %v170 = vld [vmem:[%s1] sm:$0x1]
      %v171 = vlaneseq
      %v172 = vshrl.u32 %v171, 7
      %v173 = vsub.s32 0, %v172
      %v174 = vrot.slane %v170, %v173
      %v175 = vmul.f32 %v169, %v174
      %v176 = vadd.f32 %v175, 0.0
      %v177 = vld [vmem:[%s164 + $0x1] sm:$0xff]
      %v178 = vld [vmem:[%s1 + $0x1] sm:$0x1]
      %v179 = vlaneseq
      %v180 = vshrl.u32 %v179, 7
      %v181 = vsub.s32 0, %v180
      %v182 = vrot.slane %v178, %v181
      %v183 = vmul.f32 %v177, %v182
      %v184 = vadd.f32 %v176, %v183
      %v185 = vld [vmem:[%s164 + $0x2] sm:$0xff]
      %v186 = vld [vmem:[%s1 + $0x2] sm:$0x1]
      %v187 = vlaneseq
      %v188 = vshrl.u32 %v187, 7
      %v189 = vsub.s32 0, %v188
      %v190 = vrot.slane %v186, %v189
      %v191 = vmul.f32 %v185, %v190
      %v192 = vadd.f32 %v184, %v191
      %v193 = vld [vmem:[%s164 + $0x3] sm:$0xff]
      %v194 = vld [vmem:[%s1 + $0x3] sm:$0x1]
      %v195 = vlaneseq
      %v196 = vshrl.u32 %v195, 7
      %v197 = vsub.s32 0, %v196
      %v198 = vrot.slane %v194, %v197
      %v199 = vmul.f32 %v193, %v198
      %v200 = vadd.f32 %v192, %v199
      %v201 = vld [vmem:[%s2] sm:$0x1]
      %v203 = vlaneseq
      %v204 = vshrl.u32 %v203, 7
      %v205 = vsub.s32 0, %v204
      %v206 = vrot.slane %v201, %v205
      %v208 = vadd.f32 %v200, %v206
      %v209 = vxor.u32 %v208, 2147483648
      %v210 = vmul.f32 %v209, 1.442695
      %v211 = vpow.pop %v210
      %v212 = vadd.f32 %v211, 1.0
      %v213 = vrcp.pop %v212
      %v214 = vmul.f32 1.0, %v213
      %v215 = vmul.f32 %v208, %v214
      %vm216 = vcmask 523264
      %217 = vst.msk [vmem:[%s168] sm:$0xff] %vm216, %v215
      %p218 = scmp.lt.s32.totalorder %s14, 1
      %s219 = scalar_select %p218, %s14, 1
      %s220 = smul.addr %s219, 8
      %s221 = scalar_lea.vmem %s3, %s220
      // Predicated region
      $region33: #{_lambda_.9} parent=31 // pred_check
        %p222 = pneg %p100
      $region34: #{_lambda_.9} parent=31 // pred_check_branch
        %224 = sbr.rel (%p222) target = $region36
      $region35: #{_lambda_.9} parent=31 // pred_region
        _
      $region36: #{_lambda_.9} parent=31 // pred_fallthru
        _
    $region32: #{_lambda_.9} parent=5 // pred_fallthru
      _
    %p225 = scmp.le.s32.totalorder 2, %s9
    // Predicated region
    $region37: #{_lambda_.9} parent=5 // pred_check
      %p226 = pneg %p225
    $region38: #{_lambda_.9} parent=5 // pred_check_branch
      %228 = sbr.rel (%p226) target = $region40
    $region39: #{_lambda_.9} parent=5 // pred_region
      %s229 = ssub.s32 %s9, 2
      // Predicated region
      $region41: #{_lambda_.9} parent=39 // pred_check
        %p230 = pneg %p106
      $region42: #{_lambda_.9} parent=39 // pred_check_branch
        %232 = sbr.rel (%p230) target = $region44
      $region43: #{_lambda_.9} parent=39 // pred_region
        %p233 = scmp.lt.s32.totalorder %s15, 1
        %s234 = scalar_select %p233, %s15, 1
        %s235 = smul.addr %s234, 8
        %s236 = scalar_lea.vmem %s3, %s235
      $region44: #{_lambda_.9} parent=39 // pred_fallthru
        _
    $region40: #{_lambda_.9} parent=5 // pred_fallthru
      _
  $region6: #{_lambda_.9} parent=0 // loop_footer
    %s13 = sadd.s32 1, %s9
  $region7: #{_lambda_.9} parent=0 // loop_footer_branch
    %8 = sbr.rel target = $region3
  $region8: #{_lambda_.9} parent=0 // loop_exit
    _

// kernel: _lambda_.12
$region0: #{_lambda_.12}
  #allocation0 [shape = 'u32[]', space=smem, size = 0x4, offset = 0x4, fixed_abs, tag = 'smem constant byte address 0x4 - core index']
  #allocation1 [shape = 'u32[144,128]{1,0:T(1,128)}', space=vmem, size = 0x12000, scoped, tag = 'internal scratch']
  %s0 = inlined_call_operand.vmem [shape: f32[16,64], index: 0, kind: input, shape index: {}]
  %s1 = inlined_call_operand.vmem [shape: bf16[64,32], index: 1, kind: input, shape index: {}]
  %s2 = inlined_call_operand.vmem [shape: f32[1,32], index: 2, kind: input, shape index: {}]
  %s3 = inlined_call_operand.vmem [shape: f32[1,32], index: 3, kind: input, shape index: {}]
  %s4 = inlined_call_operand.vmem [shape: f32[16,32], index: 4, kind: output, shape index: {}]
  %s5 = sld [smem:[#allocation0]]
  $region26: #{_lambda_.12} parent=0
    _
  %s7 = ssub.s32 1, %s5
  %s8 = scalar_select 0, %s7, %s5
  // Predicated region
  $region2: #{_lambda_.12} parent=0 // pred_check
    _
  $region3: #{_lambda_.12} parent=0 // pred_check_branch
    %10 = sbr.rel (0) target = $region5
  $region4: #{_lambda_.12} parent=0 // pred_region
    _
  $region5: #{_lambda_.12} parent=0 // pred_fallthru
    _
  // Predicated region
  $region6: #{_lambda_.12} parent=0 // pred_check
    _
  $region7: #{_lambda_.12} parent=0 // pred_check_branch
    %12 = sbr.rel (0) target = $region9
  $region8: #{_lambda_.12} parent=0 // pred_region
    _
  $region9: #{_lambda_.12} parent=0 // pred_fallthru
    _
  // Predicated region
  $region10: #{_lambda_.12} parent=0 // pred_check
    _
  $region11: #{_lambda_.12} parent=0 // pred_check_branch
    %14 = sbr.rel (0) target = $region13
  $region12: #{_lambda_.12} parent=0 // pred_region
    _
  $region13: #{_lambda_.12} parent=0 // pred_fallthru
    _
  // Predicated region
  $region14: #{_lambda_.12} parent=0 // pred_check
    _
  $region15: #{_lambda_.12} parent=0 // pred_check_branch
    %16 = sbr.rel (0) target = $region17
  $region16: #{_lambda_.12} parent=0 // pred_region
    _
  $region17: #{_lambda_.12} parent=0 // pred_fallthru
    _
  %v18 = vld [vmem:[%s0] sm:$0xff]
  %v19 = vld [vmem:[%s0 + $0x8] sm:$0xff]
  %v20 = vpack.c.bf16 %v19, %v18
  %v21 = vld [vmem:[%s1] sm:$0xf]
  %v22 = vld [vmem:[%s1 + $0x4] sm:$0xf]
  %v23 = vld [vmem:[%s1 + $0x8] sm:$0xf]
  %v24 = vld [vmem:[%s1 + $0xc] sm:$0xf]
  %v25 = vld [vmem:[%s1 + $0x10] sm:$0xf]
  %v26 = vld [vmem:[%s1 + $0x14] sm:$0xf]
  %v27 = vld [vmem:[%s1 + $0x18] sm:$0xf]
  %v28 = vld [vmem:[%s1 + $0x1c] sm:$0xf]
  %v37 = vunpack.c.l.b16 %v21
  %v38 = vunpack.c.l.b16 %v22
  %v39 = vunpack.c.l.b16 %v23
  %v40 = vunpack.c.l.b16 %v24
  %v41 = vunpack.c.l.b16 %v25
  %v42 = vunpack.c.l.b16 %v26
  %v43 = vunpack.c.l.b16 %v27
  %v44 = vunpack.c.l.b16 %v28
  %v45 = vpack.c.b16 %v38, %v37
  %v46 = vpack.c.b16 %v40, %v39
  %v47 = vpack.c.b16 %v42, %v41
  %v48 = vpack.c.b16 %v44, %v43
  %vm53 = vcmask 523264
  %v55 = vsel %vm53, %v20, 0
  %57 = vmatprep.subr.bf16.mxu0 0
  %58 = vmatpush1.bf16.msra.mxu0 0
  %59 = vmatprep.subr.bf16.mxu0 0
  %60 = vmatpush1.bf16.msra.mxu0 0
  %61 = vmatprep.subr.bf16.mxu0 0
  %62 = vmatpush1.bf16.msra.mxu0 0
  %63 = vmatprep.subr.bf16.mxu0 0
  %64 = vmatpush1.bf16.msra.mxu0 0
  %65 = vmatprep.subr.bf16.mxu0 0
  %66 = vmatpush1.bf16.msra.mxu0 %v48
  %67 = vmatprep.subr.bf16.mxu0 0
  %68 = vmatpush1.bf16.msra.mxu0 %v47
  %69 = vmatprep.subr.bf16.mxu0 0
  %70 = vmatpush1.bf16.msra.mxu0 %v46
  %71 = vmatprep.subr.bf16.mxu0 0
  %72 = vmatpush1.bf16.msra.mxu0 %v45
  %73 = vmatprep.subr.bf16.mxu0 0
  %74 = vmatpush2.bf16.msra.mxu0 0
  %75 = vmatprep.subr.bf16.mxu0 0
  %76 = vmatpush2.bf16.msra.mxu0 0
  %77 = vmatprep.subr.bf16.mxu0 0
  %78 = vmatpush2.bf16.msra.mxu0 0
  %79 = vmatprep.subr.bf16.mxu0 0
  %80 = vmatpush2.bf16.msra.mxu0 0
  %81 = vmatprep.subr.bf16.mxu0 0
  %82 = vmatpush2.bf16.msra.mxu0 0
  %83 = vmatprep.subr.bf16.mxu0 0
  %84 = vmatpush2.bf16.msra.mxu0 0
  %85 = vmatprep.subr.bf16.mxu0 0
  %86 = vmatpush2.bf16.msra.mxu0 0
  %87 = vmatprep.subr.bf16.mxu0 0
  %88 = vmatpush2.bf16.msra.mxu0 0
  %89 = vmatprep.mubr.bf16.mxu0 0
  %90 = vmatmul.mubr.bf16.gmra.mxu0 %v55
  %v91 = vpop.f32.mrf.mxu0
  %v92 = vadd.f32 0.0, %v91
  %v93 = vpop.f32.mrf.mxu0
  %v94 = vpop.f32.mrf.mxu0
  %v95 = vadd.f32 0.0, %v94
  %v96 = vpop.f32.mrf.mxu0
  %97 = vdwg.mxu0
  %vm98 = vcmask 261120
  %v99 = vsel %vm98, %v92, 0.0
  %100 = vadd.xlane.f32.xlu0 %v99
  %v101 = vpop.xlane.xlu0 %100
  %v102 = vsel %vm98, %v95, 0.0
  %103 = vadd.xlane.f32.xlu0 %v102
  %v104 = vpop.xlane.xlu0 %103
  %v105 = vrcp.pop 32.0
  %v106 = vmul.f32 %v101, %v105
  %v107 = vmul.f32 %v104, %v105
  %v108 = vsub.f32 %v92, %v106
  %v109 = vsub.f32 %v95, %v107
  %v110 = vmul.f32 %v108, %v108
  %v111 = vmul.f32 %v109, %v109
  %v112 = vsel %vm98, %v110, 0.0
  %113 = vadd.xlane.f32.xlu0 %v112
  %v114 = vpop.xlane.xlu0 %113
  %v115 = vsel %vm98, %v111, 0.0
  %116 = vadd.xlane.f32.xlu0 %v115
  %v117 = vpop.xlane.xlu0 %116
  %v118 = vmul.f32 %v114, %v105
  %v119 = vmul.f32 %v117, %v105
  %v120 = vadd.f32 %v118, 1e-05
  %v121 = vadd.f32 %v119, 1e-05
  %v122 = vrsqrt.pop %v120
  %v123 = vrsqrt.pop %v121
  %v124 = vmul.f32 %v108, %v122
  %v125 = vmul.f32 %v109, %v123
  %v126 = vld [vmem:[%s2] sm:$0x1]
  %v128 = vlaneseq
  %v129 = vshrl.u32 %v128, 7
  %v130 = vsub.s32 0, %v129
  %v131 = vrot.slane %v126, %v130
  %v133 = vmul.f32 %v124, %v131
  %v134 = vmul.f32 %v125, %v131
  %v135 = vld [vmem:[%s3] sm:$0x1]
  %v137 = vlaneseq
  %v138 = vshrl.u32 %v137, 7
  %v139 = vsub.s32 0, %v138
  %v140 = vrot.slane %v135, %v139
  %v142 = vadd.f32 %v133, %v140
  %v143 = vadd.f32 %v134, %v140
  %144 = vst.msk [vmem:[%s4] sm:$0xff] %vm98, %v142
  %145 = vst.msk [vmem:[%s4 + $0x8] sm:$0xff] %vm98, %v143
  // Predicated region
  $region18: #{_lambda_.12} parent=0 // pred_check
    _
  $region19: #{_lambda_.12} parent=0 // pred_check_branch
    %147 = sbr.rel (0) target = $region21
  $region20: #{_lambda_.12} parent=0 // pred_region
    _
  $region21: #{_lambda_.12} parent=0 // pred_fallthru
    _
  // Predicated region
  $region22: #{_lambda_.12} parent=0 // pred_check
    _
  $region23: #{_lambda_.12} parent=0 // pred_check_branch
    %149 = sbr.rel (0) target = $region25
  $region24: #{_lambda_.12} parent=0 // pred_region
    _
  $region25: #{_lambda_.12} parent=0 // pred_fallthru
    _

// kernel: _lambda_.13
$region0: #{_lambda_.13}
  #allocation0 [shape = 'u32[]', space=smem, size = 0x4, offset = 0x4, fixed_abs, tag = 'smem constant byte address 0x4 - core index']
  #allocation1 [shape = 'u32[144,128]{1,0:T(1,128)}', space=vmem, size = 0x12000, scoped, tag = 'internal scratch']
  #allocation2 [shape = 'f32[16,4]{1,0:T(8,128)}', space=vmem, size = 0x2000, scoped, tag = 'scratch operand']
  %s0 = inlined_call_operand.vmem [shape: f32[16,32], index: 0, kind: input, shape index: {}]
  %s1 = inlined_call_operand.vmem [shape: bf16[32,4], index: 1, kind: input, shape index: {}]
  %s2 = inlined_call_operand.vmem [shape: f32[16,4], index: 2, kind: output, shape index: {}]
  %s3 = sld [smem:[#allocation0]]
  $region26: #{_lambda_.13} parent=0
    _
  %s5 = ssub.s32 1, %s3
  %s6 = scalar_select 0, %s5, %s3
  // Predicated region
  $region2: #{_lambda_.13} parent=0 // pred_check
    _
  $region3: #{_lambda_.13} parent=0 // pred_check_branch
    %8 = sbr.rel (0) target = $region5
  $region4: #{_lambda_.13} parent=0 // pred_region
    _
  $region5: #{_lambda_.13} parent=0 // pred_fallthru
    _
  // Predicated region
  $region6: #{_lambda_.13} parent=0 // pred_check
    _
  $region7: #{_lambda_.13} parent=0 // pred_check_branch
    %10 = sbr.rel (0) target = $region9
  $region8: #{_lambda_.13} parent=0 // pred_region
    _
  $region9: #{_lambda_.13} parent=0 // pred_fallthru
    _
  %p12 = scmp.eq.s32.totalorder 0, 0
  // Predicated region
  $region10: #{_lambda_.13} parent=0 // pred_check
    %p13 = pneg %p12
  $region11: #{_lambda_.13} parent=0 // pred_check_branch
    %15 = sbr.rel (%p13) target = $region13
  $region12: #{_lambda_.13} parent=0 // pred_region
    %vm16 = vcmask 31744
    %17 = vst.msk [vmem:[#allocation2] sm:$0xff] %vm16, 0.0
    %18 = vst.msk [vmem:[#allocation2 + $0x8] sm:$0xff] %vm16, 0.0
  $region13: #{_lambda_.13} parent=0 // pred_fallthru
    _
  %v19 = vld [vmem:[#allocation2] sm:$0xff]
  %v20 = vld [vmem:[#allocation2 + $0x8] sm:$0xff]
  %v21 = vld [vmem:[%s0] sm:$0xff]
  %v22 = vld [vmem:[%s0 + $0x8] sm:$0xff]
  %v23 = vpack.c.bf16 %v22, %v21
  %v24 = vld [vmem:[%s1] sm:$0xf]
  %v25 = vld [vmem:[%s1 + $0x4] sm:$0xf]
  %v26 = vld [vmem:[%s1 + $0x8] sm:$0xf]
  %v27 = vld [vmem:[%s1 + $0xc] sm:$0xf]
  %v32 = vunpack.c.l.b16 %v24
  %v33 = vunpack.c.l.b16 %v25
  %v34 = vunpack.c.l.b16 %v26
  %v35 = vunpack.c.l.b16 %v27
  %v36 = vpack.c.b16 %v33, %v32
  %v37 = vpack.c.b16 %v35, %v34
  %vm40 = vcmask 261120
  %v42 = vsel %vm40, %v23, 0
  %44 = vmatprep.subr.bf16.mxu0 0
  %45 = vmatpush1.bf16.msra.mxu0 0
  %46 = vmatprep.subr.bf16.mxu0 0
  %47 = vmatpush1.bf16.msra.mxu0 0
  %48 = vmatprep.subr.bf16.mxu0 0
  %49 = vmatpush1.bf16.msra.mxu0 0
  %50 = vmatprep.subr.bf16.mxu0 0
  %51 = vmatpush1.bf16.msra.mxu0 0
  %52 = vmatprep.subr.bf16.mxu0 0
  %53 = vmatpush1.bf16.msra.mxu0 0
  %54 = vmatprep.subr.bf16.mxu0 0
  %55 = vmatpush1.bf16.msra.mxu0 0
  %56 = vmatprep.subr.bf16.mxu0 0
  %57 = vmatpush1.bf16.msra.mxu0 %v37
  %58 = vmatprep.subr.bf16.mxu0 0
  %59 = vmatpush1.bf16.msra.mxu0 %v36
  %60 = vmatprep.subr.bf16.mxu0 0
  %61 = vmatpush2.bf16.msra.mxu0 0
  %62 = vmatprep.subr.bf16.mxu0 0
  %63 = vmatpush2.bf16.msra.mxu0 0
  %64 = vmatprep.subr.bf16.mxu0 0
  %65 = vmatpush2.bf16.msra.mxu0 0
  %66 = vmatprep.subr.bf16.mxu0 0
  %67 = vmatpush2.bf16.msra.mxu0 0
  %68 = vmatprep.subr.bf16.mxu0 0
  %69 = vmatpush2.bf16.msra.mxu0 0
  %70 = vmatprep.subr.bf16.mxu0 0
  %71 = vmatpush2.bf16.msra.mxu0 0
  %72 = vmatprep.subr.bf16.mxu0 0
  %73 = vmatpush2.bf16.msra.mxu0 0
  %74 = vmatprep.subr.bf16.mxu0 0
  %75 = vmatpush2.bf16.msra.mxu0 0
  %76 = vmatprep.mubr.bf16.mxu0 0
  %77 = vmatmul.mubr.bf16.gmra.mxu0 %v42
  %v78 = vpop.f32.mrf.mxu0
  %v79 = vadd.f32 0.0, %v78
  %v80 = vpop.f32.mrf.mxu0
  %v81 = vpop.f32.mrf.mxu0
  %v82 = vadd.f32 0.0, %v81
  %v83 = vpop.f32.mrf.mxu0
  %84 = vdwg.mxu0
  %v85 = vadd.f32 %v19, %v79
  %v86 = vadd.f32 %v20, %v82
  %vm87 = vcmask 31744
  %88 = vst.msk [vmem:[#allocation2] sm:$0xff] %vm87, %v85
  %89 = vst.msk [vmem:[#allocation2 + $0x8] sm:$0xff] %vm87, %v86
  // Predicated region
  $region14: #{_lambda_.13} parent=0 // pred_check
    %p90 = pneg %p12
  $region15: #{_lambda_.13} parent=0 // pred_check_branch
    %92 = sbr.rel (%p90) target = $region17
  $region16: #{_lambda_.13} parent=0 // pred_region
    %v93 = vld [vmem:[#allocation2] sm:$0xff]
    %v94 = vld [vmem:[#allocation2 + $0x8] sm:$0xff]
    %95 = vst.msk [vmem:[%s2] sm:$0xff] %vm87, %v93
    %96 = vst.msk [vmem:[%s2 + $0x8] sm:$0xff] %vm87, %v94
  $region17: #{_lambda_.13} parent=0 // pred_fallthru
    _
  // Predicated region
  $region18: #{_lambda_.13} parent=0 // pred_check
    _
  $region19: #{_lambda_.13} parent=0 // pred_check_branch
    %98 = sbr.rel (0) target = $region21
  $region20: #{_lambda_.13} parent=0 // pred_region
    _
  $region21: #{_lambda_.13} parent=0 // pred_fallthru
    _
  // Predicated region
  $region22: #{_lambda_.13} parent=0 // pred_check
    _
  $region23: #{_lambda_.13} parent=0 // pred_check_branch
    %100 = sbr.rel (0) target = $region25
  $region24: #{_lambda_.13} parent=0 // pred_region
    _
  $region25: #{_lambda_.13} parent=0 // pred_fallthru
    _

// kernel: _lambda_.11
$region0: #{_lambda_.11}
  #allocation0 [shape = 'u32[]', space=smem, size = 0x4, offset = 0x4, fixed_abs, tag = 'smem constant byte address 0x4 - core index']
  #allocation1 [shape = 'u32[144,128]{1,0:T(1,128)}', space=vmem, size = 0x12000, scoped, tag = 'internal scratch']
  %s0 = inlined_call_operand.vmem [shape: f32[2,8,64], index: 0, kind: input, shape index: {}]
  %s1 = inlined_call_operand.vmem [shape: f32[2,8,64], index: 1, kind: input, shape index: {}]
  %s2 = inlined_call_operand.vmem [shape: f32[2,8,64], index: 2, kind: input, shape index: {}]
  %s3 = inlined_call_operand.vmem [shape: f32[2,8,16], index: 3, kind: input, shape index: {}]
  %s4 = inlined_call_operand.vmem [shape: f32[2,8,16], index: 4, kind: input, shape index: {}]
  %s5 = inlined_call_operand.vmem [shape: f32[16,64], index: 5, kind: input, shape index: {}]
  %s6 = inlined_call_operand.vmem [shape: f32[1,64], index: 6, kind: input, shape index: {}]
  %s7 = inlined_call_operand.vmem [shape: f32[2,8,64], index: 7, kind: output, shape index: {}]
  %s8 = sld [smem:[#allocation0]]
  $region61: #{_lambda_.11} parent=0
    _
  %s10 = ssub.s32 1, %s8
  %s11 = scalar_select 0, %s10, %s8
  loop: start=0, step=1, limit=4
  $region2: #{_lambda_.11} parent=0 // loop_pre_header
    _
  $region3: #{_lambda_.11} parent=0 // loop_header
    %s13 = sphi 0, %s17
    %p14 = scmp.ge.s32.totalorder %s13, 4
    %s23 = sphi 0, %s25
    %s26 = sphi 0, %s23
    %s27 = sphi 0, %s26
    %s43 = sphi 0, %s27
    %s49 = sphi 0, %s51
    %s52 = sphi 0, %s49
    %s53 = sphi 0, %s52
    %s69 = sphi 0, %s53
    %s75 = sphi 0, %s77
    %s78 = sphi 0, %s75
    %s79 = sphi 0, %s78
    %s95 = sphi 0, %s79
    %s101 = sphi 0, %s103
    %s104 = sphi 0, %s101
    %s105 = sphi 0, %s104
    %s121 = sphi 0, %s105
    %s127 = sphi 0, %s129
    %s130 = sphi 0, %s127
    %s131 = sphi 0, %s130
    %s147 = sphi 0, %s131
    %s151 = sphi 0, %s151
    %s153 = sphi 0, %s151
    %s154 = sphi 0, %s153
    %s168 = sphi 0, %s154
    %s172 = sphi 0, %s172
    %s174 = sphi 0, %s172
    %s175 = sphi 0, %s174
    %s189 = sphi 0, %s175
    %s195 = sphi 0, %s197
    %s198 = sphi 0, %s195
    %s199 = sphi 0, %s198
    %s215 = sphi 0, %s199
  $region4: #{_lambda_.11} parent=0 // loop_header_branch
    %16 = sbr.rel (%p14) target = $region8
  $region5: #{_lambda_.11} parent=0 // loop_body
    %s18 = ssub.s32 %s13, 1
    %s19 = ssub.s32 %s13, 2
    %s20 = sadd.s32 %s13, 1
    %s21 = ssub.s32 %s13, %s20
    %p22 = scmp.eq.s32.totalorder %s21, 0
    %s24 = sadd.s32 %s23, 1
    %s25 = scalar_select %p22, %s23, %s24
    %p28 = pneg %p22
    %p29 = scmp.eq.s32.totalorder %s13, 1
    %p30 = por %p28, %p29
    %p31 = scmp.ne.s32.totalorder %s23, %s26
    %p32 = scmp.eq.s32.totalorder %s13, 0
    %p33 = por %p31, %p32
    %p34 = scmp.ne.s32.totalorder %s23, %s26
    %p35 = scmp.eq.s32.totalorder %s18, 1
    %p36 = por %p34, %p35
    %p37 = scmp.ne.s32.totalorder %s26, %s27
    %p38 = scmp.eq.s32.totalorder %s18, 0
    %p39 = por %p37, %p38
    %p40 = scmp.ne.s32.totalorder %s26, %s27
    %p41 = scmp.eq.s32.totalorder %s19, 1
    %p42 = por %p40, %p41
    %p44 = scmp.ne.s32.totalorder %s27, %s43
    %p45 = scmp.eq.s32.totalorder %s19, 0
    %p46 = por %p44, %p45
    %s47 = ssub.s32 %s13, %s20
    %p48 = scmp.eq.s32.totalorder %s47, 0
    %s50 = sadd.s32 %s49, 1
    %s51 = scalar_select %p48, %s49, %s50
    %p54 = pneg %p48
    %p55 = scmp.eq.s32.totalorder %s13, 1
    %p56 = por %p54, %p55
    %p57 = scmp.ne.s32.totalorder %s49, %s52
    %p58 = scmp.eq.s32.totalorder %s13, 0
    %p59 = por %p57, %p58
    %p60 = scmp.ne.s32.totalorder %s49, %s52
    %p61 = scmp.eq.s32.totalorder %s18, 1
    %p62 = por %p60, %p61
    %p63 = scmp.ne.s32.totalorder %s52, %s53
    %p64 = scmp.eq.s32.totalorder %s18, 0
    %p65 = por %p63, %p64
    %p66 = scmp.ne.s32.totalorder %s52, %s53
    %p67 = scmp.eq.s32.totalorder %s19, 1
    %p68 = por %p66, %p67
    %p70 = scmp.ne.s32.totalorder %s53, %s69
    %p71 = scmp.eq.s32.totalorder %s19, 0
    %p72 = por %p70, %p71
    %s73 = ssub.s32 %s13, %s20
    %p74 = scmp.eq.s32.totalorder %s73, 0
    %s76 = sadd.s32 %s75, 1
    %s77 = scalar_select %p74, %s75, %s76
    %p80 = pneg %p74
    %p81 = scmp.eq.s32.totalorder %s13, 1
    %p82 = por %p80, %p81
    %p83 = scmp.ne.s32.totalorder %s75, %s78
    %p84 = scmp.eq.s32.totalorder %s13, 0
    %p85 = por %p83, %p84
    %p86 = scmp.ne.s32.totalorder %s75, %s78
    %p87 = scmp.eq.s32.totalorder %s18, 1
    %p88 = por %p86, %p87
    %p89 = scmp.ne.s32.totalorder %s78, %s79
    %p90 = scmp.eq.s32.totalorder %s18, 0
    %p91 = por %p89, %p90
    %p92 = scmp.ne.s32.totalorder %s78, %s79
    %p93 = scmp.eq.s32.totalorder %s19, 1
    %p94 = por %p92, %p93
    %p96 = scmp.ne.s32.totalorder %s79, %s95
    %p97 = scmp.eq.s32.totalorder %s19, 0
    %p98 = por %p96, %p97
    %s99 = ssub.s32 %s13, %s20
    %p100 = scmp.eq.s32.totalorder %s99, 0
    %s102 = sadd.s32 %s101, 1
    %s103 = scalar_select %p100, %s101, %s102
    %p106 = pneg %p100
    %p107 = scmp.eq.s32.totalorder %s13, 1
    %p108 = por %p106, %p107
    %p109 = scmp.ne.s32.totalorder %s101, %s104
    %p110 = scmp.eq.s32.totalorder %s13, 0
    %p111 = por %p109, %p110
    %p112 = scmp.ne.s32.totalorder %s101, %s104
    %p113 = scmp.eq.s32.totalorder %s18, 1
    %p114 = por %p112, %p113
    %p115 = scmp.ne.s32.totalorder %s104, %s105
    %p116 = scmp.eq.s32.totalorder %s18, 0
    %p117 = por %p115, %p116
    %p118 = scmp.ne.s32.totalorder %s104, %s105
    %p119 = scmp.eq.s32.totalorder %s19, 1
    %p120 = por %p118, %p119
    %p122 = scmp.ne.s32.totalorder %s105, %s121
    %p123 = scmp.eq.s32.totalorder %s19, 0
    %p124 = por %p122, %p123
    %s125 = ssub.s32 %s13, %s20
    %p126 = scmp.eq.s32.totalorder %s125, 0
    %s128 = sadd.s32 %s127, 1
    %s129 = scalar_select %p126, %s127, %s128
    %p132 = pneg %p126
    %p133 = scmp.eq.s32.totalorder %s13, 1
    %p134 = por %p132, %p133
    %p135 = scmp.ne.s32.totalorder %s127, %s130
    %p136 = scmp.eq.s32.totalorder %s13, 0
    %p137 = por %p135, %p136
    %p138 = scmp.ne.s32.totalorder %s127, %s130
    %p139 = scmp.eq.s32.totalorder %s18, 1
    %p140 = por %p138, %p139
    %p141 = scmp.ne.s32.totalorder %s130, %s131
    %p142 = scmp.eq.s32.totalorder %s18, 0
    %p143 = por %p141, %p142
    %p144 = scmp.ne.s32.totalorder %s130, %s131
    %p145 = scmp.eq.s32.totalorder %s19, 1
    %p146 = por %p144, %p145
    %p148 = scmp.ne.s32.totalorder %s131, %s147
    %p149 = scmp.eq.s32.totalorder %s19, 0
    %p150 = por %p148, %p149
    %s152 = sadd.s32 %s151, 1
    %p155 = scmp.eq.s32.totalorder %s13, 1
    %p156 = scmp.ne.s32.totalorder %s151, %s153
    %p157 = scmp.eq.s32.totalorder %s13, 0
    %p158 = por %p156, %p157
    %p159 = scmp.ne.s32.totalorder %s151, %s153
    %p160 = scmp.eq.s32.totalorder %s18, 1
    %p161 = por %p159, %p160
    %p162 = scmp.ne.s32.totalorder %s153, %s154
    %p163 = scmp.eq.s32.totalorder %s18, 0
    %p164 = por %p162, %p163
    %p165 = scmp.ne.s32.totalorder %s153, %s154
    %p166 = scmp.eq.s32.totalorder %s19, 1
    %p167 = por %p165, %p166
    %p169 = scmp.ne.s32.totalorder %s154, %s168
    %p170 = scmp.eq.s32.totalorder %s19, 0
    %p171 = por %p169, %p170
    %s173 = sadd.s32 %s172, 1
    %p176 = scmp.eq.s32.totalorder %s13, 1
    %p177 = scmp.ne.s32.totalorder %s172, %s174
    %p178 = scmp.eq.s32.totalorder %s13, 0
    %p179 = por %p177, %p178
    %p180 = scmp.ne.s32.totalorder %s172, %s174
    %p181 = scmp.eq.s32.totalorder %s18, 1
    %p182 = por %p180, %p181
    %p183 = scmp.ne.s32.totalorder %s174, %s175
    %p184 = scmp.eq.s32.totalorder %s18, 0
    %p185 = por %p183, %p184
    %p186 = scmp.ne.s32.totalorder %s174, %s175
    %p187 = scmp.eq.s32.totalorder %s19, 1
    %p188 = por %p186, %p187
    %p190 = scmp.ne.s32.totalorder %s175, %s189
    %p191 = scmp.eq.s32.totalorder %s19, 0
    %p192 = por %p190, %p191
    %s193 = ssub.s32 %s13, %s20
    %p194 = scmp.eq.s32.totalorder %s193, 0
    %s196 = sadd.s32 %s195, 1
    %s197 = scalar_select %p194, %s195, %s196
    %p200 = pneg %p194
    %p201 = scmp.eq.s32.totalorder %s13, 1
    %p202 = por %p200, %p201
    %p203 = scmp.ne.s32.totalorder %s195, %s198
    %p204 = scmp.eq.s32.totalorder %s13, 0
    %p205 = por %p203, %p204
    %p206 = scmp.ne.s32.totalorder %s195, %s198
    %p207 = scmp.eq.s32.totalorder %s18, 1
    %p208 = por %p206, %p207
    %p209 = scmp.ne.s32.totalorder %s198, %s199
    %p210 = scmp.eq.s32.totalorder %s18, 0
    %p211 = por %p209, %p210
    %p212 = scmp.ne.s32.totalorder %s198, %s199
    %p213 = scmp.eq.s32.totalorder %s19, 1
    %p214 = por %p212, %p213
    %p216 = scmp.ne.s32.totalorder %s199, %s215
    %p217 = scmp.eq.s32.totalorder %s19, 0
    %p218 = por %p216, %p217
    %p219 = scmp.le.s32.totalorder 1, %s13
    %p220 = scmp.lt.s32.totalorder %s13, 3
    %p221 = pnand %p219, %p220
    %p222 = pneg %p221
    // Predicated region
    $region9: #{_lambda_.11} parent=5 // pred_check
      _
    $region10: #{_lambda_.11} parent=5 // pred_check_branch
      %224 = sbr.rel (%p221) target = $region12
    $region11: #{_lambda_.11} parent=5 // pred_region
      %s225 = ssub.s32 %s13, 1
      // Predicated region
      $region13: #{_lambda_.11} parent=11 // pred_check
        %p226 = pneg %p164
      $region14: #{_lambda_.11} parent=11 // pred_check_branch
        %228 = sbr.rel (%p226) target = $region16
      $region15: #{_lambda_.11} parent=11 // pred_region
        _
      $region16: #{_lambda_.11} parent=11 // pred_fallthru
        _
      // Predicated region
      $region17: #{_lambda_.11} parent=11 // pred_check
        %p229 = pneg %p185
      $region18: #{_lambda_.11} parent=11 // pred_check_branch
        %231 = sbr.rel (%p229) target = $region20
      $region19: #{_lambda_.11} parent=11 // pred_region
        _
      $region20: #{_lambda_.11} parent=11 // pred_fallthru
        _
    $region12: #{_lambda_.11} parent=5 // pred_fallthru
      _
    %p232 = scmp.lt.s32.totalorder %s13, 2
    // Predicated region
    $region21: #{_lambda_.11} parent=5 // pred_check
      %p233 = pneg %p232
    $region22: #{_lambda_.11} parent=5 // pred_check_branch
      %235 = sbr.rel (%p233) target = $region24
    $region23: #{_lambda_.11} parent=5 // pred_region
      // Predicated region
      $region25: #{_lambda_.11} parent=23 // pred_check
        %p236 = pneg %p33
      $region26: #{_lambda_.11} parent=23 // pred_check_branch
        %238 = sbr.rel (%p236) target = $region28
      $region27: #{_lambda_.11} parent=23 // pred_region
        %p239 = scmp.lt.s32.totalorder %s13, 1
        %s240 = scalar_select %p239, %s13, 1
        %s241 = smul.addr %s240, 8
        %s242 = scalar_lea.vmem %s0, %s241
      $region28: #{_lambda_.11} parent=23 // pred_fallthru
        _
      // Predicated region
      $region29: #{_lambda_.11} parent=23 // pred_check
        %p243 = pneg %p59
      $region30: #{_lambda_.11} parent=23 // pred_check_branch
        %245 = sbr.rel (%p243) target = $region32
      $region31: #{_lambda_.11} parent=23 // pred_region
        %p246 = scmp.lt.s32.totalorder %s13, 1
        %s247 = scalar_select %p246, %s13, 1
        %s248 = smul.addr %s247, 8
        %s249 = scalar_lea.vmem %s1, %s248
      $region32: #{_lambda_.11} parent=23 // pred_fallthru
        _
      // Predicated region
      $region33: #{_lambda_.11} parent=23 // pred_check
        %p250 = pneg %p85
      $region34: #{_lambda_.11} parent=23 // pred_check_branch
        %252 = sbr.rel (%p250) target = $region36
      $region35: #{_lambda_.11} parent=23 // pred_region
        %p253 = scmp.lt.s32.totalorder %s13, 1
        %s254 = scalar_select %p253, %s13, 1
        %s255 = smul.addr %s254, 8
        %s256 = scalar_lea.vmem %s2, %s255
      $region36: #{_lambda_.11} parent=23 // pred_fallthru
        _
      // Predicated region
      $region37: #{_lambda_.11} parent=23 // pred_check
        %p257 = pneg %p111
      $region38: #{_lambda_.11} parent=23 // pred_check_branch
        %259 = sbr.rel (%p257) target = $region40
      $region39: #{_lambda_.11} parent=23 // pred_region
        %p260 = scmp.lt.s32.totalorder %s13, 1
        %s261 = scalar_select %p260, %s13, 1
        %s262 = smul.addr %s261, 8
        %s263 = scalar_lea.vmem %s3, %s262
      $region40: #{_lambda_.11} parent=23 // pred_fallthru
        _
      // Predicated region
      $region41: #{_lambda_.11} parent=23 // pred_check
        %p264 = pneg %p137
      $region42: #{_lambda_.11} parent=23 // pred_check_branch
        %266 = sbr.rel (%p264) target = $region44
      $region43: #{_lambda_.11} parent=23 // pred_region
        %p267 = scmp.lt.s32.totalorder %s13, 1
        %s268 = scalar_select %p267, %s13, 1
        %s269 = smul.addr %s268, 8
        %s270 = scalar_lea.vmem %s4, %s269
      $region44: #{_lambda_.11} parent=23 // pred_fallthru
        _
    $region24: #{_lambda_.11} parent=5 // pred_fallthru
      _
    %p271 = scmp.le.s32.totalorder 1, %s13
    %p272 = scmp.lt.s32.totalorder %s13, 3
    %p273 = pnand %p271, %p272
    %p274 = pneg %p273
    // Predicated region
    $region45: #{_lambda_.11} parent=5 // pred_check
      _
    $region46: #{_lambda_.11} parent=5 // pred_check_branch
      %276 = sbr.rel (%p273) target = $region48
    $region47: #{_lambda_.11} parent=5 // pred_region
      %s277 = ssub.s32 %s13, 1
      %p278 = scmp.lt.s32.totalorder %s18, 1
      %s279 = scalar_select %p278, %s18, 1
      %s280 = smul.addr %s279, 8
      %s281 = scalar_lea.vmem %s0, %s280
      %p282 = pneg %p39
      %p283 = pneg %p36
      %p284 = scmp.lt.s32.totalorder %s18, 1
      %s285 = scalar_select %p284, %s18, 1
      %s286 = smul.addr %s285, 8
      %s287 = scalar_lea.vmem %s1, %s286
      %p288 = pneg %p65
      %p289 = pneg %p62
      %p290 = scmp.lt.s32.totalorder %s18, 1
      %s291 = scalar_select %p290, %s18, 1
      %s292 = smul.addr %s291, 8
      %s293 = scalar_lea.vmem %s2, %s292
      %p294 = pneg %p91
      %p295 = pneg %p88
      %p296 = scmp.lt.s32.totalorder %s18, 1
      %s297 = scalar_select %p296, %s18, 1
      %s298 = smul.addr %s297, 8
      %s299 = scalar_lea.vmem %s3, %s298
      %p300 = pneg %p117
      %p301 = pneg %p114
      %p302 = scmp.lt.s32.totalorder %s18, 1
      %s303 = scalar_select %p302, %s18, 1
      %s304 = smul.addr %s303, 8
      %s305 = scalar_lea.vmem %s4, %s304
      %p306 = pneg %p143
      %p307 = pneg %p140
      %p308 = pneg %p164
      %p309 = pneg %p161
      %p310 = pneg %p185
      %p311 = pneg %p182
      %p312 = pneg %p211
      %p313 = pneg %p208
      %p314 = scmp.lt.s32.totalorder %s18, 1
      %s315 = scalar_select %p314, %s18, 1
      %s316 = smul.addr %s315, 8
      %s317 = scalar_lea.vmem %s7, %s316
      %p318 = scmp.lt.s32.totalorder %s18, 1
      %s319 = scalar_select %p318, %s18, 1
      %s320 = smul.addr %s319, 8
      %s321 = scalar_lea.vmem %s0, %s320
      %p322 = scmp.lt.s32.totalorder %s18, 1
      %s323 = scalar_select %p322, %s18, 1
      %s324 = smul.addr %s323, 8
      %s325 = scalar_lea.vmem %s1, %s324
      %p326 = scmp.lt.s32.totalorder %s18, 1
      %s327 = scalar_select %p326, %s18, 1
      %s328 = smul.addr %s327, 8
      %s329 = scalar_lea.vmem %s2, %s328
      %p330 = scmp.lt.s32.totalorder %s18, 1
      %s331 = scalar_select %p330, %s18, 1
      %s332 = smul.addr %s331, 8
      %s333 = scalar_lea.vmem %s3, %s332
      %p334 = scmp.lt.s32.totalorder %s18, 1
      %s335 = scalar_select %p334, %s18, 1
      %s336 = smul.addr %s335, 8
      %s337 = scalar_lea.vmem %s4, %s336
      %p338 = scmp.lt.s32.totalorder %s18, 1
      %s339 = scalar_select %p338, %s18, 1
      %s340 = smul.addr %s339, 8
      %s341 = scalar_lea.vmem %s7, %s340
      %v342 = vld [vmem:[%s5] sm:$0xff]
      %v343 = vld [vmem:[%s5 + $0x8] sm:$0xff]
      %v344 = vld [vmem:[%s6] sm:$0x1]
      %v345 = vlaneseq
      %v346 = vshrl.u32 %v345, 7
      %v347 = vadd.s32 %v346, 8
      %v348 = vlaneseq
      %v349 = vand.u32 %v348, 127
      %vm350 = vcmp.eq.s32.totalorder %v346, %v349
      %vm351 = vcmp.eq.s32.totalorder %v347, %v349
      %v352 = vsel %vm350, 1, 0
      %v353 = vsel %vm351, 1, 0
      %v354 = vcvt.s32.f32 %v352
      %v355 = vcvt.s32.f32 %v353
      %v356 = vld [vmem:[%s321] sm:$0xff]
      %v357 = vld [vmem:[%s325] sm:$0xff]
      %v358 = vld [vmem:[%s329] sm:$0xff]
      %v359 = vld [vmem:[%s333] sm:$0xff]
      %v360 = vld [vmem:[%s337] sm:$0xff]
      %v361 = vmul.f32 %v357, %v356
      %v362 = vlaneseq
      %v363 = vshrl.u32 %v362, 7
      %v364 = vsub.s32 0, %v363
      %v365 = vrot.slane %v357, %v364
      %v366 = vmul.f32 %v365, %v342
      %v367 = vmul.f32 %v365, %v343
      %v368 = vmul.f32 %v366, 1.442695
      %v369 = vpow.pop %v368
      %v370 = vmul.f32 %v367, 1.442695
      %v371 = vpow.pop %v370
      %v372 = vlaneseq
      %v373 = vshrl.u32 %v372, 7
      %v374 = vsub.s32 0, %v373
      %v375 = vrot.slane %v359, %v374
      %v376 = vmul.f32 %v375, %v354
      %v377 = vmul.f32 %v375, %v355
      %vm378 = vcmask 130048
      %v379 = vsel %vm378, %v376, 0.0
      %380 = vadd.xlane.f32.xlu0 %v379
      %v381 = vpop.xlane.xlu0 %380
      %v382 = vsel %vm378, %v377, 0.0
      %383 = vadd.xlane.f32.xlu0 %v382
      %v384 = vpop.xlane.xlu0 %383
      %v385 = vmul.f32 %v369, 0.0
      %v386 = vmul.f32 %v371, 0.0
      %v387 = vlaneseq
      %v388 = vshrl.u32 %v387, 7
      %v389 = vsub.s32 0, %v388
      %v390 = vrot.slane %v361, %v389
      %v391 = vmul.f32 %v381, %v390
      %v392 = vmul.f32 %v384, %v390
      %v393 = vadd.f32 %v385, %v391
      %v394 = vadd.f32 %v386, %v392
      %v396 = vsel %vm378, %v360, 0
      %398 = vmatprep.subr.mxu0 0.0
      %399 = vmatpush1.msra.mxu0 0.0
      %400 = vmatprep.subr.mxu0 0.0
      %401 = vmatpush1.msra.mxu0 0.0
      %402 = vmatprep.subr.mxu0 0.0
      %403 = vmatpush1.msra.mxu0 0.0
      %404 = vmatprep.subr.mxu0 0.0
      %405 = vmatpush1.msra.mxu0 0.0
      %406 = vmatprep.subr.mxu0 0.0
      %407 = vmatpush1.msra.mxu0 0.0
      %408 = vmatprep.subr.mxu0 0.0
      %409 = vmatpush1.msra.mxu0 0.0
      %410 = vmatprep.subr.mxu0 0.0
      %411 = vmatpush1.msra.mxu0 0.0
      %412 = vmatprep.subr.mxu0 0.0
      %413 = vmatpush1.msra.mxu0 0.0
      %414 = vmatprep.subr.mxu0 0.0
      %415 = vmatpush1.msra.mxu0 0.0
      %416 = vmatprep.subr.mxu0 0.0
      %417 = vmatpush1.msra.mxu0 0.0
      %418 = vmatprep.subr.mxu0 0.0
      %419 = vmatpush1.msra.mxu0 0.0
      %420 = vmatprep.subr.mxu0 0.0
      %421 = vmatpush1.msra.mxu0 0.0
      %422 = vmatprep.subr.mxu0 0.0
      %423 = vmatpush1.msra.mxu0 0.0
      %424 = vmatprep.subr.mxu0 0.0
      %425 = vmatpush1.msra.mxu0 0.0
      %426 = vmatprep.subr.mxu0 0.0
      %427 = vmatpush1.msra.mxu0 %v394
      %428 = vmatprep.subr.mxu0 0.0
      %429 = vmatpush1.msra.mxu0 %v393
      %430 = vmatprep.subr.mxu0 0.0
      %431 = vmatpush2.msra.mxu0 0.0
      %432 = vmatprep.subr.mxu0 0.0
      %433 = vmatpush2.msra.mxu0 0.0
      %434 = vmatprep.subr.mxu0 0.0
      %435 = vmatpush2.msra.mxu0 0.0
      %436 = vmatprep.subr.mxu0 0.0
      %437 = vmatpush2.msra.mxu0 0.0
      %438 = vmatprep.subr.mxu0 0.0
      %439 = vmatpush2.msra.mxu0 0.0
      %440 = vmatprep.subr.mxu0 0.0
      %441 = vmatpush2.msra.mxu0 0.0
      %442 = vmatprep.subr.mxu0 0.0
      %443 = vmatpush2.msra.mxu0 0.0
      %444 = vmatprep.subr.mxu0 0.0
      %445 = vmatpush2.msra.mxu0 0.0
      %446 = vmatprep.subr.mxu0 0.0
      %447 = vmatpush2.msra.mxu0 0.0
      %448 = vmatprep.subr.mxu0 0.0
      %449 = vmatpush2.msra.mxu0 0.0
      %450 = vmatprep.subr.mxu0 0.0
      %451 = vmatpush2.msra.mxu0 0.0
      %452 = vmatprep.subr.mxu0 0.0
      %453 = vmatpush2.msra.mxu0 0.0
      %454 = vmatprep.subr.mxu0 0.0
      %455 = vmatpush2.msra.mxu0 0.0
      %456 = vmatprep.subr.mxu0 0.0
      %457 = vmatpush2.msra.mxu0 0.0
      %458 = vmatprep.subr.mxu0 0.0
      %459 = vmatpush2.msra.mxu0 0.0
      %460 = vmatprep.subr.mxu0 0.0
      %461 = vmatpush2.msra.mxu0 0.0
      %462 = vmatprep.mubr.f32.mxu0 0.0
      %463 = vmatmul.mubr.f32.gmra.mxu0 %v396
      %v464 = vpop.f32.mrf.mxu0
      %v465 = vadd.f32 0.0, %v464
      %v466 = vpop.f32.mrf.mxu0
      %467 = vdwg.mxu0
      %vm468 = vcmp.eq.s32.totalorder %v346, 0
      %v469 = vsel %vm468, 1, 0
      %v470 = vcvt.s32.f32 %v469
      %v471 = vlaneseq
      %v472 = vshrl.u32 %v471, 7
      %v473 = vsub.s32 0, %v472
      %v474 = vrot.slane %v465, %v473
      %v475 = vmul.f32 %v470, %v474
      %v476 = vadd.f32 %v475, 0.0
      %v477 = vlaneseq
      %v478 = vshrl.u32 %v477, 7
      %v479 = vsub.s32 1, %v478
      %v480 = vrot.slane %v357, %v479
      %v481 = vmul.f32 %v480, %v342
      %v482 = vmul.f32 %v480, %v343
      %v483 = vmul.f32 %v481, 1.442695
      %v484 = vpow.pop %v483
      %v485 = vmul.f32 %v482, 1.442695
      %v486 = vpow.pop %v485
      %v487 = vlaneseq
      %v488 = vshrl.u32 %v487, 7
      %v489 = vsub.s32 1, %v488
      %v490 = vrot.slane %v359, %v489
      %v491 = vmul.f32 %v490, %v354
      %v492 = vmul.f32 %v490, %v355
      %v493 = vsel %vm378, %v491, 0.0
      %494 = vadd.xlane.f32.xlu0 %v493
      %v495 = vpop.xlane.xlu0 %494
      %v496 = vsel %vm378, %v492, 0.0
      %497 = vadd.xlane.f32.xlu0 %v496
      %v498 = vpop.xlane.xlu0 %497
      %v499 = vmul.f32 %v484, %v393
      %v500 = vmul.f32 %v486, %v394
      %v501 = vlaneseq
      %v502 = vshrl.u32 %v501, 7
      %v503 = vsub.s32 1, %v502
      %v504 = vrot.slane %v361, %v503
      %v505 = vmul.f32 %v495, %v504
      %v506 = vmul.f32 %v498, %v504
      %v507 = vadd.f32 %v499, %v505
      %v508 = vadd.f32 %v500, %v506
      %v509 = vrot.slane %v360, 1
      %v510 = vsel %vm378, %v509, 0
      %512 = vmatprep.subr.mxu0 0.0
      %513 = vmatpush1.msra.mxu0 0.0
      %514 = vmatprep.subr.mxu0 0.0
      %515 = vmatpush1.msra.mxu0 0.0
      %516 = vmatprep.subr.mxu0 0.0
      %517 = vmatpush1.msra.mxu0 0.0
      %518 = vmatprep.subr.mxu0 0.0
      %519 = vmatpush1.msra.mxu0 0.0
      %520 = vmatprep.subr.mxu0 0.0
      %521 = vmatpush1.msra.mxu0 0.0
      %522 = vmatprep.subr.mxu0 0.0
      %523 = vmatpush1.msra.mxu0 0.0
      %524 = vmatprep.subr.mxu0 0.0
      %525 = vmatpush1.msra.mxu0 0.0
      %526 = vmatprep.subr.mxu0 0.0
      %527 = vmatpush1.msra.mxu0 0.0
      %528 = vmatprep.subr.mxu0 0.0
      %529 = vmatpush1.msra.mxu0 0.0
      %530 = vmatprep.subr.mxu0 0.0
      %531 = vmatpush1.msra.mxu0 0.0
      %532 = vmatprep.subr.mxu0 0.0
      %533 = vmatpush1.msra.mxu0 0.0
      %534 = vmatprep.subr.mxu0 0.0
      %535 = vmatpush1.msra.mxu0 0.0
      %536 = vmatprep.subr.mxu0 0.0
      %537 = vmatpush1.msra.mxu0 0.0
      %538 = vmatprep.subr.mxu0 0.0
      %539 = vmatpush1.msra.mxu0 0.0
      %540 = vmatprep.subr.mxu0 0.0
      %541 = vmatpush1.msra.mxu0 %v508
      %542 = vmatprep.subr.mxu0 0.0
      %543 = vmatpush1.msra.mxu0 %v507
      %544 = vmatprep.subr.mxu0 0.0
      %545 = vmatpush2.msra.mxu0 0.0
      %546 = vmatprep.subr.mxu0 0.0
      %547 = vmatpush2.msra.mxu0 0.0
      %548 = vmatprep.subr.mxu0 0.0
      %549 = vmatpush2.msra.mxu0 0.0
      %550 = vmatprep.subr.mxu0 0.0
      %551 = vmatpush2.msra.mxu0 0.0
      %552 = vmatprep.subr.mxu0 0.0
      %553 = vmatpush2.msra.mxu0 0.0
      %554 = vmatprep.subr.mxu0 0.0
      %555 = vmatpush2.msra.mxu0 0.0
      %556 = vmatprep.subr.mxu0 0.0
      %557 = vmatpush2.msra.mxu0 0.0
      %558 = vmatprep.subr.mxu0 0.0
      %559 = vmatpush2.msra.mxu0 0.0
      %560 = vmatprep.subr.mxu0 0.0
      %561 = vmatpush2.msra.mxu0 0.0
      %562 = vmatprep.subr.mxu0 0.0
      %563 = vmatpush2.msra.mxu0 0.0
      %564 = vmatprep.subr.mxu0 0.0
      %565 = vmatpush2.msra.mxu0 0.0
      %566 = vmatprep.subr.mxu0 0.0
      %567 = vmatpush2.msra.mxu0 0.0
      %568 = vmatprep.subr.mxu0 0.0
      %569 = vmatpush2.msra.mxu0 0.0
      %570 = vmatprep.subr.mxu0 0.0
      %571 = vmatpush2.msra.mxu0 0.0
      %572 = vmatprep.subr.mxu0 0.0
      %573 = vmatpush2.msra.mxu0 0.0
      %574 = vmatprep.subr.mxu0 0.0
      %575 = vmatpush2.msra.mxu0 0.0
      %576 = vmatprep.mubr.f32.mxu0 0.0
      %577 = vmatmul.mubr.f32.gmra.mxu0 %v510
      %v578 = vpop.f32.mrf.mxu0
      %v579 = vadd.f32 0.0, %v578
      %v580 = vpop.f32.mrf.mxu0
      %581 = vdwg.mxu0
      %vm582 = vcmp.eq.s32.totalorder %v346, 1
      %v583 = vsel %vm582, 1, 0
      %v584 = vcvt.s32.f32 %v583
      %v585 = vlaneseq
      %v586 = vshrl.u32 %v585, 7
      %v587 = vsub.s32 0, %v586
      %v588 = vrot.slane %v579, %v587
      %v589 = vmul.f32 %v584, %v588
      %v590 = vadd.f32 %v476, %v589
      %v591 = vlaneseq
      %v592 = vshrl.u32 %v591, 7
      %v593 = vsub.s32 2, %v592
      %v594 = vrot.slane %v357, %v593
      %v595 = vmul.f32 %v594, %v342
      %v596 = vmul.f32 %v594, %v343
      %v597 = vmul.f32 %v595, 1.442695
      %v598 = vpow.pop %v597
      %v599 = vmul.f32 %v596, 1.442695
      %v600 = vpow.pop %v599
      %v601 = vlaneseq
      %v602 = vshrl.u32 %v601, 7
      %v603 = vsub.s32 2, %v602
      %v604 = vrot.slane %v359, %v603
      %v605 = vmul.f32 %v604, %v354
      %v606 = vmul.f32 %v604, %v355
      %v607 = vsel %vm378, %v605, 0.0
      %608 = vadd.xlane.f32.xlu0 %v607
      %v609 = vpop.xlane.xlu0 %608
      %v610 = vsel %vm378, %v606, 0.0
      %611 = vadd.xlane.f32.xlu0 %v610
      %v612 = vpop.xlane.xlu0 %611
      %v613 = vmul.f32 %v598, %v507
      %v614 = vmul.f32 %v600, %v508
      %v615 = vlaneseq
      %v616 = vshrl.u32 %v615, 7
      %v617 = vsub.s32 2, %v616
      %v618 = vrot.slane %v361, %v617
      %v619 = vmul.f32 %v609, %v618
      %v620 = vmul.f32 %v612, %v618
      %v621 = vadd.f32 %v613, %v619
      %v622 = vadd.f32 %v614, %v620
      %v623 = vrot.slane %v360, 2
      %v624 = vsel %vm378, %v623, 0
      %626 = vmatprep.subr.mxu0 0.0
      %627 = vmatpush1.msra.mxu0 0.0
      %628 = vmatprep.subr.mxu0 0.0
      %629 = vmatpush1.msra.mxu0 0.0
      %630 = vmatprep.subr.mxu0 0.0
      %631 = vmatpush1.msra.mxu0 0.0
      %632 = vmatprep.subr.mxu0 0.0
      %633 = vmatpush1.msra.mxu0 0.0
      %634 = vmatprep.subr.mxu0 0.0
      %635 = vmatpush1.msra.mxu0 0.0
      %636 = vmatprep.subr.mxu0 0.0
      %637 = vmatpush1.msra.mxu0 0.0
      %638 = vmatprep.subr.mxu0 0.0
      %639 = vmatpush1.msra.mxu0 0.0
      %640 = vmatprep.subr.mxu0 0.0
      %641 = vmatpush1.msra.mxu0 0.0
      %642 = vmatprep.subr.mxu0 0.0
      %643 = vmatpush1.msra.mxu0 0.0
      %644 = vmatprep.subr.mxu0 0.0
      %645 = vmatpush1.msra.mxu0 0.0
      %646 = vmatprep.subr.mxu0 0.0
      %647 = vmatpush1.msra.mxu0 0.0
      %648 = vmatprep.subr.mxu0 0.0
      %649 = vmatpush1.msra.mxu0 0.0
      %650 = vmatprep.subr.mxu0 0.0
      %651 = vmatpush1.msra.mxu0 0.0
      %652 = vmatprep.subr.mxu0 0.0
      %653 = vmatpush1.msra.mxu0 0.0
      %654 = vmatprep.subr.mxu0 0.0
      %655 = vmatpush1.msra.mxu0 %v622
      %656 = vmatprep.subr.mxu0 0.0
      %657 = vmatpush1.msra.mxu0 %v621
      %658 = vmatprep.subr.mxu0 0.0
      %659 = vmatpush2.msra.mxu0 0.0
      %660 = vmatprep.subr.mxu0 0.0
      %661 = vmatpush2.msra.mxu0 0.0
      %662 = vmatprep.subr.mxu0 0.0
      %663 = vmatpush2.msra.mxu0 0.0
      %664 = vmatprep.subr.mxu0 0.0
      %665 = vmatpush2.msra.mxu0 0.0
      %666 = vmatprep.subr.mxu0 0.0
      %667 = vmatpush2.msra.mxu0 0.0
      %668 = vmatprep.subr.mxu0 0.0
      %669 = vmatpush2.msra.mxu0 0.0
      %670 = vmatprep.subr.mxu0 0.0
      %671 = vmatpush2.msra.mxu0 0.0
      %672 = vmatprep.subr.mxu0 0.0
      %673 = vmatpush2.msra.mxu0 0.0
      %674 = vmatprep.subr.mxu0 0.0
      %675 = vmatpush2.msra.mxu0 0.0
      %676 = vmatprep.subr.mxu0 0.0
      %677 = vmatpush2.msra.mxu0 0.0
      %678 = vmatprep.subr.mxu0 0.0
      %679 = vmatpush2.msra.mxu0 0.0
      %680 = vmatprep.subr.mxu0 0.0
      %681 = vmatpush2.msra.mxu0 0.0
      %682 = vmatprep.subr.mxu0 0.0
      %683 = vmatpush2.msra.mxu0 0.0
      %684 = vmatprep.subr.mxu0 0.0
      %685 = vmatpush2.msra.mxu0 0.0
      %686 = vmatprep.subr.mxu0 0.0
      %687 = vmatpush2.msra.mxu0 0.0
      %688 = vmatprep.subr.mxu0 0.0
      %689 = vmatpush2.msra.mxu0 0.0
      %690 = vmatprep.mubr.f32.mxu0 0.0
      %691 = vmatmul.mubr.f32.gmra.mxu0 %v624
      %v692 = vpop.f32.mrf.mxu0
      %v693 = vadd.f32 0.0, %v692
      %v694 = vpop.f32.mrf.mxu0
      %695 = vdwg.mxu0
      %vm696 = vcmp.eq.s32.totalorder %v346, 2
      %v697 = vsel %vm696, 1, 0
      %v698 = vcvt.s32.f32 %v697
      %v699 = vlaneseq
      %v700 = vshrl.u32 %v699, 7
      %v701 = vsub.s32 0, %v700
      %v702 = vrot.slane %v693, %v701
      %v703 = vmul.f32 %v698, %v702
      %v704 = vadd.f32 %v590, %v703
      %v705 = vlaneseq
      %v706 = vshrl.u32 %v705, 7
      %v707 = vsub.s32 3, %v706
      %v708 = vrot.slane %v357, %v707
      %v709 = vmul.f32 %v708, %v342
      %v710 = vmul.f32 %v708, %v343
      %v711 = vmul.f32 %v709, 1.442695
      %v712 = vpow.pop %v711
      %v713 = vmul.f32 %v710, 1.442695
      %v714 = vpow.pop %v713
      %v715 = vlaneseq
      %v716 = vshrl.u32 %v715, 7
      %v717 = vsub.s32 3, %v716
      %v718 = vrot.slane %v359, %v717
      %v719 = vmul.f32 %v718, %v354
      %v720 = vmul.f32 %v718, %v355
      %v721 = vsel %vm378, %v719, 0.0
      %722 = vadd.xlane.f32.xlu0 %v721
      %v723 = vpop.xlane.xlu0 %722
      %v724 = vsel %vm378, %v720, 0.0
      %725 = vadd.xlane.f32.xlu0 %v724
      %v726 = vpop.xlane.xlu0 %725
      %v727 = vmul.f32 %v712, %v621
      %v728 = vmul.f32 %v714, %v622
      %v729 = vlaneseq
      %v730 = vshrl.u32 %v729, 7
      %v731 = vsub.s32 3, %v730
      %v732 = vrot.slane %v361, %v731
      %v733 = vmul.f32 %v723, %v732
      %v734 = vmul.f32 %v726, %v732
      %v735 = vadd.f32 %v727, %v733
      %v736 = vadd.f32 %v728, %v734
      %v737 = vrot.slane %v360, 3
      %v738 = vsel %vm378, %v737, 0
      %740 = vmatprep.subr.mxu0 0.0
      %741 = vmatpush1.msra.mxu0 0.0
      %742 = vmatprep.subr.mxu0 0.0
      %743 = vmatpush1.msra.mxu0 0.0
      %744 = vmatprep.subr.mxu0 0.0
      %745 = vmatpush1.msra.mxu0 0.0
      %746 = vmatprep.subr.mxu0 0.0
      %747 = vmatpush1.msra.mxu0 0.0
      %748 = vmatprep.subr.mxu0 0.0
      %749 = vmatpush1.msra.mxu0 0.0
      %750 = vmatprep.subr.mxu0 0.0
      %751 = vmatpush1.msra.mxu0 0.0
      %752 = vmatprep.subr.mxu0 0.0
      %753 = vmatpush1.msra.mxu0 0.0
      %754 = vmatprep.subr.mxu0 0.0
      %755 = vmatpush1.msra.mxu0 0.0
      %756 = vmatprep.subr.mxu0 0.0
      %757 = vmatpush1.msra.mxu0 0.0
      %758 = vmatprep.subr.mxu0 0.0
      %759 = vmatpush1.msra.mxu0 0.0
      %760 = vmatprep.subr.mxu0 0.0
      %761 = vmatpush1.msra.mxu0 0.0
      %762 = vmatprep.subr.mxu0 0.0
      %763 = vmatpush1.msra.mxu0 0.0
      %764 = vmatprep.subr.mxu0 0.0
      %765 = vmatpush1.msra.mxu0 0.0
      %766 = vmatprep.subr.mxu0 0.0
      %767 = vmatpush1.msra.mxu0 0.0
      %768 = vmatprep.subr.mxu0 0.0
      %769 = vmatpush1.msra.mxu0 %v736
      %770 = vmatprep.subr.mxu0 0.0
      %771 = vmatpush1.msra.mxu0 %v735
      %772 = vmatprep.subr.mxu0 0.0
      %773 = vmatpush2.msra.mxu0 0.0
      %774 = vmatprep.subr.mxu0 0.0
      %775 = vmatpush2.msra.mxu0 0.0
      %776 = vmatprep.subr.mxu0 0.0
      %777 = vmatpush2.msra.mxu0 0.0
      %778 = vmatprep.subr.mxu0 0.0
      %779 = vmatpush2.msra.mxu0 0.0
      %780 = vmatprep.subr.mxu0 0.0
      %781 = vmatpush2.msra.mxu0 0.0
      %782 = vmatprep.subr.mxu0 0.0
      %783 = vmatpush2.msra.mxu0 0.0
      %784 = vmatprep.subr.mxu0 0.0
      %785 = vmatpush2.msra.mxu0 0.0
      %786 = vmatprep.subr.mxu0 0.0
      %787 = vmatpush2.msra.mxu0 0.0
      %788 = vmatprep.subr.mxu0 0.0
      %789 = vmatpush2.msra.mxu0 0.0
      %790 = vmatprep.subr.mxu0 0.0
      %791 = vmatpush2.msra.mxu0 0.0
      %792 = vmatprep.subr.mxu0 0.0
      %793 = vmatpush2.msra.mxu0 0.0
      %794 = vmatprep.subr.mxu0 0.0
      %795 = vmatpush2.msra.mxu0 0.0
      %796 = vmatprep.subr.mxu0 0.0
      %797 = vmatpush2.msra.mxu0 0.0
      %798 = vmatprep.subr.mxu0 0.0
      %799 = vmatpush2.msra.mxu0 0.0
      %800 = vmatprep.subr.mxu0 0.0
      %801 = vmatpush2.msra.mxu0 0.0
      %802 = vmatprep.subr.mxu0 0.0
      %803 = vmatpush2.msra.mxu0 0.0
      %804 = vmatprep.mubr.f32.mxu0 0.0
      %805 = vmatmul.mubr.f32.gmra.mxu0 %v738
      %v806 = vpop.f32.mrf.mxu0
      %v807 = vadd.f32 0.0, %v806
      %v808 = vpop.f32.mrf.mxu0
      %809 = vdwg.mxu0
      %vm810 = vcmp.eq.s32.totalorder %v346, 3
      %v811 = vsel %vm810, 1, 0
      %v812 = vcvt.s32.f32 %v811
      %v813 = vlaneseq
      %v814 = vshrl.u32 %v813, 7
      %v815 = vsub.s32 0, %v814
      %v816 = vrot.slane %v807, %v815
      %v817 = vmul.f32 %v812, %v816
      %v818 = vadd.f32 %v704, %v817
      %v819 = vlaneseq
      %v820 = vshrl.u32 %v819, 7
      %v821 = vsub.s32 4, %v820
      %v822 = vrot.slane %v357, %v821
      %v823 = vmul.f32 %v822, %v342
      %v824 = vmul.f32 %v822, %v343
      %v825 = vmul.f32 %v823, 1.442695
      %v826 = vpow.pop %v825
      %v827 = vmul.f32 %v824, 1.442695
      %v828 = vpow.pop %v827
      %v829 = vlaneseq
      %v830 = vshrl.u32 %v829, 7
      %v831 = vsub.s32 4, %v830
      %v832 = vrot.slane %v359, %v831
      %v833 = vmul.f32 %v832, %v354
      %v834 = vmul.f32 %v832, %v355
      %v835 = vsel %vm378, %v833, 0.0
      %836 = vadd.xlane.f32.xlu0 %v835
      %v837 = vpop.xlane.xlu0 %836
      %v838 = vsel %vm378, %v834, 0.0
      %839 = vadd.xlane.f32.xlu0 %v838
      %v840 = vpop.xlane.xlu0 %839
      %v841 = vmul.f32 %v826, %v735
      %v842 = vmul.f32 %v828, %v736
      %v843 = vlaneseq
      %v844 = vshrl.u32 %v843, 7
      %v845 = vsub.s32 4, %v844
      %v846 = vrot.slane %v361, %v845
      %v847 = vmul.f32 %v837, %v846
      %v848 = vmul.f32 %v840, %v846
      %v849 = vadd.f32 %v841, %v847
      %v850 = vadd.f32 %v842, %v848
      %v851 = vrot.slane %v360, 4
      %v852 = vsel %vm378, %v851, 0
      %854 = vmatprep.subr.mxu0 0.0
      %855 = vmatpush1.msra.mxu0 0.0
      %856 = vmatprep.subr.mxu0 0.0
      %857 = vmatpush1.msra.mxu0 0.0
      %858 = vmatprep.subr.mxu0 0.0
      %859 = vmatpush1.msra.mxu0 0.0
      %860 = vmatprep.subr.mxu0 0.0
      %861 = vmatpush1.msra.mxu0 0.0
      %862 = vmatprep.subr.mxu0 0.0
      %863 = vmatpush1.msra.mxu0 0.0
      %864 = vmatprep.subr.mxu0 0.0
      %865 = vmatpush1.msra.mxu0 0.0
      %866 = vmatprep.subr.mxu0 0.0
      %867 = vmatpush1.msra.mxu0 0.0
      %868 = vmatprep.subr.mxu0 0.0
      %869 = vmatpush1.msra.mxu0 0.0
      %870 = vmatprep.subr.mxu0 0.0
      %871 = vmatpush1.msra.mxu0 0.0
      %872 = vmatprep.subr.mxu0 0.0
      %873 = vmatpush1.msra.mxu0 0.0
      %874 = vmatprep.subr.mxu0 0.0
      %875 = vmatpush1.msra.mxu0 0.0
      %876 = vmatprep.subr.mxu0 0.0
      %877 = vmatpush1.msra.mxu0 0.0
      %878 = vmatprep.subr.mxu0 0.0
      %879 = vmatpush1.msra.mxu0 0.0
      %880 = vmatprep.subr.mxu0 0.0
      %881 = vmatpush1.msra.mxu0 0.0
      %882 = vmatprep.subr.mxu0 0.0
      %883 = vmatpush1.msra.mxu0 %v850
      %884 = vmatprep.subr.mxu0 0.0
      %885 = vmatpush1.msra.mxu0 %v849
      %886 = vmatprep.subr.mxu0 0.0
      %887 = vmatpush2.msra.mxu0 0.0
      %888 = vmatprep.subr.mxu0 0.0
      %889 = vmatpush2.msra.mxu0 0.0
      %890 = vmatprep.subr.mxu0 0.0
      %891 = vmatpush2.msra.mxu0 0.0
      %892 = vmatprep.subr.mxu0 0.0
      %893 = vmatpush2.msra.mxu0 0.0
      %894 = vmatprep.subr.mxu0 0.0
      %895 = vmatpush2.msra.mxu0 0.0
      %896 = vmatprep.subr.mxu0 0.0
      %897 = vmatpush2.msra.mxu0 0.0
      %898 = vmatprep.subr.mxu0 0.0
      %899 = vmatpush2.msra.mxu0 0.0
      %900 = vmatprep.subr.mxu0 0.0
      %901 = vmatpush2.msra.mxu0 0.0
      %902 = vmatprep.subr.mxu0 0.0
      %903 = vmatpush2.msra.mxu0 0.0
      %904 = vmatprep.subr.mxu0 0.0
      %905 = vmatpush2.msra.mxu0 0.0
      %906 = vmatprep.subr.mxu0 0.0
      %907 = vmatpush2.msra.mxu0 0.0
      %908 = vmatprep.subr.mxu0 0.0
      %909 = vmatpush2.msra.mxu0 0.0
      %910 = vmatprep.subr.mxu0 0.0
      %911 = vmatpush2.msra.mxu0 0.0
      %912 = vmatprep.subr.mxu0 0.0
      %913 = vmatpush2.msra.mxu0 0.0
      %914 = vmatprep.subr.mxu0 0.0
      %915 = vmatpush2.msra.mxu0 0.0
      %916 = vmatprep.subr.mxu0 0.0
      %917 = vmatpush2.msra.mxu0 0.0
      %918 = vmatprep.mubr.f32.mxu0 0.0
      %919 = vmatmul.mubr.f32.gmra.mxu0 %v852
      %v920 = vpop.f32.mrf.mxu0
      %v921 = vadd.f32 0.0, %v920
      %v922 = vpop.f32.mrf.mxu0
      %923 = vdwg.mxu0
      %vm924 = vcmp.eq.s32.totalorder %v346, 4
      %v925 = vsel %vm924, 1, 0
      %v926 = vcvt.s32.f32 %v925
      %v927 = vlaneseq
      %v928 = vshrl.u32 %v927, 7
      %v929 = vsub.s32 0, %v928
      %v930 = vrot.slane %v921, %v929
      %v931 = vmul.f32 %v926, %v930
      %v932 = vadd.f32 %v818, %v931
      %v933 = vlaneseq
      %v934 = vshrl.u32 %v933, 7
      %v935 = vsub.s32 5, %v934
      %v936 = vrot.slane %v357, %v935
      %v937 = vmul.f32 %v936, %v342
      %v938 = vmul.f32 %v936, %v343
      %v939 = vmul.f32 %v937, 1.442695
      %v940 = vpow.pop %v939
      %v941 = vmul.f32 %v938, 1.442695
      %v942 = vpow.pop %v941
      %v943 = vlaneseq
      %v944 = vshrl.u32 %v943, 7
      %v945 = vsub.s32 5, %v944
      %v946 = vrot.slane %v359, %v945
      %v947 = vmul.f32 %v946, %v354
      %v948 = vmul.f32 %v946, %v355
      %v949 = vsel %vm378, %v947, 0.0
      %950 = vadd.xlane.f32.xlu0 %v949
      %v951 = vpop.xlane.xlu0 %950
      %v952 = vsel %vm378, %v948, 0.0
      %953 = vadd.xlane.f32.xlu0 %v952
      %v954 = vpop.xlane.xlu0 %953
      %v955 = vmul.f32 %v940, %v849
      %v956 = vmul.f32 %v942, %v850
      %v957 = vlaneseq
      %v958 = vshrl.u32 %v957, 7
      %v959 = vsub.s32 5, %v958
      %v960 = vrot.slane %v361, %v959
      %v961 = vmul.f32 %v951, %v960
      %v962 = vmul.f32 %v954, %v960
      %v963 = vadd.f32 %v955, %v961
      %v964 = vadd.f32 %v956, %v962
      %v965 = vrot.slane %v360, 5
      %v966 = vsel %vm378, %v965, 0
      %968 = vmatprep.subr.mxu0 0.0
      %969 = vmatpush1.msra.mxu0 0.0
      %970 = vmatprep.subr.mxu0 0.0
      %971 = vmatpush1.msra.mxu0 0.0
      %972 = vmatprep.subr.mxu0 0.0
      %973 = vmatpush1.msra.mxu0 0.0
      %974 = vmatprep.subr.mxu0 0.0
      %975 = vmatpush1.msra.mxu0 0.0
      %976 = vmatprep.subr.mxu0 0.0
      %977 = vmatpush1.msra.mxu0 0.0
      %978 = vmatprep.subr.mxu0 0.0
      %979 = vmatpush1.msra.mxu0 0.0
      %980 = vmatprep.subr.mxu0 0.0
      %981 = vmatpush1.msra.mxu0 0.0
      %982 = vmatprep.subr.mxu0 0.0
      %983 = vmatpush1.msra.mxu0 0.0
      %984 = vmatprep.subr.mxu0 0.0
      %985 = vmatpush1.msra.mxu0 0.0
      %986 = vmatprep.subr.mxu0 0.0
      %987 = vmatpush1.msra.mxu0 0.0
      %988 = vmatprep.subr.mxu0 0.0
      %989 = vmatpush1.msra.mxu0 0.0
      %990 = vmatprep.subr.mxu0 0.0
      %991 = vmatpush1.msra.mxu0 0.0
      %992 = vmatprep.subr.mxu0 0.0
      %993 = vmatpush1.msra.mxu0 0.0
      %994 = vmatprep.subr.mxu0 0.0
      %995 = vmatpush1.msra.mxu0 0.0
      %996 = vmatprep.subr.mxu0 0.0
      %997 = vmatpush1.msra.mxu0 %v964
      %998 = vmatprep.subr.mxu0 0.0
      %999 = vmatpush1.msra.mxu0 %v963
      %1000 = vmatprep.subr.mxu0 0.0
      %1001 = vmatpush2.msra.mxu0 0.0
      %1002 = vmatprep.subr.mxu0 0.0
      %1003 = vmatpush2.msra.mxu0 0.0
      %1004 = vmatprep.subr.mxu0 0.0
      %1005 = vmatpush2.msra.mxu0 0.0
      %1006 = vmatprep.subr.mxu0 0.0
      %1007 = vmatpush2.msra.mxu0 0.0
      %1008 = vmatprep.subr.mxu0 0.0
      %1009 = vmatpush2.msra.mxu0 0.0
      %1010 = vmatprep.subr.mxu0 0.0
      %1011 = vmatpush2.msra.mxu0 0.0
      %1012 = vmatprep.subr.mxu0 0.0
      %1013 = vmatpush2.msra.mxu0 0.0
      %1014 = vmatprep.subr.mxu0 0.0
      %1015 = vmatpush2.msra.mxu0 0.0
      %1016 = vmatprep.subr.mxu0 0.0
      %1017 = vmatpush2.msra.mxu0 0.0
      %1018 = vmatprep.subr.mxu0 0.0
      %1019 = vmatpush2.msra.mxu0 0.0
      %1020 = vmatprep.subr.mxu0 0.0
      %1021 = vmatpush2.msra.mxu0 0.0
      %1022 = vmatprep.subr.mxu0 0.0
      %1023 = vmatpush2.msra.mxu0 0.0
      %1024 = vmatprep.subr.mxu0 0.0
      %1025 = vmatpush2.msra.mxu0 0.0
      %1026 = vmatprep.subr.mxu0 0.0
      %1027 = vmatpush2.msra.mxu0 0.0
      %1028 = vmatprep.subr.mxu0 0.0
      %1029 = vmatpush2.msra.mxu0 0.0
      %1030 = vmatprep.subr.mxu0 0.0
      %1031 = vmatpush2.msra.mxu0 0.0
      %1032 = vmatprep.mubr.f32.mxu0 0.0
      %1033 = vmatmul.mubr.f32.gmra.mxu0 %v966
      %v1034 = vpop.f32.mrf.mxu0
      %v1035 = vadd.f32 0.0, %v1034
      %v1036 = vpop.f32.mrf.mxu0
      %1037 = vdwg.mxu0
      %vm1038 = vcmp.eq.s32.totalorder %v346, 5
      %v1039 = vsel %vm1038, 1, 0
      %v1040 = vcvt.s32.f32 %v1039
      %v1041 = vlaneseq
      %v1042 = vshrl.u32 %v1041, 7
      %v1043 = vsub.s32 0, %v1042
      %v1044 = vrot.slane %v1035, %v1043
      %v1045 = vmul.f32 %v1040, %v1044
      %v1046 = vadd.f32 %v932, %v1045
      %v1047 = vlaneseq
      %v1048 = vshrl.u32 %v1047, 7
      %v1049 = vsub.s32 6, %v1048
      %v1050 = vrot.slane %v357, %v1049
      %v1051 = vmul.f32 %v1050, %v342
      %v1052 = vmul.f32 %v1050, %v343
      %v1053 = vmul.f32 %v1051, 1.442695
      %v1054 = vpow.pop %v1053
      %v1055 = vmul.f32 %v1052, 1.442695
      %v1056 = vpow.pop %v1055
      %v1057 = vlaneseq
      %v1058 = vshrl.u32 %v1057, 7
      %v1059 = vsub.s32 6, %v1058
      %v1060 = vrot.slane %v359, %v1059
      %v1061 = vmul.f32 %v1060, %v354
      %v1062 = vmul.f32 %v1060, %v355
      %v1063 = vsel %vm378, %v1061, 0.0
      %1064 = vadd.xlane.f32.xlu0 %v1063
      %v1065 = vpop.xlane.xlu0 %1064
      %v1066 = vsel %vm378, %v1062, 0.0
      %1067 = vadd.xlane.f32.xlu0 %v1066
      %v1068 = vpop.xlane.xlu0 %1067
      %v1069 = vmul.f32 %v1054, %v963
      %v1070 = vmul.f32 %v1056, %v964
      %v1071 = vlaneseq
      %v1072 = vshrl.u32 %v1071, 7
      %v1073 = vsub.s32 6, %v1072
      %v1074 = vrot.slane %v361, %v1073
      %v1075 = vmul.f32 %v1065, %v1074
      %v1076 = vmul.f32 %v1068, %v1074
      %v1077 = vadd.f32 %v1069, %v1075
      %v1078 = vadd.f32 %v1070, %v1076
      %v1079 = vrot.slane %v360, 6
      %v1080 = vsel %vm378, %v1079, 0
      %1082 = vmatprep.subr.mxu0 0.0
      %1083 = vmatpush1.msra.mxu0 0.0
      %1084 = vmatprep.subr.mxu0 0.0
      %1085 = vmatpush1.msra.mxu0 0.0
      %1086 = vmatprep.subr.mxu0 0.0
      %1087 = vmatpush1.msra.mxu0 0.0
      %1088 = vmatprep.subr.mxu0 0.0
      %1089 = vmatpush1.msra.mxu0 0.0
      %1090 = vmatprep.subr.mxu0 0.0
      %1091 = vmatpush1.msra.mxu0 0.0
      %1092 = vmatprep.subr.mxu0 0.0
      %1093 = vmatpush1.msra.mxu0 0.0
      %1094 = vmatprep.subr.mxu0 0.0
      %1095 = vmatpush1.msra.mxu0 0.0
      %1096 = vmatprep.subr.mxu0 0.0
      %1097 = vmatpush1.msra.mxu0 0.0
      %1098 = vmatprep.subr.mxu0 0.0
      %1099 = vmatpush1.msra.mxu0 0.0
      %1100 = vmatprep.subr.mxu0 0.0
      %1101 = vmatpush1.msra.mxu0 0.0
      %1102 = vmatprep.subr.mxu0 0.0
      %1103 = vmatpush1.msra.mxu0 0.0
      %1104 = vmatprep.subr.mxu0 0.0
      %1105 = vmatpush1.msra.mxu0 0.0
      %1106 = vmatprep.subr.mxu0 0.0
      %1107 = vmatpush1.msra.mxu0 0.0
      %1108 = vmatprep.subr.mxu0 0.0
      %1109 = vmatpush1.msra.mxu0 0.0
      %1110 = vmatprep.subr.mxu0 0.0
      %1111 = vmatpush1.msra.mxu0 %v1078
      %1112 = vmatprep.subr.mxu0 0.0
      %1113 = vmatpush1.msra.mxu0 %v1077
      %1114 = vmatprep.subr.mxu0 0.0
      %1115 = vmatpush2.msra.mxu0 0.0
      %1116 = vmatprep.subr.mxu0 0.0
      %1117 = vmatpush2.msra.mxu0 0.0
      %1118 = vmatprep.subr.mxu0 0.0
      %1119 = vmatpush2.msra.mxu0 0.0
      %1120 = vmatprep.subr.mxu0 0.0
      %1121 = vmatpush2.msra.mxu0 0.0
      %1122 = vmatprep.subr.mxu0 0.0
      %1123 = vmatpush2.msra.mxu0 0.0
      %1124 = vmatprep.subr.mxu0 0.0
      %1125 = vmatpush2.msra.mxu0 0.0
      %1126 = vmatprep.subr.mxu0 0.0
      %1127 = vmatpush2.msra.mxu0 0.0
      %1128 = vmatprep.subr.mxu0 0.0
      %1129 = vmatpush2.msra.mxu0 0.0
      %1130 = vmatprep.subr.mxu0 0.0
      %1131 = vmatpush2.msra.mxu0 0.0
      %1132 = vmatprep.subr.mxu0 0.0
      %1133 = vmatpush2.msra.mxu0 0.0
      %1134 = vmatprep.subr.mxu0 0.0
      %1135 = vmatpush2.msra.mxu0 0.0
      %1136 = vmatprep.subr.mxu0 0.0
      %1137 = vmatpush2.msra.mxu0 0.0
      %1138 = vmatprep.subr.mxu0 0.0
      %1139 = vmatpush2.msra.mxu0 0.0
      %1140 = vmatprep.subr.mxu0 0.0
      %1141 = vmatpush2.msra.mxu0 0.0
      %1142 = vmatprep.subr.mxu0 0.0
      %1143 = vmatpush2.msra.mxu0 0.0
      %1144 = vmatprep.subr.mxu0 0.0
      %1145 = vmatpush2.msra.mxu0 0.0
      %1146 = vmatprep.mubr.f32.mxu0 0.0
      %1147 = vmatmul.mubr.f32.gmra.mxu0 %v1080
      %v1148 = vpop.f32.mrf.mxu0
      %v1149 = vadd.f32 0.0, %v1148
      %v1150 = vpop.f32.mrf.mxu0
      %1151 = vdwg.mxu0
      %vm1152 = vcmp.eq.s32.totalorder %v346, 6
      %v1153 = vsel %vm1152, 1, 0
      %v1154 = vcvt.s32.f32 %v1153
      %v1155 = vlaneseq
      %v1156 = vshrl.u32 %v1155, 7
      %v1157 = vsub.s32 0, %v1156
      %v1158 = vrot.slane %v1149, %v1157
      %v1159 = vmul.f32 %v1154, %v1158
      %v1160 = vadd.f32 %v1046, %v1159
      %v1161 = vlaneseq
      %v1162 = vshrl.u32 %v1161, 7
      %v1163 = vsub.s32 7, %v1162
      %v1164 = vrot.slane %v357, %v1163
      %v1165 = vmul.f32 %v1164, %v342
      %v1166 = vmul.f32 %v1164, %v343
      %v1167 = vmul.f32 %v1165, 1.442695
      %v1168 = vpow.pop %v1167
      %v1169 = vmul.f32 %v1166, 1.442695
      %v1170 = vpow.pop %v1169
      %v1171 = vlaneseq
      %v1172 = vshrl.u32 %v1171, 7
      %v1173 = vsub.s32 7, %v1172
      %v1174 = vrot.slane %v359, %v1173
      %v1175 = vmul.f32 %v1174, %v354
      %v1176 = vmul.f32 %v1174, %v355
      %v1177 = vsel %vm378, %v1175, 0.0
      %1178 = vadd.xlane.f32.xlu0 %v1177
      %v1179 = vpop.xlane.xlu0 %1178
      %v1180 = vsel %vm378, %v1176, 0.0
      %1181 = vadd.xlane.f32.xlu0 %v1180
      %v1182 = vpop.xlane.xlu0 %1181
      %v1183 = vmul.f32 %v1168, %v1077
      %v1184 = vmul.f32 %v1170, %v1078
      %v1185 = vlaneseq
      %v1186 = vshrl.u32 %v1185, 7
      %v1187 = vsub.s32 7, %v1186
      %v1188 = vrot.slane %v361, %v1187
      %v1189 = vmul.f32 %v1179, %v1188
      %v1190 = vmul.f32 %v1182, %v1188
      %v1191 = vadd.f32 %v1183, %v1189
      %v1192 = vadd.f32 %v1184, %v1190
      %v1193 = vrot.slane %v360, 7
      %v1194 = vsel %vm378, %v1193, 0
      %1196 = vmatprep.subr.mxu0 0.0
      %1197 = vmatpush1.msra.mxu0 0.0
      %1198 = vmatprep.subr.mxu0 0.0
      %1199 = vmatpush1.msra.mxu0 0.0
      %1200 = vmatprep.subr.mxu0 0.0
      %1201 = vmatpush1.msra.mxu0 0.0
      %1202 = vmatprep.subr.mxu0 0.0
      %1203 = vmatpush1.msra.mxu0 0.0
      %1204 = vmatprep.subr.mxu0 0.0
      %1205 = vmatpush1.msra.mxu0 0.0
      %1206 = vmatprep.subr.mxu0 0.0
      %1207 = vmatpush1.msra.mxu0 0.0
      %1208 = vmatprep.subr.mxu0 0.0
      %1209 = vmatpush1.msra.mxu0 0.0
      %1210 = vmatprep.subr.mxu0 0.0
      %1211 = vmatpush1.msra.mxu0 0.0
      %1212 = vmatprep.subr.mxu0 0.0
      %1213 = vmatpush1.msra.mxu0 0.0
      %1214 = vmatprep.subr.mxu0 0.0
      %1215 = vmatpush1.msra.mxu0 0.0
      %1216 = vmatprep.subr.mxu0 0.0
      %1217 = vmatpush1.msra.mxu0 0.0
      %1218 = vmatprep.subr.mxu0 0.0
      %1219 = vmatpush1.msra.mxu0 0.0
      %1220 = vmatprep.subr.mxu0 0.0
      %1221 = vmatpush1.msra.mxu0 0.0
      %1222 = vmatprep.subr.mxu0 0.0
      %1223 = vmatpush1.msra.mxu0 0.0
      %1224 = vmatprep.subr.mxu0 0.0
      %1225 = vmatpush1.msra.mxu0 %v1192
      %1226 = vmatprep.subr.mxu0 0.0
      %1227 = vmatpush1.msra.mxu0 %v1191
      %1228 = vmatprep.subr.mxu0 0.0
      %1229 = vmatpush2.msra.mxu0 0.0
      %1230 = vmatprep.subr.mxu0 0.0
      %1231 = vmatpush2.msra.mxu0 0.0
      %1232 = vmatprep.subr.mxu0 0.0
      %1233 = vmatpush2.msra.mxu0 0.0
      %1234 = vmatprep.subr.mxu0 0.0
      %1235 = vmatpush2.msra.mxu0 0.0
      %1236 = vmatprep.subr.mxu0 0.0
      %1237 = vmatpush2.msra.mxu0 0.0
      %1238 = vmatprep.subr.mxu0 0.0
      %1239 = vmatpush2.msra.mxu0 0.0
      %1240 = vmatprep.subr.mxu0 0.0
      %1241 = vmatpush2.msra.mxu0 0.0
      %1242 = vmatprep.subr.mxu0 0.0
      %1243 = vmatpush2.msra.mxu0 0.0
      %1244 = vmatprep.subr.mxu0 0.0
      %1245 = vmatpush2.msra.mxu0 0.0
      %1246 = vmatprep.subr.mxu0 0.0
      %1247 = vmatpush2.msra.mxu0 0.0
      %1248 = vmatprep.subr.mxu0 0.0
      %1249 = vmatpush2.msra.mxu0 0.0
      %1250 = vmatprep.subr.mxu0 0.0
      %1251 = vmatpush2.msra.mxu0 0.0
      %1252 = vmatprep.subr.mxu0 0.0
      %1253 = vmatpush2.msra.mxu0 0.0
      %1254 = vmatprep.subr.mxu0 0.0
      %1255 = vmatpush2.msra.mxu0 0.0
      %1256 = vmatprep.subr.mxu0 0.0
      %1257 = vmatpush2.msra.mxu0 0.0
      %1258 = vmatprep.subr.mxu0 0.0
      %1259 = vmatpush2.msra.mxu0 0.0
      %1260 = vmatprep.mubr.f32.mxu0 0.0
      %1261 = vmatmul.mubr.f32.gmra.mxu0 %v1194
      %v1262 = vpop.f32.mrf.mxu0
      %v1263 = vadd.f32 0.0, %v1262
      %v1264 = vpop.f32.mrf.mxu0
      %1265 = vdwg.mxu0
      %vm1266 = vcmp.eq.s32.totalorder %v346, 7
      %v1267 = vsel %vm1266, 1, 0
      %v1268 = vcvt.s32.f32 %v1267
      %v1269 = vlaneseq
      %v1270 = vshrl.u32 %v1269, 7
      %v1271 = vsub.s32 0, %v1270
      %v1272 = vrot.slane %v1263, %v1271
      %v1273 = vmul.f32 %v1268, %v1272
      %v1274 = vadd.f32 %v1160, %v1273
      %v1276 = vlaneseq
      %v1277 = vshrl.u32 %v1276, 7
      %v1278 = vsub.s32 0, %v1277
      %v1279 = vrot.slane %v344, %v1278
      %v1281 = vmul.f32 %v356, %v1279
      %v1282 = vadd.f32 %v1274, %v1281
      %v1283 = vxor.u32 %v358, 2147483648
      %v1284 = vmul.f32 %v1283, 1.442695
      %v1285 = vpow.pop %v1284
      %v1286 = vadd.f32 %v1285, 1.0
      %v1287 = vrcp.pop %v1286
      %v1288 = vmul.f32 1.0, %v1287
      %v1289 = vmul.f32 %v358, %v1288
      %v1290 = vmul.f32 %v1282, %v1289
      %vm1291 = vcmask 523264
      %1292 = vst.msk [vmem:[%s341] sm:$0xff] %vm1291, %v1290
      %p1293 = scmp.lt.s32.totalorder %s18, 1
      %s1294 = scalar_select %p1293, %s18, 1
      %s1295 = smul.addr %s1294, 8
      %s1296 = scalar_lea.vmem %s7, %s1295
      // Predicated region
      $region49: #{_lambda_.11} parent=47 // pred_check
        %p1297 = pneg %p208
      $region50: #{_lambda_.11} parent=47 // pred_check_branch
        %1299 = sbr.rel (%p1297) target = $region52
      $region51: #{_lambda_.11} parent=47 // pred_region
        _
      $region52: #{_lambda_.11} parent=47 // pred_fallthru
        _
    $region48: #{_lambda_.11} parent=5 // pred_fallthru
      _
    %p1300 = scmp.le.s32.totalorder 2, %s13
    // Predicated region
    $region53: #{_lambda_.11} parent=5 // pred_check
      %p1301 = pneg %p1300
    $region54: #{_lambda_.11} parent=5 // pred_check_branch
      %1303 = sbr.rel (%p1301) target = $region56
    $region55: #{_lambda_.11} parent=5 // pred_region
      %s1304 = ssub.s32 %s13, 2
      // Predicated region
      $region57: #{_lambda_.11} parent=55 // pred_check
        %p1305 = pneg %p214
      $region58: #{_lambda_.11} parent=55 // pred_check_branch
        %1307 = sbr.rel (%p1305) target = $region60
      $region59: #{_lambda_.11} parent=55 // pred_region
        %p1308 = scmp.lt.s32.totalorder %s19, 1
        %s1309 = scalar_select %p1308, %s19, 1
        %s1310 = smul.addr %s1309, 8
        %s1311 = scalar_lea.vmem %s7, %s1310
      $region60: #{_lambda_.11} parent=55 // pred_fallthru
        _
    $region56: #{_lambda_.11} parent=5 // pred_fallthru
      _
  $region6: #{_lambda_.11} parent=0 // loop_footer
    %s17 = sadd.s32 1, %s13
  $region7: #{_lambda_.11} parent=0 // loop_footer_branch
    %12 = sbr.rel target = $region3
  $region8: #{_lambda_.11} parent=0 // loop_exit
    _

</llo_original>
